<compile_context>
chip_gen: v6e
topology: v6e:2x2x1
jax: 0.10.0
libtpu: 0.0.40
codegen_flags: <defaults>
</compile_context>

<pallas_src>
import functools
import numpy as np

import jax
import jax.numpy as jnp
from jax.experimental import pallas as pl
from jax.experimental.pallas import tpu as pltpu

F32 = jnp.float32


# ----------------------------------------------------------------------------
# Kernel 1: fused GNN backbone (pose -> per-joint FiLM code), one pallas_call.
# ----------------------------------------------------------------------------
def _backbone_kernel(x_ref, w0_ref, b0_ref, w1_ref, b1_ref, w2_ref, b2_ref,
                     w3_ref, b3_ref, o_ref, *, rigid_idxs, W, F):
    x = x_ref[...]                                                # (G, Jt*Cin)
    h = jnp.maximum(jnp.dot(x, w0_ref[...], preferred_element_type=F32) + b0_ref[...], 0.0)
    h = jnp.maximum(jnp.dot(h, w1_ref[...], preferred_element_type=F32) + b1_ref[...], 0.0)
    h = jnp.maximum(jnp.dot(h, w2_ref[...], preferred_element_type=F32) + b2_ref[...], 0.0)
    # per rigid joint FiLM head (avoids the dense Jt*W x Jr*2RW folded weight).
    for j, idx in enumerate(rigid_idxs):
        hj = h[:, idx * W:(idx + 1) * W]                          # (G, W) static slice
        o_ref[:, j * F:(j + 1) * F] = (
            jnp.dot(hj, w3_ref[j], preferred_element_type=F32) + b3_ref[j])


def film_backbone(prep, pose):
    G = pose.shape[0]
    Jr, RW, W = prep['Jr'], prep['RW'], prep['W']
    x = (pose * prep['mask']).reshape(G, -1)                      # mask root, flatten joints
    film_flat = pl.pallas_call(
        functools.partial(_backbone_kernel, rigid_idxs=prep['rigid_idxs_py'],
                          W=W, F=2 * RW),
        out_shape=jax.ShapeDtypeStruct((G, Jr * 2 * RW), F32),
    )(x, prep['bb_w0'], prep['bb_b0'], prep['bb_w1'], prep['bb_b1'],
      prep['bb_w2'], prep['bb_b2'], prep['bb_w3'], prep['bb_b3'])
    return film_flat.reshape(G, Jr, 2 * RW)


# ----------------------------------------------------------------------------
# Kernel 2: fused per-point path.  Layout inside the kernel is (channels, lanes)
# with lanes = G*P (graphs folded into the 128-lane axis).
# ----------------------------------------------------------------------------
def _small_mm(wT, x):
    """(Cout, Kc) @ (Kc, P) with tiny Kc via VPU FMAs (keeps the MXU free)."""
    acc = wT[:, 0:1] * x[0:1, :]
    for c in range(1, wT.shape[1]):
        acc = acc + wT[:, c:c + 1] * x[c:c + 1, :]
    return acc


def _point_kernel(pts_ref, film_ref, raj_ref, tpk_ref, dw_ref, hw_ref, dm_ref,
                  bw_ref, out_ref, *, G, P, RW, NF, W4, Kp,
                  deform_scale, max_deform, clamp_deform):
    pj = pts_ref[0, 0:3, :]                      # (3, P)   joint-space points
    pc = pts_ref[0, 3:6, :]                      # (3, P)   canonical-space points
    lbsw = pts_ref[0, 6:6 + Kp, :]               # (Kp, P)
    lbsm = pts_ref[0, 6 + Kp:6 + 2 * Kp, :]      # (Kp, P)

    # ---- blend MLP + masked softmax (graph-invariant: computed once per joint) ----
    bl0_w = bw_ref[0, 0:W4, 0:3]
    bl0_b = bw_ref[0, 0:W4, 3:4]
    bl1_w = bw_ref[0, 0:W4, 4:4 + W4]
    bl1_b = bw_ref[0, 0:W4, 4 + W4:5 + W4]
    bl2_w = bw_ref[0, 0:Kp, 5 + W4:5 + 2 * W4]
    bl2_b = bw_ref[0, 0:Kp, 5 + 2 * W4:6 + 2 * W4]
    h = jnp.maximum(_small_mm(bl0_w, pj) + bl0_b, 0.0)            # (W4, P)
    h = jnp.maximum(_small_mm(bl1_w, h) + bl1_b, 0.0)             # (W4, P)
    logits = lbsw + _small_mm(bl2_w, h) + bl2_b                   # (Kp, P)
    # TODO(synk): exact `softmax_invalid` not provided; masked softmax + eps renorm.
    masked = jnp.where(lbsm > 0.5, logits, -1e30)
    m = jnp.max(masked, axis=0, keepdims=True)
    e = jnp.exp(masked - m) * lbsm
    wsm = e / (jnp.sum(e, axis=0, keepdims=True) + 1e-8)          # (Kp, P)

    # ---- deform layer 0 (graph-invariant), then FiLM per graph -> G*P lanes ----
    d0_w = dm_ref[0, :, 0:3]
    d0_b = dm_ref[0, :, 3:4]
    d1_b = dm_ref[0, :, 4:5]
    d2_b = dm_ref[0, :, 5:6]
    hd_b = dm_ref[0, 0:NF + 3, 6:7]
    z0 = jnp.maximum(_small_mm(d0_w, pj) + d0_b, 0.0)             # (RW, P)
    zparts = []
    for g in range(G):
        alpha = film_ref[0, 0:RW, g:g + 1]                        # (RW, 1)
        gamma = film_ref[0, RW:2 * RW, g:g + 1]                   # (RW, 1)
        zparts.append(z0 * alpha + gamma)
    z = jnp.concatenate(zparts, axis=1)                           # (RW, G*P)

    # ---- d1/d2/head on the MXU in bf16 (f32 accumulation), N = G*P lanes ----
    d1_w = dw_ref[0, :, 0:RW]                                     # (RW, RW) bf16
    d2_w = dw_ref[0, :, RW:2 * RW]                                # (RW, RW) bf16
    hd_w = hw_ref[0]                                              # (NF+3, RW) bf16
    z = jnp.maximum(jnp.dot(d1_w, z.astype(d1_w.dtype),
                            preferred_element_type=F32) + d1_b, 0.0)
    z = jnp.maximum(jnp.dot(d2_w, z.astype(d2_w.dtype),
                            preferred_element_type=F32) + d2_b, 0.0)
    head = jnp.dot(hd_w, z.astype(hd_w.dtype),
                   preferred_element_type=F32) + hd_b             # (NF+3, G*P)

    # ---- rotate deformation to world (per-lane R, vectorized over G*P) + clamp ----
    dpl = head[NF:NF + 3, :] * deform_scale                       # (3, G*P)
    rows = []
    for a in range(3):
        acc = raj_ref[0, 3 * a + 0:3 * a + 1, :] * dpl[0:1, :]
        acc = acc + raj_ref[0, 3 * a + 1:3 * a + 2, :] * dpl[1:2, :]
        acc = acc + raj_ref[0, 3 * a + 2:3 * a + 3, :] * dpl[2:3, :]
        rows.append(acc)
    dp_uc = jnp.concatenate(rows, axis=0)                         # (3, G*P)
    if clamp_deform:
        nrm2 = jnp.sum(dp_uc * dp_uc, axis=0, keepdims=True)
        dp = dp_uc * (nrm2 < (max_deform * max_deform)).astype(F32)
    else:
        dp = dp_uc

    # ---- LBS: blend packed rigid transforms (MXU) and apply, per graph ----
    plbs_parts = []
    for g in range(G):
        blended = jnp.dot(tpk_ref[g], wsm, preferred_element_type=F32)   # (12, P)
        plbs_parts.append(blended[0:3] * pc[0:1] + blended[3:6] * pc[1:2]
                          + blended[6:9] * pc[2:3] + blended[9:12])
    p_lbs = jnp.concatenate(plbs_parts, axis=1)                   # (3, G*P)

    # ---- single lane-dense merged store: [f_theta | dp_uc | dp | p_lbs] ----
    out_ref[0] = jnp.concatenate([head[0:NF, :], dp_uc, dp, p_lbs], axis=0)


def fused_point_path(prep, film, p_j, p_c, r2ws, aj2ws, lbs_weights, lbs_masks,
                     deform_scale, max_deform, clamp_deform):
    Jr, P, _ = p_j.shape
    G = film.shape[0]
    RW, NF = prep['RW'], prep['n_pose_feat']
    W4, Kp, Rb = prep['W4'], prep['Kp'], prep['Rb']
    K = lbs_weights.shape[-1]
    GP = G * P
    Cout = NF + 9

    # ---- layout plumbing (tiny XLA ops): channels on sublanes, points on lanes ----
    pjT = jnp.transpose(p_j, (0, 2, 1))                           # (J, 3, P)
    pcT = jnp.transpose(p_c, (0, 2, 1))                           # (J, 3, P)
    lbswT = jnp.transpose(lbs_weights, (0, 2, 1))                 # (J, K, P)
    lbsmT = jnp.transpose(lbs_masks, (0, 2, 1))                   # (J, K, P)
    if Kp > K:
        pad = ((0, 0), (0, Kp - K), (0, 0))
        lbswT = jnp.pad(lbswT, pad)
        lbsmT = jnp.pad(lbsmT, pad)                               # padded joint masked out
    pts = jnp.concatenate([pjT, pcT, lbswT, lbsmT], axis=1)       # (J, 6+2Kp, P)

    filmT = jnp.transpose(film, (1, 2, 0))                        # (J, 2RW, G)

    Raj = aj2ws[:, :, :3, :3].reshape(G, Jr, 9)                   # (G, J, 9)
    raj = jnp.broadcast_to(jnp.transpose(Raj, (1, 2, 0))[..., None],
                           (Jr, 9, G, P)).reshape(Jr, 9, GP)      # per-lane R

    Rr = r2ws[:, :, :3, :3]                                       # (G, K, 3, 3)
    tr = r2ws[:, :, :3, 3]                                        # (G, K, 3)
    tpk = jnp.concatenate(
        [jnp.transpose(Rr, (0, 1, 3, 2)).reshape(G, K, 9), tr], axis=-1)   # (G, K, 12)
    tpk = jnp.transpose(tpk, (0, 2, 1))                           # (G, 12, K)
    if Kp > K:
        tpk = jnp.pad(tpk, ((0, 0), (0, 0), (0, Kp - K)))

    jmap = lambda j: (j, 0, 0)
    cmap = lambda j: (0, 0, 0)

    out = pl.pallas_call(
        functools.partial(_point_kernel, G=G, P=P, RW=RW, NF=NF, W4=W4, Kp=Kp,
                          deform_scale=deform_scale, max_deform=max_deform,
                          clamp_deform=clamp_deform),
        grid=(Jr,),
        in_specs=[
            pl.BlockSpec((1, 6 + 2 * Kp, P), jmap),      # point-data slab
            pl.BlockSpec((1, 2 * RW, G), jmap),          # FiLM alpha|gamma
            pl.BlockSpec((1, 9, GP), jmap),              # per-lane aj2ws rotation
            pl.BlockSpec((G, 12, Kp), cmap),             # packed rigid transforms (resident)
            pl.BlockSpec((1, RW, 2 * RW), jmap),         # [d1_wT | d2_wT]  bf16
            pl.BlockSpec((1, NF + 3, RW), jmap),         # head_wT          bf16
            pl.BlockSpec((1, RW, 7), jmap),              # [d0_wT, d0_b, d1_b, d2_b, hd_b]
            pl.BlockSpec((1, Rb, 2 * W4 + 6), jmap),     # blend MLP slab
        ],
        out_specs=pl.BlockSpec((1, Cout, GP), jmap),
        out_shape=jax.ShapeDtypeStruct((Jr, Cout, GP), F32),
        compiler_params=pltpu.CompilerParams(dimension_semantics=("parallel",)),
    )(pts, filmT, raj, tpk, prep['dw'], prep['hw'], prep['dm'], prep['bw'])

    # back to the PyTorch 'g j p d' layout; final adds are tiny XLA ops.
    out = jnp.transpose(out.reshape(Jr, Cout, G, P), (2, 0, 3, 1))   # (G, J, P, Cout)
    f_theta = out[..., :NF]
    dp_uc = out[..., NF:NF + 3]
    dp = out[..., NF + 3:NF + 6]
    p_lbs = out[..., NF + 6:NF + 9]
    return {'p_w': dp + p_lbs, 'p_w_uc': dp_uc + p_lbs, 'dp': dp,
            'dp_uc': dp_uc, 'p_lbs': p_lbs, 'f_theta': f_theta}


# ----------------------------------------------------------------------------
# Forward (jitted) and one-time parameter preparation
# ----------------------------------------------------------------------------
def npc_gnn_film_forward(prep, p_j, p_c, r2ws, aj2ws, pose, lbs_weights, lbs_masks,
                         *, deform_scale=0.01, max_deform=0.04, clamp_deform=True):
    film = film_backbone(prep, pose)
    return fused_point_path(prep, film, p_j, p_c, r2ws, aj2ws, lbs_weights, lbs_masks,
                            deform_scale, max_deform, clamp_deform)


def prepare_params(params, buffers, *, Jt, Jr, W, RW, n_pose_feat):
    """One-time (outside jit) re-packing of module params into kernel layouts."""
    rigid_np = np.asarray(buffers['rigid_idxs'])
    W4 = W // 4
    Kp = max(8, int(np.ceil(Jr / 8.0)) * 8)
    Rb = max(W4, Kp)
    prep = {'Jt': Jt, 'Jr': Jr, 'W': W, 'RW': RW, 'n_pose_feat': n_pose_feat,
            'W4': W4, 'Kp': Kp, 'Rb': Rb, 'mask': buffers['mask'],
            'rigid_idxs_py': tuple(int(i) for i in rigid_np)}

    # ---- backbone: fold adjacency into flat per-layer weights (exact) ----
    def blockdiag(w):                      # (n, cin, cout) -> (n*cin, n*cout)
        n, cin, cout = w.shape
        eye = jnp.eye(n, dtype=F32)
        return (eye[:, None, :, None] * w[:, :, None, :]).reshape(n * cin, n * cout)

    def gcn_flat(w, adjw, b):
        n, cin, cout = w.shape
        weff = (w[:, :, None, :] * adjw.T[:, None, :, None]).reshape(n * cin, n * cout)
        return weff, jnp.tile(b, n)[None, :]

    w0, a0, b0 = params['gcn0']
    prep['bb_w0'], prep['bb_b0'] = gcn_flat(w0, a0, b0)
    w1, a1, b1 = params['gcn1']
    prep['bb_w1'], prep['bb_b1'] = gcn_flat(w1, a1, b1)
    w2, b2 = params['pl2']
    prep['bb_w2'], prep['bb_b2'] = blockdiag(w2), b2.reshape(1, -1)
    w3, b3 = params['pl3']                 # keep per-joint: no Jr-fold blow-up
    prep['bb_w3'] = w3                                              # (Jr, W, 2RW)
    prep['bb_b3'] = b3.reshape(Jr, 1, 2 * RW)

    # ---- per-joint point-path slabs ----
    def t_(w):                             # (n, cin, cout) -> (n, cout, cin)
        return jnp.transpose(w, (0, 2, 1))

    d0_w, d0_b = params['d0']
    d1_w, d1_b = params['d1']
    d2_w, d2_b = params['d2']
    dh_w, dh_b = params['d3']
    prep['dw'] = jnp.concatenate([t_(d1_w), t_(d2_w)], axis=-1).astype(jnp.bfloat16)
    prep['hw'] = t_(dh_w).astype(jnp.bfloat16)                     # (Jr, NF+3, RW)
    hd_b_col = jnp.zeros((Jr, RW, 1), F32).at[:, :n_pose_feat + 3, 0].set(dh_b)
    prep['dm'] = jnp.concatenate(
        [t_(d0_w), d0_b[..., None], d1_b[..., None], d2_b[..., None], hd_b_col], axis=-1)

    def rows_pad(a, R):
        return jnp.pad(a, ((0, 0), (0, R - a.shape[1]), (0, 0)))

    bl0_w, bl0_b = params['bl0']
    bl1_w, bl1_b = params['bl1']
    bl2_w, bl2_b = params['bl2']
    prep['bw'] = jnp.concatenate(
        [rows_pad(t_(bl0_w), Rb), rows_pad(bl0_b[..., None], Rb),
         rows_pad(t_(bl1_w), Rb), rows_pad(bl1_b[..., None], Rb),
         rows_pad(t_(bl2_w), Rb), rows_pad(bl2_b[..., None], Rb)], axis=-1)
    return prep


# ----------------------------------------------------------------------------
# Pure-JAX reference (mirrors the PyTorch module) for correctness checking
# ----------------------------------------------------------------------------
def reference_forward(params, buffers, p_j, p_c, r2ws, aj2ws, pose, lbs_weights, lbs_masks,
                      *, RW, n_pose_feat, deform_scale=0.01, max_deform=0.04,
                      clamp_deform=True):
    hp = jax.lax.Precision.HIGHEST
    x = pose * buffers['mask']

    def gcn(x, w, adjw, b):
        h = jnp.einsum('gjc,jcd->gjd', x, w, precision=hp)
        return jnp.einsum('ij,gjd->gid', adjw, h, precision=hp) + b

    w0, a0, b0 = params['gcn0']; x = jax.nn.relu(gcn(x, w0, a0, b0))
    w1, a1, b1 = params['gcn1']; x = jax.nn.relu(gcn(x, w1, a1, b1))
    w2, b2 = params['pl2']
    x = jax.nn.relu(jnp.einsum('gjc,jcd->gjd', x, w2, precision=hp) + b2[None])
    x = x[:, buffers['rigid_idxs']]
    w3, b3 = params['pl3']
    film = jnp.einsum('gjc,jcd->gjd', x, w3, precision=hp) + b3[None]
    alpha = film[..., :RW][:, :, None, :]
    gamma = film[..., RW:][:, :, None, :]

    w, b = params['d0']
    z = jax.nn.relu(jnp.einsum('jpc,jcd->jpd', p_j, w, precision=hp) + b[:, None, :])
    z = z[None] * alpha + gamma
    for key in ('d1', 'd2'):
        w, b = params[key]
        z = jax.nn.relu(jnp.einsum('gjpc,jcd->gjpd', z, w, precision=hp) + b[None, :, None, :])
    w, b = params['d3']
    head = jnp.einsum('gjpc,jcd->gjpd', z, w, precision=hp) + b[None, :, None, :]
    f_theta = head[..., :n_pose_feat]
    dp_uc = head[..., n_pose_feat:] * deform_scale
    dp_uc = jnp.einsum('gjab,gjpb->gjpa', aj2ws[:, :, :3, :3], dp_uc, precision=hp)
    if clamp_deform:
        nrm2 = jnp.sum(dp_uc * dp_uc, axis=-1, keepdims=True)
        dp = dp_uc * (nrm2 < max_deform ** 2).astype(F32)
    else:
        dp = dp_uc

    h = p_j
    for key in ('bl0', 'bl1'):
        w, b = params[key]
        h = jax.nn.relu(jnp.einsum('jpc,jcd->jpd', h, w, precision=hp) + b[:, None, :])
    w, b = params['bl2']
    res = jnp.einsum('jpc,jcd->jpd', h, w, precision=hp) + b[:, None, :]
    logits = lbs_weights + res
    masked = jnp.where(lbs_masks > 0.5, logits, -1e30)
    m = jnp.max(masked, axis=-1, keepdims=True)
    e = jnp.exp(masked - m) * lbs_masks
    wsm = e / (jnp.sum(e, axis=-1, keepdims=True) + 1e-8)
    Rr = r2ws[:, :, :3, :3]
    tr = r2ws[:, :, :3, 3]
    Rb = jnp.einsum('jpk,gkab->gjpab', wsm, Rr, precision=hp)
    tb = jnp.einsum('jpk,gka->gjpa', wsm, tr, precision=hp)
    p_lbs = jnp.einsum('gjpab,jpb->gjpa', Rb, p_c, precision=hp) + tb
    return {'p_w': dp + p_lbs, 'p_w_uc': dp_uc + p_lbs, 'dp': dp, 'dp_uc': dp_uc,
            'p_lbs': p_lbs, 'f_theta': f_theta}


# ----------------------------------------------------------------------------
# deterministic parameter / input construction
# ----------------------------------------------------------------------------
def skeleton_to_adj(joint_trees):
    n = len(joint_trees)
    adj = np.eye(n, dtype=np.float32)
    for i, j in enumerate(joint_trees):
        if i == j:
            continue
        adj[i, j] = 1.0
        adj[j, i] = 1.0
    return jnp.asarray(adj)


def make_adjw(key, adj, init_w=0.05, perturb=0.1):
    noise = jax.random.uniform(key, adj.shape, F32)
    w = jnp.clip(init_w + (noise - 0.5) * perturb, 0.01, 1.0) * adj
    idx = jnp.arange(adj.shape[-1])
    w = w.at[idx, idx].set(1.0)
    return w * adj


def init_lin(key, n_nodes, cin, cout):
    kw, kb = jax.random.split(key)
    s = 1.0 / np.sqrt(cin)
    w = jax.random.uniform(kw, (n_nodes, cin, cout), F32, -s, s)
    b = jax.random.uniform(kb, (n_nodes, cout), F32, -s, s)
    return w, b


def build_params(key, Jt, Jr, per_node_input, W, RW, n_pose_feat, adj):
    ks = jax.random.split(key, 16)
    params = {}
    w0, _ = init_lin(ks[0], Jt, per_node_input, W)
    params['gcn0'] = (w0, make_adjw(ks[1], adj), jnp.zeros((W,), F32))
    w1, _ = init_lin(ks[2], Jt, W, W)
    params['gcn1'] = (w1, make_adjw(ks[3], adj), jnp.zeros((W,), F32))
    params['pl2'] = init_lin(ks[4], Jt, W, W)
    params['pl3'] = init_lin(ks[5], Jr, W, 2 * RW)
    params['d0'] = init_lin(ks[6], Jr, 3, RW)
    params['d1'] = init_lin(ks[7], Jr, RW, RW)
    params['d2'] = init_lin(ks[8], Jr, RW, RW)
    # last deform layer (single ParallelLinear, split into f_theta / dp after)
    wh = 0.01 * jax.random.normal(ks[9], (Jr, RW, n_pose_feat + 3), F32)
    params['d3'] = (wh, jnp.zeros((Jr, n_pose_feat + 3), F32))
    params['bl0'] = init_lin(ks[10], Jr, 3, W // 4)
    params['bl1'] = init_lin(ks[11], Jr, W // 4, W // 4)
    params['bl2'] = init_lin(ks[12], Jr, W // 4, Jr)
    return params


if __name__ == "__main__":
    # synthetic skeleton: 8 joints, root = 0, rigid joints = 1..7
    joint_trees = [0, 0, 1, 2, 0, 4, 5, 6]
    Jt = len(joint_trees)
    rigid_idxs = np.arange(1, Jt)
    Jr = len(rigid_idxs)

    G = 2                 # N_graphs
    P = 128               # points per joint volume
    per_node_input = 6
    W = 32                # GNN width  (blend width = W // 4)
    RW = 128              # FiLM / deform width
    n_pose_feat = 8

    adj = skeleton_to_adj(joint_trees)
    key = jax.random.PRNGKey(0)
    kp, kin = jax.random.split(key)
    params = build_params(kp, Jt, Jr, per_node_input, W, RW, n_pose_feat, adj)

    mask = jnp.ones((1, Jt, 1), F32).at[:, 0, :].set(0.0)
    buffers = {'mask': mask, 'rigid_idxs': jnp.asarray(rigid_idxs)}

    k1, k2, k3, k4, k5, k6, k7 = jax.random.split(kin, 7)
    pose = jax.random.normal(k1, (G, Jt, per_node_input), F32)
    p_j = 0.1 * jax.random.normal(k2, (Jr, P, 3), F32)
    p_c = 0.1 * jax.random.normal(k3, (Jr, P, 3), F32)
    eye4 = jnp.eye(4, dtype=F32)
    r2ws = eye4[None, None] + 0.1 * jax.random.normal(k4, (G, Jr, 4, 4), F32)
    aj2ws = eye4[None, None] + 0.1 * jax.random.normal(k5, (G, Jr, 4, 4), F32)
    lbs_weights = jax.random.normal(k6, (Jr, P, Jr), F32)
    lbs_masks = (jax.random.uniform(k7, (Jr, P, Jr)) > 0.3).astype(F32)
    lbs_masks = lbs_masks.at[..., 0].set(1.0)   # >= 1 valid joint per point

    prep = prepare_params(params, buffers, Jt=Jt, Jr=Jr, W=W, RW=RW,
                          n_pose_feat=n_pose_feat)

    fwd = jax.jit(functools.partial(npc_gnn_film_forward, prep))
    out = fwd(p_j, p_c, r2ws, aj2ws, pose, lbs_weights, lbs_masks)
    jax.block_until_ready(out)

    assert out['p_w'].shape == (G, Jr, P, 3)
    assert out['p_lbs'].shape == (G, Jr, P, 3)
    assert out['f_theta'].shape == (G, Jr, P, n_pose_feat)

    # correctness check against a pure-JAX reference of the module.
    # f_theta has a slightly looser tolerance because d1/d2/head run in bf16 on MXU.
    ref = reference_forward(params, buffers, p_j, p_c, r2ws, aj2ws, pose,
                            lbs_weights, lbs_masks, RW=RW, n_pose_feat=n_pose_feat)
    tols = {'p_w_uc': (5e-3, 5e-4), 'p_w': (5e-3, 5e-4), 'dp_uc': (5e-3, 5e-4),
            'dp': (5e-3, 5e-4), 'p_lbs': (5e-3, 5e-4), 'f_theta': (1e-2, 1e-3)}
    for name, (rt, at) in tols.items():
        np.testing.assert_allclose(np.asarray(out[name]), np.asarray(ref[name]),
                                   rtol=rt, atol=at)

    print("KERNEL_OK")
</pallas_src>

<mosaic_0001>
module attributes {stable_mosaic.version = 11 : i64} {
  func.func @_backbone_kernel(%arg0: memref<2x48xf32, #tpu.memory_space<vmem>>, %arg1: memref<48x256xf32, #tpu.memory_space<vmem>>, %arg2: memref<1x256xf32, #tpu.memory_space<vmem>>, %arg3: memref<256x256xf32, #tpu.memory_space<vmem>>, %arg4: memref<1x256xf32, #tpu.memory_space<vmem>>, %arg5: memref<256x256xf32, #tpu.memory_space<vmem>>, %arg6: memref<1x256xf32, #tpu.memory_space<vmem>>, %arg7: memref<7x32x256xf32, #tpu.memory_space<vmem>>, %arg8: memref<7x1x256xf32, #tpu.memory_space<vmem>>, %arg9: memref<2x1792xf32, #tpu.memory_space<vmem>>) attributes {dimension_semantics = [], scalar_prefetch = 0 : i64, scratch_operands = 0 : i64, tpu.core_type = #tpu.core_type<tc>} {
    %c0 = arith.constant 0 : index
    %c0_0 = arith.constant 0 : index
    %0 = vector.load %arg0[%c0, %c0_0] : memref<2x48xf32, #tpu.memory_space<vmem>>, vector<2x48xf32>
    %c0_1 = arith.constant 0 : index
    %c0_2 = arith.constant 0 : index
    %1 = vector.load %arg1[%c0_1, %c0_2] : memref<48x256xf32, #tpu.memory_space<vmem>>, vector<48x256xf32>
    %cst = arith.constant dense<0.000000e+00> : vector<2x256xf32>
    %2 = tpu.matmul %0, %1, %cst {dimension_numbers = #tpu.dot_dimension_numbers<[1], [0], [0], [1], [0, 0, 1, 1], [], []>} : vector<2x48xf32>, vector<48x256xf32>, vector<2x256xf32> -> vector<2x256xf32>
    %c0_3 = arith.constant 0 : index
    %c0_4 = arith.constant 0 : index
    %3 = vector.load %arg2[%c0_3, %c0_4] : memref<1x256xf32, #tpu.memory_space<vmem>>, vector<1x256xf32>
    %4 = vector.broadcast %3 : vector<1x256xf32> to vector<2x256xf32>
    %5 = arith.addf %2, %4 : vector<2x256xf32>
    %cst_5 = arith.constant 0.000000e+00 : f32
    %6 = vector.broadcast %cst_5 : f32 to vector<2x256xf32>
    %7 = arith.maximumf %5, %6 : vector<2x256xf32>
    %c0_6 = arith.constant 0 : index
    %c0_7 = arith.constant 0 : index
    %8 = vector.load %arg3[%c0_6, %c0_7] : memref<256x256xf32, #tpu.memory_space<vmem>>, vector<256x256xf32>
    %cst_8 = arith.constant dense<0.000000e+00> : vector<2x256xf32>
    %9 = tpu.matmul %7, %8, %cst_8 {dimension_numbers = #tpu.dot_dimension_numbers<[1], [0], [0], [1], [0, 0, 1, 1], [], []>} : vector<2x256xf32>, vector<256x256xf32>, vector<2x256xf32> -> vector<2x256xf32>
    %c0_9 = arith.constant 0 : index
    %c0_10 = arith.constant 0 : index
    %10 = vector.load %arg4[%c0_9, %c0_10] : memref<1x256xf32, #tpu.memory_space<vmem>>, vector<1x256xf32>
    %11 = vector.broadcast %10 : vector<1x256xf32> to vector<2x256xf32>
    %12 = arith.addf %9, %11 : vector<2x256xf32>
    %cst_11 = arith.constant 0.000000e+00 : f32
    %13 = vector.broadcast %cst_11 : f32 to vector<2x256xf32>
    %14 = arith.maximumf %12, %13 : vector<2x256xf32>
    %c0_12 = arith.constant 0 : index
    %c0_13 = arith.constant 0 : index
    %15 = vector.load %arg5[%c0_12, %c0_13] : memref<256x256xf32, #tpu.memory_space<vmem>>, vector<256x256xf32>
    %cst_14 = arith.constant dense<0.000000e+00> : vector<2x256xf32>
    %16 = tpu.matmul %14, %15, %cst_14 {dimension_numbers = #tpu.dot_dimension_numbers<[1], [0], [0], [1], [0, 0, 1, 1], [], []>} : vector<2x256xf32>, vector<256x256xf32>, vector<2x256xf32> -> vector<2x256xf32>
    %c0_15 = arith.constant 0 : index
    %c0_16 = arith.constant 0 : index
    %17 = vector.load %arg6[%c0_15, %c0_16] : memref<1x256xf32, #tpu.memory_space<vmem>>, vector<1x256xf32>
    %18 = vector.broadcast %17 : vector<1x256xf32> to vector<2x256xf32>
    %19 = arith.addf %16, %18 : vector<2x256xf32>
    %cst_17 = arith.constant 0.000000e+00 : f32
    %20 = vector.broadcast %cst_17 : f32 to vector<2x256xf32>
    %21 = arith.maximumf %19, %20 : vector<2x256xf32>
    %22 = vector.extract_strided_slice %21 {offsets = [0, 32], sizes = [2, 32], strides = [1, 1]} : vector<2x256xf32> to vector<2x32xf32>
    %c0_18 = arith.constant 0 : index
    %c0_19 = arith.constant 0 : index
    %c0_20 = arith.constant 0 : index
    %23 = vector.load %arg7[%c0_18, %c0_19, %c0_20] : memref<7x32x256xf32, #tpu.memory_space<vmem>>, vector<1x32x256xf32>
    %24 = vector.shape_cast %23 : vector<1x32x256xf32> to vector<32x256xf32>
    %cst_21 = arith.constant dense<0.000000e+00> : vector<2x256xf32>
    %25 = tpu.matmul %22, %24, %cst_21 {dimension_numbers = #tpu.dot_dimension_numbers<[1], [0], [0], [1], [0, 0, 1, 1], [], []>} : vector<2x32xf32>, vector<32x256xf32>, vector<2x256xf32> -> vector<2x256xf32>
    %c0_22 = arith.constant 0 : index
    %c0_23 = arith.constant 0 : index
    %c0_24 = arith.constant 0 : index
    %26 = vector.load %arg8[%c0_22, %c0_23, %c0_24] : memref<7x1x256xf32, #tpu.memory_space<vmem>>, vector<1x1x256xf32>
    %27 = vector.shape_cast %26 : vector<1x1x256xf32> to vector<1x256xf32>
    %28 = vector.broadcast %27 : vector<1x256xf32> to vector<2x256xf32>
    %29 = arith.addf %25, %28 : vector<2x256xf32>
    %c0_25 = arith.constant 0 : index
    %c0_26 = arith.constant 0 : index
    %30 = vector.load %arg9[%c0_25, %c0_26] : memref<2x1792xf32, #tpu.memory_space<vmem>>, vector<2x256xf32>
    tpu.vector_store %arg9[%c0_25, %c0_26], %29 {strides = array<i32>} : memref<2x1792xf32, #tpu.memory_space<vmem>>, vector<2x256xf32>,
    %31 = vector.extract_strided_slice %21 {offsets = [0, 64], sizes = [2, 32], strides = [1, 1]} : vector<2x256xf32> to vector<2x32xf32>
    %c1 = arith.constant 1 : index
    %c0_27 = arith.constant 0 : index
    %c0_28 = arith.constant 0 : index
    %32 = vector.load %arg7[%c1, %c0_27, %c0_28] : memref<7x32x256xf32, #tpu.memory_space<vmem>>, vector<1x32x256xf32>
    %33 = vector.shape_cast %32 : vector<1x32x256xf32> to vector<32x256xf32>
    %cst_29 = arith.constant dense<0.000000e+00> : vector<2x256xf32>
    %34 = tpu.matmul %31, %33, %cst_29 {dimension_numbers = #tpu.dot_dimension_numbers<[1], [0], [0], [1], [0, 0, 1, 1], [], []>} : vector<2x32xf32>, vector<32x256xf32>, vector<2x256xf32> -> vector<2x256xf32>
    %c1_30 = arith.constant 1 : index
    %c0_31 = arith.constant 0 : index
    %c0_32 = arith.constant 0 : index
    %35 = vector.load %arg8[%c1_30, %c0_31, %c0_32] : memref<7x1x256xf32, #tpu.memory_space<vmem>>, vector<1x1x256xf32>
    %36 = vector.shape_cast %35 : vector<1x1x256xf32> to vector<1x256xf32>
    %37 = vector.broadcast %36 : vector<1x256xf32> to vector<2x256xf32>
    %38 = arith.addf %34, %37 : vector<2x256xf32>
    %c0_33 = arith.constant 0 : index
    %c256 = arith.constant 256 : index
    %39 = vector.load %arg9[%c0_33, %c256] : memref<2x1792xf32, #tpu.memory_space<vmem>>, vector<2x256xf32>
    tpu.vector_store %arg9[%c0_33, %c256], %38 {strides = array<i32>} : memref<2x1792xf32, #tpu.memory_space<vmem>>, vector<2x256xf32>,
    %40 = vector.extract_strided_slice %21 {offsets = [0, 96], sizes = [2, 32], strides = [1, 1]} : vector<2x256xf32> to vector<2x32xf32>
    %c2 = arith.constant 2 : index
    %c0_34 = arith.constant 0 : index
    %c0_35 = arith.constant 0 : index
    %41 = vector.load %arg7[%c2, %c0_34, %c0_35] : memref<7x32x256xf32, #tpu.memory_space<vmem>>, vector<1x32x256xf32>
    %42 = vector.shape_cast %41 : vector<1x32x256xf32> to vector<32x256xf32>
    %cst_36 = arith.constant dense<0.000000e+00> : vector<2x256xf32>
    %43 = tpu.matmul %40, %42, %cst_36 {dimension_numbers = #tpu.dot_dimension_numbers<[1], [0], [0], [1], [0, 0, 1, 1], [], []>} : vector<2x32xf32>, vector<32x256xf32>, vector<2x256xf32> -> vector<2x256xf32>
    %c2_37 = arith.constant 2 : index
    %c0_38 = arith.constant 0 : index
    %c0_39 = arith.constant 0 : index
    %44 = vector.load %arg8[%c2_37, %c0_38, %c0_39] : memref<7x1x256xf32, #tpu.memory_space<vmem>>, vector<1x1x256xf32>
    %45 = vector.shape_cast %44 : vector<1x1x256xf32> to vector<1x256xf32>
    %46 = vector.broadcast %45 : vector<1x256xf32> to vector<2x256xf32>
    %47 = arith.addf %43, %46 : vector<2x256xf32>
    %c0_40 = arith.constant 0 : index
    %c512 = arith.constant 512 : index
    %48 = vector.load %arg9[%c0_40, %c512] : memref<2x1792xf32, #tpu.memory_space<vmem>>, vector<2x256xf32>
    tpu.vector_store %arg9[%c0_40, %c512], %47 {strides = array<i32>} : memref<2x1792xf32, #tpu.memory_space<vmem>>, vector<2x256xf32>,
    %49 = vector.extract_strided_slice %21 {offsets = [0, 128], sizes = [2, 32], strides = [1, 1]} : vector<2x256xf32> to vector<2x32xf32>
    %c3 = arith.constant 3 : index
    %c0_41 = arith.constant 0 : index
    %c0_42 = arith.constant 0 : index
    %50 = vector.load %arg7[%c3, %c0_41, %c0_42] : memref<7x32x256xf32, #tpu.memory_space<vmem>>, vector<1x32x256xf32>
    %51 = vector.shape_cast %50 : vector<1x32x256xf32> to vector<32x256xf32>
    %cst_43 = arith.constant dense<0.000000e+00> : vector<2x256xf32>
    %52 = tpu.matmul %49, %51, %cst_43 {dimension_numbers = #tpu.dot_dimension_numbers<[1], [0], [0], [1], [0, 0, 1, 1], [], []>} : vector<2x32xf32>, vector<32x256xf32>, vector<2x256xf32> -> vector<2x256xf32>
    %c3_44 = arith.constant 3 : index
    %c0_45 = arith.constant 0 : index
    %c0_46 = arith.constant 0 : index
    %53 = vector.load %arg8[%c3_44, %c0_45, %c0_46] : memref<7x1x256xf32, #tpu.memory_space<vmem>>, vector<1x1x256xf32>
    %54 = vector.shape_cast %53 : vector<1x1x256xf32> to vector<1x256xf32>
    %55 = vector.broadcast %54 : vector<1x256xf32> to vector<2x256xf32>
    %56 = arith.addf %52, %55 : vector<2x256xf32>
    %c0_47 = arith.constant 0 : index
    %c768 = arith.constant 768 : index
    %57 = vector.load %arg9[%c0_47, %c768] : memref<2x1792xf32, #tpu.memory_space<vmem>>, vector<2x256xf32>
    tpu.vector_store %arg9[%c0_47, %c768], %56 {strides = array<i32>} : memref<2x1792xf32, #tpu.memory_space<vmem>>, vector<2x256xf32>,
    %58 = vector.extract_strided_slice %21 {offsets = [0, 160], sizes = [2, 32], strides = [1, 1]} : vector<2x256xf32> to vector<2x32xf32>
    %c4 = arith.constant 4 : index
    %c0_48 = arith.constant 0 : index
    %c0_49 = arith.constant 0 : index
    %59 = vector.load %arg7[%c4, %c0_48, %c0_49] : memref<7x32x256xf32, #tpu.memory_space<vmem>>, vector<1x32x256xf32>
    %60 = vector.shape_cast %59 : vector<1x32x256xf32> to vector<32x256xf32>
    %cst_50 = arith.constant dense<0.000000e+00> : vector<2x256xf32>
    %61 = tpu.matmul %58, %60, %cst_50 {dimension_numbers = #tpu.dot_dimension_numbers<[1], [0], [0], [1], [0, 0, 1, 1], [], []>} : vector<2x32xf32>, vector<32x256xf32>, vector<2x256xf32> -> vector<2x256xf32>
    %c4_51 = arith.constant 4 : index
    %c0_52 = arith.constant 0 : index
    %c0_53 = arith.constant 0 : index
    %62 = vector.load %arg8[%c4_51, %c0_52, %c0_53] : memref<7x1x256xf32, #tpu.memory_space<vmem>>, vector<1x1x256xf32>
    %63 = vector.shape_cast %62 : vector<1x1x256xf32> to vector<1x256xf32>
    %64 = vector.broadcast %63 : vector<1x256xf32> to vector<2x256xf32>
    %65 = arith.addf %61, %64 : vector<2x256xf32>
    %c0_54 = arith.constant 0 : index
    %c1024 = arith.constant 1024 : index
    %66 = vector.load %arg9[%c0_54, %c1024] : memref<2x1792xf32, #tpu.memory_space<vmem>>, vector<2x256xf32>
    tpu.vector_store %arg9[%c0_54, %c1024], %65 {strides = array<i32>} : memref<2x1792xf32, #tpu.memory_space<vmem>>, vector<2x256xf32>,
    %67 = vector.extract_strided_slice %21 {offsets = [0, 192], sizes = [2, 32], strides = [1, 1]} : vector<2x256xf32> to vector<2x32xf32>
    %c5 = arith.constant 5 : index
    %c0_55 = arith.constant 0 : index
    %c0_56 = arith.constant 0 : index
    %68 = vector.load %arg7[%c5, %c0_55, %c0_56] : memref<7x32x256xf32, #tpu.memory_space<vmem>>, vector<1x32x256xf32>
    %69 = vector.shape_cast %68 : vector<1x32x256xf32> to vector<32x256xf32>
    %cst_57 = arith.constant dense<0.000000e+00> : vector<2x256xf32>
    %70 = tpu.matmul %67, %69, %cst_57 {dimension_numbers = #tpu.dot_dimension_numbers<[1], [0], [0], [1], [0, 0, 1, 1], [], []>} : vector<2x32xf32>, vector<32x256xf32>, vector<2x256xf32> -> vector<2x256xf32>
    %c5_58 = arith.constant 5 : index
    %c0_59 = arith.constant 0 : index
    %c0_60 = arith.constant 0 : index
    %71 = vector.load %arg8[%c5_58, %c0_59, %c0_60] : memref<7x1x256xf32, #tpu.memory_space<vmem>>, vector<1x1x256xf32>
    %72 = vector.shape_cast %71 : vector<1x1x256xf32> to vector<1x256xf32>
    %73 = vector.broadcast %72 : vector<1x256xf32> to vector<2x256xf32>
    %74 = arith.addf %70, %73 : vector<2x256xf32>
    %c0_61 = arith.constant 0 : index
    %c1280 = arith.constant 1280 : index
    %75 = vector.load %arg9[%c0_61, %c1280] : memref<2x1792xf32, #tpu.memory_space<vmem>>, vector<2x256xf32>
    tpu.vector_store %arg9[%c0_61, %c1280], %74 {strides = array<i32>} : memref<2x1792xf32, #tpu.memory_space<vmem>>, vector<2x256xf32>,
    %76 = vector.extract_strided_slice %21 {offsets = [0, 224], sizes = [2, 32], strides = [1, 1]} : vector<2x256xf32> to vector<2x32xf32>
    %c6 = arith.constant 6 : index
    %c0_62 = arith.constant 0 : index
    %c0_63 = arith.constant 0 : index
    %77 = vector.load %arg7[%c6, %c0_62, %c0_63] : memref<7x32x256xf32, #tpu.memory_space<vmem>>, vector<1x32x256xf32>
    %78 = vector.shape_cast %77 : vector<1x32x256xf32> to vector<32x256xf32>
    %cst_64 = arith.constant dense<0.000000e+00> : vector<2x256xf32>
    %79 = tpu.matmul %76, %78, %cst_64 {dimension_numbers = #tpu.dot_dimension_numbers<[1], [0], [0], [1], [0, 0, 1, 1], [], []>} : vector<2x32xf32>, vector<32x256xf32>, vector<2x256xf32> -> vector<2x256xf32>
    %c6_65 = arith.constant 6 : index
    %c0_66 = arith.constant 0 : index
    %c0_67 = arith.constant 0 : index
    %80 = vector.load %arg8[%c6_65, %c0_66, %c0_67] : memref<7x1x256xf32, #tpu.memory_space<vmem>>, vector<1x1x256xf32>
    %81 = vector.shape_cast %80 : vector<1x1x256xf32> to vector<1x256xf32>
    %82 = vector.broadcast %81 : vector<1x256xf32> to vector<2x256xf32>
    %83 = arith.addf %79, %82 : vector<2x256xf32>
    %c0_68 = arith.constant 0 : index
    %c1536 = arith.constant 1536 : index
    %84 = vector.load %arg9[%c0_68, %c1536] : memref<2x1792xf32, #tpu.memory_space<vmem>>, vector<2x256xf32>
    tpu.vector_store %arg9[%c0_68, %c1536], %83 {strides = array<i32>} : memref<2x1792xf32, #tpu.memory_space<vmem>>, vector<2x256xf32>,
    return
  }
}

module attributes {stable_mosaic.version = 11 : i64} {
  func.func @_point_kernel(%arg0: i32, %arg1: memref<1x22x128xf32, #tpu.memory_space<vmem>>, %arg2: memref<1x256x2xf32, #tpu.memory_space<vmem>>, %arg3: memref<1x9x256xf32, #tpu.memory_space<vmem>>, %arg4: memref<2x12x8xf32, #tpu.memory_space<vmem>>, %arg5: memref<1x128x256xbf16, #tpu.memory_space<vmem>>, %arg6: memref<1x11x128xbf16, #tpu.memory_space<vmem>>, %arg7: memref<1x128x7xf32, #tpu.memory_space<vmem>>, %arg8: memref<1x8x22xf32, #tpu.memory_space<vmem>>, %arg9: memref<1x17x256xf32, #tpu.memory_space<vmem>>) attributes {dimension_semantics = [#tpu.dimension_semantics<parallel>], iteration_bounds = array<i64: 7>, scalar_prefetch = 0 : i64, scratch_operands = 0 : i64, tpu.core_type = #tpu.core_type<tc>, window_params = [{transform_indices = @transform_0, window_bounds = array<i64: 1, 22, 128>}, {transform_indices = @transform_1, window_bounds = array<i64: 1, 256, 2>}, {transform_indices = @transform_2, window_bounds = array<i64: 1, 9, 256>}, {pipeline_mode = #tpu.pipeline_mode<synchronous>, transform_indices = @transform_3, window_bounds = array<i64: 2, 12, 8>}, {transform_indices = @transform_4, window_bounds = array<i64: 1, 128, 256>}, {transform_indices = @transform_5, window_bounds = array<i64: 1, 11, 128>}, {transform_indices = @transform_6, window_bounds = array<i64: 1, 128, 7>}, {transform_indices = @transform_7, window_bounds = array<i64: 1, 8, 22>}, {transform_indices = @transform_8, window_bounds = array<i64: 1, 17, 256>}]} {
    %c0 = arith.constant 0 : index
    %c0_0 = arith.constant 0 : index
    %c0_1 = arith.constant 0 : index
    %0 = vector.load %arg1[%c0, %c0_0, %c0_1] : memref<1x22x128xf32, #tpu.memory_space<vmem>>, vector<1x3x128xf32>
    %1 = vector.shape_cast %0 : vector<1x3x128xf32> to vector<3x128xf32>
    %c0_2 = arith.constant 0 : index
    %c3 = arith.constant 3 : index
    %c0_3 = arith.constant 0 : index
    %2 = vector.load %arg1[%c0_2, %c3, %c0_3] : memref<1x22x128xf32, #tpu.memory_space<vmem>>, vector<1x3x128xf32>
    %3 = vector.shape_cast %2 : vector<1x3x128xf32> to vector<3x128xf32>
    %c0_4 = arith.constant 0 : index
    %c6 = arith.constant 6 : index
    %c0_5 = arith.constant 0 : index
    %4 = vector.load %arg1[%c0_4, %c6, %c0_5] : memref<1x22x128xf32, #tpu.memory_space<vmem>>, vector<1x8x128xf32>
    %5 = vector.shape_cast %4 : vector<1x8x128xf32> to vector<8x128xf32>
    %c0_6 = arith.constant 0 : index
    %c14 = arith.constant 14 : index
    %c0_7 = arith.constant 0 : index
    %6 = vector.load %arg1[%c0_6, %c14, %c0_7] : memref<1x22x128xf32, #tpu.memory_space<vmem>>, vector<1x8x128xf32>
    %7 = vector.shape_cast %6 : vector<1x8x128xf32> to vector<8x128xf32>
    %c0_8 = arith.constant 0 : index
    %c0_9 = arith.constant 0 : index
    %c0_10 = arith.constant 0 : index
    %8 = vector.load %arg8[%c0_8, %c0_9, %c0_10] : memref<1x8x22xf32, #tpu.memory_space<vmem>>, vector<1x8x3xf32>
    %9 = vector.shape_cast %8 : vector<1x8x3xf32> to vector<8x3xf32>
    %c0_11 = arith.constant 0 : index
    %c0_12 = arith.constant 0 : index
    %c3_13 = arith.constant 3 : index
    %10 = vector.load %arg8[%c0_11, %c0_12, %c3_13] : memref<1x8x22xf32, #tpu.memory_space<vmem>>, vector<1x8x1xf32>
    %11 = vector.shape_cast %10 : vector<1x8x1xf32> to vector<8x1xf32>
    %c0_14 = arith.constant 0 : index
    %c0_15 = arith.constant 0 : index
    %c4 = arith.constant 4 : index
    %12 = vector.load %arg8[%c0_14, %c0_15, %c4] : memref<1x8x22xf32, #tpu.memory_space<vmem>>, vector<1x8x8xf32>
    %13 = vector.shape_cast %12 : vector<1x8x8xf32> to vector<8x8xf32>
    %c0_16 = arith.constant 0 : index
    %c0_17 = arith.constant 0 : index
    %c12 = arith.constant 12 : index
    %14 = vector.load %arg8[%c0_16, %c0_17, %c12] : memref<1x8x22xf32, #tpu.memory_space<vmem>>, vector<1x8x1xf32>
    %15 = vector.shape_cast %14 : vector<1x8x1xf32> to vector<8x1xf32>
    %c0_18 = arith.constant 0 : index
    %c0_19 = arith.constant 0 : index
    %c13 = arith.constant 13 : index
    %16 = vector.load %arg8[%c0_18, %c0_19, %c13] : memref<1x8x22xf32, #tpu.memory_space<vmem>>, vector<1x8x8xf32>
    %17 = vector.shape_cast %16 : vector<1x8x8xf32> to vector<8x8xf32>
    %c0_20 = arith.constant 0 : index
    %c0_21 = arith.constant 0 : index
    %c21 = arith.constant 21 : index
    %18 = vector.load %arg8[%c0_20, %c0_21, %c21] : memref<1x8x22xf32, #tpu.memory_space<vmem>>, vector<1x8x1xf32>
    %19 = vector.shape_cast %18 : vector<1x8x1xf32> to vector<8x1xf32>
    %20 = vector.extract_strided_slice %9 {offsets = [0, 0], sizes = [8, 1], strides = [1, 1]} : vector<8x3xf32> to vector<8x1xf32>
    %21 = vector.extract_strided_slice %1 {offsets = [0, 0], sizes = [1, 128], strides = [1, 1]} : vector<3x128xf32> to vector<1x128xf32>
    %22 = vector.broadcast %20 : vector<8x1xf32> to vector<8x128xf32>
    %23 = vector.broadcast %21 : vector<1x128xf32> to vector<8x128xf32>
    %24 = arith.mulf %22, %23 : vector<8x128xf32>
    %25 = vector.extract_strided_slice %9 {offsets = [0, 1], sizes = [8, 1], strides = [1, 1]} : vector<8x3xf32> to vector<8x1xf32>
    %26 = vector.extract_strided_slice %1 {offsets = [1, 0], sizes = [1, 128], strides = [1, 1]} : vector<3x128xf32> to vector<1x128xf32>
    %27 = vector.broadcast %25 : vector<8x1xf32> to vector<8x128xf32>
    %28 = vector.broadcast %26 : vector<1x128xf32> to vector<8x128xf32>
    %29 = arith.mulf %27, %28 : vector<8x128xf32>
    %30 = arith.addf %24, %29 : vector<8x128xf32>
    %31 = vector.extract_strided_slice %9 {offsets = [0, 2], sizes = [8, 1], strides = [1, 1]} : vector<8x3xf32> to vector<8x1xf32>
    %32 = vector.extract_strided_slice %1 {offsets = [2, 0], sizes = [1, 128], strides = [1, 1]} : vector<3x128xf32> to vector<1x128xf32>
    %33 = vector.broadcast %31 : vector<8x1xf32> to vector<8x128xf32>
    %34 = vector.broadcast %32 : vector<1x128xf32> to vector<8x128xf32>
    %35 = arith.mulf %33, %34 : vector<8x128xf32>
    %36 = arith.addf %30, %35 : vector<8x128xf32>
    %37 = vector.broadcast %11 : vector<8x1xf32> to vector<8x128xf32>
    %38 = arith.addf %36, %37 : vector<8x128xf32>
    %cst = arith.constant 0.000000e+00 : f32
    %39 = vector.broadcast %cst : f32 to vector<8x128xf32>
    %40 = arith.maximumf %38, %39 : vector<8x128xf32>
    %41 = vector.extract_strided_slice %13 {offsets = [0, 0], sizes = [8, 1], strides = [1, 1]} : vector<8x8xf32> to vector<8x1xf32>
    %42 = vector.extract_strided_slice %40 {offsets = [0, 0], sizes = [1, 128], strides = [1, 1]} : vector<8x128xf32> to vector<1x128xf32>
    %43 = vector.broadcast %41 : vector<8x1xf32> to vector<8x128xf32>
    %44 = vector.broadcast %42 : vector<1x128xf32> to vector<8x128xf32>
    %45 = arith.mulf %43, %44 : vector<8x128xf32>
    %46 = vector.extract_strided_slice %13 {offsets = [0, 1], sizes = [8, 1], strides = [1, 1]} : vector<8x8xf32> to vector<8x1xf32>
    %47 = vector.extract_strided_slice %40 {offsets = [1, 0], sizes = [1, 128], strides = [1, 1]} : vector<8x128xf32> to vector<1x128xf32>
    %48 = vector.broadcast %46 : vector<8x1xf32> to vector<8x128xf32>
    %49 = vector.broadcast %47 : vector<1x128xf32> to vector<8x128xf32>
    %50 = arith.mulf %48, %49 : vector<8x128xf32>
    %51 = arith.addf %45, %50 : vector<8x128xf32>
    %52 = vector.extract_strided_slice %13 {offsets = [0, 2], sizes = [8, 1], strides = [1, 1]} : vector<8x8xf32> to vector<8x1xf32>
    %53 = vector.extract_strided_slice %40 {offsets = [2, 0], sizes = [1, 128], strides = [1, 1]} : vector<8x128xf32> to vector<1x128xf32>
    %54 = vector.broadcast %52 : vector<8x1xf32> to vector<8x128xf32>
    %55 = vector.broadcast %53 : vector<1x128xf32> to vector<8x128xf32>
    %56 = arith.mulf %54, %55 : vector<8x128xf32>
    %57 = arith.addf %51, %56 : vector<8x128xf32>
    %58 = vector.extract_strided_slice %13 {offsets = [0, 3], sizes = [8, 1], strides = [1, 1]} : vector<8x8xf32> to vector<8x1xf32>
    %59 = vector.extract_strided_slice %40 {offsets = [3, 0], sizes = [1, 128], strides = [1, 1]} : vector<8x128xf32> to vector<1x128xf32>
    %60 = vector.broadcast %58 : vector<8x1xf32> to vector<8x128xf32>
    %61 = vector.broadcast %59 : vector<1x128xf32> to vector<8x128xf32>
    %62 = arith.mulf %60, %61 : vector<8x128xf32>
    %63 = arith.addf %57, %62 : vector<8x128xf32>
    %64 = vector.extract_strided_slice %13 {offsets = [0, 4], sizes = [8, 1], strides = [1, 1]} : vector<8x8xf32> to vector<8x1xf32>
    %65 = vector.extract_strided_slice %40 {offsets = [4, 0], sizes = [1, 128], strides = [1, 1]} : vector<8x128xf32> to vector<1x128xf32>
    %66 = vector.broadcast %64 : vector<8x1xf32> to vector<8x128xf32>
    %67 = vector.broadcast %65 : vector<1x128xf32> to vector<8x128xf32>
    %68 = arith.mulf %66, %67 : vector<8x128xf32>
    %69 = arith.addf %63, %68 : vector<8x128xf32>
    %70 = vector.extract_strided_slice %13 {offsets = [0, 5], sizes = [8, 1], strides = [1, 1]} : vector<8x8xf32> to vector<8x1xf32>
    %71 = vector.extract_strided_slice %40 {offsets = [5, 0], sizes = [1, 128], strides = [1, 1]} : vector<8x128xf32> to vector<1x128xf32>
    %72 = vector.broadcast %70 : vector<8x1xf32> to vector<8x128xf32>
    %73 = vector.broadcast %71 : vector<1x128xf32> to vector<8x128xf32>
    %74 = arith.mulf %72, %73 : vector<8x128xf32>
    %75 = arith.addf %69, %74 : vector<8x128xf32>
    %76 = vector.extract_strided_slice %13 {offsets = [0, 6], sizes = [8, 1], strides = [1, 1]} : vector<8x8xf32> to vector<8x1xf32>
    %77 = vector.extract_strided_slice %40 {offsets = [6, 0], sizes = [1, 128], strides = [1, 1]} : vector<8x128xf32> to vector<1x128xf32>
    %78 = vector.broadcast %76 : vector<8x1xf32> to vector<8x128xf32>
    %79 = vector.broadcast %77 : vector<1x128xf32> to vector<8x128xf32>
    %80 = arith.mulf %78, %79 : vector<8x128xf32>
    %81 = arith.addf %75, %80 : vector<8x128xf32>
    %82 = vector.extract_strided_slice %13 {offsets = [0, 7], sizes = [8, 1], strides = [1, 1]} : vector<8x8xf32> to vector<8x1xf32>
    %83 = vector.extract_strided_slice %40 {offsets = [7, 0], sizes = [1, 128], strides = [1, 1]} : vector<8x128xf32> to vector<1x128xf32>
    %84 = vector.broadcast %82 : vector<8x1xf32> to vector<8x128xf32>
    %85 = vector.broadcast %83 : vector<1x128xf32> to vector<8x128xf32>
    %86 = arith.mulf %84, %85 : vector<8x128xf32>
    %87 = arith.addf %81, %86 : vector<8x128xf32>
    %88 = vector.broadcast %15 : vector<8x1xf32> to vector<8x128xf32>
    %89 = arith.addf %87, %88 : vector<8x128xf32>
    %cst_22 = arith.constant 0.000000e+00 : f32
    %90 = vector.broadcast %cst_22 : f32 to vector<8x128xf32>
    %91 = arith.maximumf %89, %90 : vector<8x128xf32>
    %92 = vector.extract_strided_slice %17 {offsets = [0, 0], sizes = [8, 1], strides = [1, 1]} : vector<8x8xf32> to vector<8x1xf32>
    %93 = vector.extract_strided_slice %91 {offsets = [0, 0], sizes = [1, 128], strides = [1, 1]} : vector<8x128xf32> to vector<1x128xf32>
    %94 = vector.broadcast %92 : vector<8x1xf32> to vector<8x128xf32>
    %95 = vector.broadcast %93 : vector<1x128xf32> to vector<8x128xf32>
    %96 = arith.mulf %94, %95 : vector<8x128xf32>
    %97 = vector.extract_strided_slice %17 {offsets = [0, 1], sizes = [8, 1], strides = [1, 1]} : vector<8x8xf32> to vector<8x1xf32>
    %98 = vector.extract_strided_slice %91 {offsets = [1, 0], sizes = [1, 128], strides = [1, 1]} : vector<8x128xf32> to vector<1x128xf32>
    %99 = vector.broadcast %97 : vector<8x1xf32> to vector<8x128xf32>
    %100 = vector.broadcast %98 : vector<1x128xf32> to vector<8x128xf32>
    %101 = arith.mulf %99, %100 : vector<8x128xf32>
    %102 = arith.addf %96, %101 : vector<8x128xf32>
    %103 = vector.extract_strided_slice %17 {offsets = [0, 2], sizes = [8, 1], strides = [1, 1]} : vector<8x8xf32> to vector<8x1xf32>
    %104 = vector.extract_strided_slice %91 {offsets = [2, 0], sizes = [1, 128], strides = [1, 1]} : vector<8x128xf32> to vector<1x128xf32>
    %105 = vector.broadcast %103 : vector<8x1xf32> to vector<8x128xf32>
    %106 = vector.broadcast %104 : vector<1x128xf32> to vector<8x128xf32>
    %107 = arith.mulf %105, %106 : vector<8x128xf32>
    %108 = arith.addf %102, %107 : vector<8x128xf32>
    %109 = vector.extract_strided_slice %17 {offsets = [0, 3], sizes = [8, 1], strides = [1, 1]} : vector<8x8xf32> to vector<8x1xf32>
    %110 = vector.extract_strided_slice %91 {offsets = [3, 0], sizes = [1, 128], strides = [1, 1]} : vector<8x128xf32> to vector<1x128xf32>
    %111 = vector.broadcast %109 : vector<8x1xf32> to vector<8x128xf32>
    %112 = vector.broadcast %110 : vector<1x128xf32> to vector<8x128xf32>
    %113 = arith.mulf %111, %112 : vector<8x128xf32>
    %114 = arith.addf %108, %113 : vector<8x128xf32>
    %115 = vector.extract_strided_slice %17 {offsets = [0, 4], sizes = [8, 1], strides = [1, 1]} : vector<8x8xf32> to vector<8x1xf32>
    %116 = vector.extract_strided_slice %91 {offsets = [4, 0], sizes = [1, 128], strides = [1, 1]} : vector<8x128xf32> to vector<1x128xf32>
    %117 = vector.broadcast %115 : vector<8x1xf32> to vector<8x128xf32>
    %118 = vector.broadcast %116 : vector<1x128xf32> to vector<8x128xf32>
    %119 = arith.mulf %117, %118 : vector<8x128xf32>
    %120 = arith.addf %114, %119 : vector<8x128xf32>
    %121 = vector.extract_strided_slice %17 {offsets = [0, 5], sizes = [8, 1], strides = [1, 1]} : vector<8x8xf32> to vector<8x1xf32>
    %122 = vector.extract_strided_slice %91 {offsets = [5, 0], sizes = [1, 128], strides = [1, 1]} : vector<8x128xf32> to vector<1x128xf32>
    %123 = vector.broadcast %121 : vector<8x1xf32> to vector<8x128xf32>
    %124 = vector.broadcast %122 : vector<1x128xf32> to vector<8x128xf32>
    %125 = arith.mulf %123, %124 : vector<8x128xf32>
    %126 = arith.addf %120, %125 : vector<8x128xf32>
    %127 = vector.extract_strided_slice %17 {offsets = [0, 6], sizes = [8, 1], strides = [1, 1]} : vector<8x8xf32> to vector<8x1xf32>
    %128 = vector.extract_strided_slice %91 {offsets = [6, 0], sizes = [1, 128], strides = [1, 1]} : vector<8x128xf32> to vector<1x128xf32>
    %129 = vector.broadcast %127 : vector<8x1xf32> to vector<8x128xf32>
    %130 = vector.broadcast %128 : vector<1x128xf32> to vector<8x128xf32>
    %131 = arith.mulf %129, %130 : vector<8x128xf32>
    %132 = arith.addf %126, %131 : vector<8x128xf32>
    %133 = vector.extract_strided_slice %17 {offsets = [0, 7], sizes = [8, 1], strides = [1, 1]} : vector<8x8xf32> to vector<8x1xf32>
    %134 = vector.extract_strided_slice %91 {offsets = [7, 0], sizes = [1, 128], strides = [1, 1]} : vector<8x128xf32> to vector<1x128xf32>
    %135 = vector.broadcast %133 : vector<8x1xf32> to vector<8x128xf32>
    %136 = vector.broadcast %134 : vector<1x128xf32> to vector<8x128xf32>
    %137 = arith.mulf %135, %136 : vector<8x128xf32>
    %138 = arith.addf %132, %137 : vector<8x128xf32>
    %139 = arith.addf %5, %138 : vector<8x128xf32>
    %140 = vector.broadcast %19 : vector<8x1xf32> to vector<8x128xf32>
    %141 = arith.addf %139, %140 : vector<8x128xf32>
    %cst_23 = arith.constant 5.000000e-01 : f32
    %142 = vector.broadcast %cst_23 : f32 to vector<8x128xf32>
    %143 = arith.cmpf ogt, %7, %142 : vector<8x128xf32>
    %cst_24 = arith.constant -1.000000e+30 : f32
    %144 = vector.broadcast %cst_24 : f32 to vector<8x128xf32>
    %145 = arith.select %143, %141, %144 : vector<8x128xi1>, vector<8x128xf32>
    %cst_25 = arith.constant dense<0xFF800000> : vector<128xf32>
    %146 = vector.multi_reduction <maximumf>, %145, %cst_25 [0] : vector<8x128xf32> to vector<128xf32>
    %147 = vector.shape_cast %146 : vector<128xf32> to vector<1x128xf32>
    %148 = vector.broadcast %147 : vector<1x128xf32> to vector<8x128xf32>
    %149 = arith.subf %145, %148 : vector<8x128xf32>
    %150 = math.exp %149 : vector<8x128xf32>
    %151 = arith.mulf %150, %7 : vector<8x128xf32>
    %cst_26 = arith.constant dense<0.000000e+00> : vector<128xf32>
    %152 = vector.multi_reduction <add>, %151, %cst_26 [0] : vector<8x128xf32> to vector<128xf32>
    %153 = vector.shape_cast %152 : vector<128xf32> to vector<1x128xf32>
    %cst_27 = arith.constant 9.99999993E-9 : f32
    %154 = vector.broadcast %cst_27 : f32 to vector<1x128xf32>
    %155 = arith.addf %153, %154 : vector<1x128xf32>
    %156 = vector.broadcast %155 : vector<1x128xf32> to vector<8x128xf32>
    %157 = arith.divf %151, %156 : vector<8x128xf32>
    %c0_28 = arith.constant 0 : index
    %c0_29 = arith.constant 0 : index
    %c0_30 = arith.constant 0 : index
    %158 = vector.load %arg7[%c0_28, %c0_29, %c0_30] : memref<1x128x7xf32, #tpu.memory_space<vmem>>, vector<1x128x3xf32>
    %159 = vector.shape_cast %158 : vector<1x128x3xf32> to vector<128x3xf32>
    %c0_31 = arith.constant 0 : index
    %c0_32 = arith.constant 0 : index
    %c3_33 = arith.constant 3 : index
    %160 = vector.load %arg7[%c0_31, %c0_32, %c3_33] : memref<1x128x7xf32, #tpu.memory_space<vmem>>, vector<1x128x1xf32>
    %161 = vector.shape_cast %160 : vector<1x128x1xf32> to vector<128x1xf32>
    %c0_34 = arith.constant 0 : index
    %c0_35 = arith.constant 0 : index
    %c4_36 = arith.constant 4 : index
    %162 = vector.load %arg7[%c0_34, %c0_35, %c4_36] : memref<1x128x7xf32, #tpu.memory_space<vmem>>, vector<1x128x1xf32>
    %163 = vector.shape_cast %162 : vector<1x128x1xf32> to vector<128x1xf32>
    %c0_37 = arith.constant 0 : index
    %c0_38 = arith.constant 0 : index
    %c5 = arith.constant 5 : index
    %164 = vector.load %arg7[%c0_37, %c0_38, %c5] : memref<1x128x7xf32, #tpu.memory_space<vmem>>, vector<1x128x1xf32>
    %165 = vector.shape_cast %164 : vector<1x128x1xf32> to vector<128x1xf32>
    %c0_39 = arith.constant 0 : index
    %c0_40 = arith.constant 0 : index
    %c6_41 = arith.constant 6 : index
    %166 = vector.load %arg7[%c0_39, %c0_40, %c6_41] : memref<1x128x7xf32, #tpu.memory_space<vmem>>, vector<1x11x1xf32>
    %167 = vector.shape_cast %166 : vector<1x11x1xf32> to vector<11x1xf32>
    %168 = vector.extract_strided_slice %159 {offsets = [0, 0], sizes = [128, 1], strides = [1, 1]} : vector<128x3xf32> to vector<128x1xf32>
    %169 = vector.extract_strided_slice %1 {offsets = [0, 0], sizes = [1, 128], strides = [1, 1]} : vector<3x128xf32> to vector<1x128xf32>
    %170 = vector.broadcast %168 : vector<128x1xf32> to vector<128x128xf32>
    %171 = vector.broadcast %169 : vector<1x128xf32> to vector<128x128xf32>
    %172 = arith.mulf %170, %171 : vector<128x128xf32>
    %173 = vector.extract_strided_slice %159 {offsets = [0, 1], sizes = [128, 1], strides = [1, 1]} : vector<128x3xf32> to vector<128x1xf32>
    %174 = vector.extract_strided_slice %1 {offsets = [1, 0], sizes = [1, 128], strides = [1, 1]} : vector<3x128xf32> to vector<1x128xf32>
    %175 = vector.broadcast %173 : vector<128x1xf32> to vector<128x128xf32>
    %176 = vector.broadcast %174 : vector<1x128xf32> to vector<128x128xf32>
    %177 = arith.mulf %175, %176 : vector<128x128xf32>
    %178 = arith.addf %172, %177 : vector<128x128xf32>
    %179 = vector.extract_strided_slice %159 {offsets = [0, 2], sizes = [128, 1], strides = [1, 1]} : vector<128x3xf32> to vector<128x1xf32>
    %180 = vector.extract_strided_slice %1 {offsets = [2, 0], sizes = [1, 128], strides = [1, 1]} : vector<3x128xf32> to vector<1x128xf32>
    %181 = vector.broadcast %179 : vector<128x1xf32> to vector<128x128xf32>
    %182 = vector.broadcast %180 : vector<1x128xf32> to vector<128x128xf32>
    %183 = arith.mulf %181, %182 : vector<128x128xf32>
    %184 = arith.addf %178, %183 : vector<128x128xf32>
    %185 = vector.broadcast %161 : vector<128x1xf32> to vector<128x128xf32>
    %186 = arith.addf %184, %185 : vector<128x128xf32>
    %cst_42 = arith.constant 0.000000e+00 : f32
    %187 = vector.broadcast %cst_42 : f32 to vector<128x128xf32>
    %188 = arith.maximumf %186, %187 : vector<128x128xf32>
    %c0_43 = arith.constant 0 : index
    %c0_44 = arith.constant 0 : index
    %c0_45 = arith.constant 0 : index
    %189 = vector.load %arg2[%c0_43, %c0_44, %c0_45] : memref<1x256x2xf32, #tpu.memory_space<vmem>>, vector<1x128x1xf32>
    %190 = vector.shape_cast %189 : vector<1x128x1xf32> to vector<128x1xf32>
    %c0_46 = arith.constant 0 : index
    %c128 = arith.constant 128 : index
    %c0_47 = arith.constant 0 : index
    %191 = vector.load %arg2[%c0_46, %c128, %c0_47] : memref<1x256x2xf32, #tpu.memory_space<vmem>>, vector<1x128x1xf32>
    %192 = vector.shape_cast %191 : vector<1x128x1xf32> to vector<128x1xf32>
    %193 = vector.broadcast %190 : vector<128x1xf32> to vector<128x128xf32>
    %194 = arith.mulf %188, %193 : vector<128x128xf32>
    %195 = vector.broadcast %192 : vector<128x1xf32> to vector<128x128xf32>
    %196 = arith.addf %194, %195 : vector<128x128xf32>
    %c0_48 = arith.constant 0 : index
    %c0_49 = arith.constant 0 : index
    %c1 = arith.constant 1 : index
    %197 = vector.load %arg2[%c0_48, %c0_49, %c1] : memref<1x256x2xf32, #tpu.memory_space<vmem>>, vector<1x128x1xf32>
    %198 = vector.shape_cast %197 : vector<1x128x1xf32> to vector<128x1xf32>
    %c0_50 = arith.constant 0 : index
    %c128_51 = arith.constant 128 : index
    %c1_52 = arith.constant 1 : index
    %199 = vector.load %arg2[%c0_50, %c128_51, %c1_52] : memref<1x256x2xf32, #tpu.memory_space<vmem>>, vector<1x128x1xf32>
    %200 = vector.shape_cast %199 : vector<1x128x1xf32> to vector<128x1xf32>
    %201 = vector.broadcast %198 : vector<128x1xf32> to vector<128x128xf32>
    %202 = arith.mulf %188, %201 : vector<128x128xf32>
    %203 = vector.broadcast %200 : vector<128x1xf32> to vector<128x128xf32>
    %204 = arith.addf %202, %203 : vector<128x128xf32>
    %205 = tpu.concatenate %196, %204 in 1 : vector<128x128xf32>, vector<128x128xf32> -> vector<128x256xf32>
    %c0_53 = arith.constant 0 : index
    %c0_54 = arith.constant 0 : index
    %c0_55 = arith.constant 0 : index
    %206 = vector.load %arg5[%c0_53, %c0_54, %c0_55] : memref<1x128x256xbf16, #tpu.memory_space<vmem>>, vector<1x128x128xbf16>
    %207 = vector.shape_cast %206 : vector<1x128x128xbf16> to vector<128x128xbf16>
    %c0_56 = arith.constant 0 : index
    %c0_57 = arith.constant 0 : index
    %c128_58 = arith.constant 128 : index
    %208 = vector.load %arg5[%c0_56, %c0_57, %c128_58] : memref<1x128x256xbf16, #tpu.memory_space<vmem>>, vector<1x128x128xbf16>
    %209 = vector.shape_cast %208 : vector<1x128x128xbf16> to vector<128x128xbf16>
    %c0_59 = arith.constant 0 : index
    %c0_60 = arith.constant 0 : index
    %c0_61 = arith.constant 0 : index
    %210 = vector.load %arg6[%c0_59, %c0_60, %c0_61] : memref<1x11x128xbf16, #tpu.memory_space<vmem>>, vector<1x11x128xbf16>
    %211 = vector.shape_cast %210 : vector<1x11x128xbf16> to vector<11x128xbf16>
    %212 = arith.truncf %205 : vector<128x256xf32> to vector<128x256xbf16>
    %cst_62 = arith.constant dense<0.000000e+00> : vector<128x256xf32>
    %213 = tpu.matmul %207, %212, %cst_62 {dimension_numbers = #tpu.dot_dimension_numbers<[1], [0], [0], [1], [0, 0, 1, 1], [], []>} : vector<128x128xbf16>, vector<128x256xbf16>, vector<128x256xf32> -> vector<128x256xf32>
    %214 = vector.broadcast %163 : vector<128x1xf32> to vector<128x256xf32>
    %215 = arith.addf %213, %214 : vector<128x256xf32>
    %cst_63 = arith.constant 0.000000e+00 : f32
    %216 = vector.broadcast %cst_63 : f32 to vector<128x256xf32>
    %217 = arith.maximumf %215, %216 : vector<128x256xf32>
    %218 = arith.truncf %217 : vector<128x256xf32> to vector<128x256xbf16>
    %cst_64 = arith.constant dense<0.000000e+00> : vector<128x256xf32>
    %219 = tpu.matmul %209, %218, %cst_64 {dimension_numbers = #tpu.dot_dimension_numbers<[1], [0], [0], [1], [0, 0, 1, 1], [], []>} : vector<128x128xbf16>, vector<128x256xbf16>, vector<128x256xf32> -> vector<128x256xf32>
    %220 = vector.broadcast %165 : vector<128x1xf32> to vector<128x256xf32>
    %221 = arith.addf %219, %220 : vector<128x256xf32>
    %cst_65 = arith.constant 0.000000e+00 : f32
    %222 = vector.broadcast %cst_65 : f32 to vector<128x256xf32>
    %223 = arith.maximumf %221, %222 : vector<128x256xf32>
    %224 = arith.truncf %223 : vector<128x256xf32> to vector<128x256xbf16>
    %cst_66 = arith.constant dense<0.000000e+00> : vector<11x256xf32>
    %225 = tpu.matmul %211, %224, %cst_66 {dimension_numbers = #tpu.dot_dimension_numbers<[1], [0], [0], [1], [0, 0, 1, 1], [], []>} : vector<11x128xbf16>, vector<128x256xbf16>, vector<11x256xf32> -> vector<11x256xf32>
    %226 = vector.broadcast %167 : vector<11x1xf32> to vector<11x256xf32>
    %227 = arith.addf %225, %226 : vector<11x256xf32>
    %228 = vector.extract_strided_slice %227 {offsets = [8, 0], sizes = [3, 256], strides = [1, 1]} : vector<11x256xf32> to vector<3x256xf32>
    %cst_67 = arith.constant 0.00999999977 : f32
    %229 = vector.broadcast %cst_67 : f32 to vector<3x256xf32>
    %230 = arith.mulf %228, %229 : vector<3x256xf32>
    %c0_68 = arith.constant 0 : index
    %c0_69 = arith.constant 0 : index
    %c0_70 = arith.constant 0 : index
    %231 = vector.load %arg3[%c0_68, %c0_69, %c0_70] : memref<1x9x256xf32, #tpu.memory_space<vmem>>, vector<1x1x256xf32>
    %232 = vector.shape_cast %231 : vector<1x1x256xf32> to vector<1x256xf32>
    %233 = vector.extract_strided_slice %230 {offsets = [0, 0], sizes = [1, 256], strides = [1, 1]} : vector<3x256xf32> to vector<1x256xf32>
    %234 = arith.mulf %232, %233 : vector<1x256xf32>
    %c0_71 = arith.constant 0 : index
    %c1_72 = arith.constant 1 : index
    %c0_73 = arith.constant 0 : index
    %235 = vector.load %arg3[%c0_71, %c1_72, %c0_73] : memref<1x9x256xf32, #tpu.memory_space<vmem>>, vector<1x1x256xf32>
    %236 = vector.shape_cast %235 : vector<1x1x256xf32> to vector<1x256xf32>
    %237 = vector.extract_strided_slice %230 {offsets = [1, 0], sizes = [1, 256], strides = [1, 1]} : vector<3x256xf32> to vector<1x256xf32>
    %238 = arith.mulf %236, %237 : vector<1x256xf32>
    %239 = arith.addf %234, %238 : vector<1x256xf32>
    %c0_74 = arith.constant 0 : index
    %c2 = arith.constant 2 : index
    %c0_75 = arith.constant 0 : index
    %240 = vector.load %arg3[%c0_74, %c2, %c0_75] : memref<1x9x256xf32, #tpu.memory_space<vmem>>, vector<1x1x256xf32>
    %241 = vector.shape_cast %240 : vector<1x1x256xf32> to vector<1x256xf32>
    %242 = vector.extract_strided_slice %230 {offsets = [2, 0], sizes = [1, 256], strides = [1, 1]} : vector<3x256xf32> to vector<1x256xf32>
    %243 = arith.mulf %241, %242 : vector<1x256xf32>
    %244 = arith.addf %239, %243 : vector<1x256xf32>
    %c0_76 = arith.constant 0 : index
    %c3_77 = arith.constant 3 : index
    %c0_78 = arith.constant 0 : index
    %245 = vector.load %arg3[%c0_76, %c3_77, %c0_78] : memref<1x9x256xf32, #tpu.memory_space<vmem>>, vector<1x1x256xf32>
    %246 = vector.shape_cast %245 : vector<1x1x256xf32> to vector<1x256xf32>
    %247 = vector.extract_strided_slice %230 {offsets = [0, 0], sizes = [1, 256], strides = [1, 1]} : vector<3x256xf32> to vector<1x256xf32>
    %248 = arith.mulf %246, %247 : vector<1x256xf32>
    %c0_79 = arith.constant 0 : index
    %c4_80 = arith.constant 4 : index
    %c0_81 = arith.constant 0 : index
    %249 = vector.load %arg3[%c0_79, %c4_80, %c0_81] : memref<1x9x256xf32, #tpu.memory_space<vmem>>, vector<1x1x256xf32>
    %250 = vector.shape_cast %249 : vector<1x1x256xf32> to vector<1x256xf32>
    %251 = vector.extract_strided_slice %230 {offsets = [1, 0], sizes = [1, 256], strides = [1, 1]} : vector<3x256xf32> to vector<1x256xf32>
    %252 = arith.mulf %250, %251 : vector<1x256xf32>
    %253 = arith.addf %248, %252 : vector<1x256xf32>
    %c0_82 = arith.constant 0 : index
    %c5_83 = arith.constant 5 : index
    %c0_84 = arith.constant 0 : index
    %254 = vector.load %arg3[%c0_82, %c5_83, %c0_84] : memref<1x9x256xf32, #tpu.memory_space<vmem>>, vector<1x1x256xf32>
    %255 = vector.shape_cast %254 : vector<1x1x256xf32> to vector<1x256xf32>
    %256 = vector.extract_strided_slice %230 {offsets = [2, 0], sizes = [1, 256], strides = [1, 1]} : vector<3x256xf32> to vector<1x256xf32>
    %257 = arith.mulf %255, %256 : vector<1x256xf32>
    %258 = arith.addf %253, %257 : vector<1x256xf32>
    %c0_85 = arith.constant 0 : index
    %c6_86 = arith.constant 6 : index
    %c0_87 = arith.constant 0 : index
    %259 = vector.load %arg3[%c0_85, %c6_86, %c0_87] : memref<1x9x256xf32, #tpu.memory_space<vmem>>, vector<1x1x256xf32>
    %260 = vector.shape_cast %259 : vector<1x1x256xf32> to vector<1x256xf32>
    %261 = vector.extract_strided_slice %230 {offsets = [0, 0], sizes = [1, 256], strides = [1, 1]} : vector<3x256xf32> to vector<1x256xf32>
    %262 = arith.mulf %260, %261 : vector<1x256xf32>
    %c0_88 = arith.constant 0 : index
    %c7 = arith.constant 7 : index
    %c0_89 = arith.constant 0 : index
    %263 = vector.load %arg3[%c0_88, %c7, %c0_89] : memref<1x9x256xf32, #tpu.memory_space<vmem>>, vector<1x1x256xf32>
    %264 = vector.shape_cast %263 : vector<1x1x256xf32> to vector<1x256xf32>
    %265 = vector.extract_strided_slice %230 {offsets = [1, 0], sizes = [1, 256], strides = [1, 1]} : vector<3x256xf32> to vector<1x256xf32>
    %266 = arith.mulf %264, %265 : vector<1x256xf32>
    %267 = arith.addf %262, %266 : vector<1x256xf32>
    %c0_90 = arith.constant 0 : index
    %c8 = arith.constant 8 : index
    %c0_91 = arith.constant 0 : index
    %268 = vector.load %arg3[%c0_90, %c8, %c0_91] : memref<1x9x256xf32, #tpu.memory_space<vmem>>, vector<1x1x256xf32>
    %269 = vector.shape_cast %268 : vector<1x1x256xf32> to vector<1x256xf32>
    %270 = vector.extract_strided_slice %230 {offsets = [2, 0], sizes = [1, 256], strides = [1, 1]} : vector<3x256xf32> to vector<1x256xf32>
    %271 = arith.mulf %269, %270 : vector<1x256xf32>
    %272 = arith.addf %267, %271 : vector<1x256xf32>
    %273 = tpu.concatenate %244, %258, %272 in 0 : vector<1x256xf32>, vector<1x256xf32>, vector<1x256xf32> -> vector<3x256xf32>
    %274 = arith.mulf %273, %273 : vector<3x256xf32>
    %cst_92 = arith.constant dense<0.000000e+00> : vector<256xf32>
    %275 = vector.multi_reduction <add>, %274, %cst_92 [0] : vector<3x256xf32> to vector<256xf32>
    %276 = vector.shape_cast %275 : vector<256xf32> to vector<1x256xf32>
    %cst_93 = arith.constant 1.600000e-03 : f32
    %277 = vector.broadcast %cst_93 : f32 to vector<1x256xf32>
    %278 = arith.cmpf olt, %276, %277 : vector<1x256xf32>
    %279 = arith.extui %278 : vector<1x256xi1> to vector<1x256xi32>
    %280 = arith.sitofp %279 : vector<1x256xi32> to vector<1x256xf32>
    %281 = vector.broadcast %280 : vector<1x256xf32> to vector<3x256xf32>
    %282 = arith.mulf %273, %281 : vector<3x256xf32>
    %c0_94 = arith.constant 0 : index
    %c0_95 = arith.constant 0 : index
    %c0_96 = arith.constant 0 : index
    %283 = vector.load %arg4[%c0_94, %c0_95, %c0_96] : memref<2x12x8xf32, #tpu.memory_space<vmem>>, vector<1x12x8xf32>
    %284 = vector.shape_cast %283 : vector<1x12x8xf32> to vector<12x8xf32>
    %cst_97 = arith.constant dense<0.000000e+00> : vector<12x128xf32>
    %285 = tpu.matmul %284, %157, %cst_97 {dimension_numbers = #tpu.dot_dimension_numbers<[1], [0], [0], [1], [0, 0, 1, 1], [], []>} : vector<12x8xf32>, vector<8x128xf32>, vector<12x128xf32> -> vector<12x128xf32>
    %286 = vector.extract_strided_slice %285 {offsets = [0, 0], sizes = [3, 128], strides = [1, 1]} : vector<12x128xf32> to vector<3x128xf32>
    %287 = vector.extract_strided_slice %3 {offsets = [0, 0], sizes = [1, 128], strides = [1, 1]} : vector<3x128xf32> to vector<1x128xf32>
    %288 = vector.broadcast %287 : vector<1x128xf32> to vector<3x128xf32>
    %289 = arith.mulf %286, %288 : vector<3x128xf32>
    %290 = vector.extract_strided_slice %285 {offsets = [3, 0], sizes = [3, 128], strides = [1, 1]} : vector<12x128xf32> to vector<3x128xf32>
    %291 = vector.extract_strided_slice %3 {offsets = [1, 0], sizes = [1, 128], strides = [1, 1]} : vector<3x128xf32> to vector<1x128xf32>
    %292 = vector.broadcast %291 : vector<1x128xf32> to vector<3x128xf32>
    %293 = arith.mulf %290, %292 : vector<3x128xf32>
    %294 = arith.addf %289, %293 : vector<3x128xf32>
    %295 = vector.extract_strided_slice %285 {offsets = [6, 0], sizes = [3, 128], strides = [1, 1]} : vector<12x128xf32> to vector<3x128xf32>
    %296 = vector.extract_strided_slice %3 {offsets = [2, 0], sizes = [1, 128], strides = [1, 1]} : vector<3x128xf32> to vector<1x128xf32>
    %297 = vector.broadcast %296 : vector<1x128xf32> to vector<3x128xf32>
    %298 = arith.mulf %295, %297 : vector<3x128xf32>
    %299 = arith.addf %294, %298 : vector<3x128xf32>
    %300 = vector.extract_strided_slice %285 {offsets = [9, 0], sizes = [3, 128], strides = [1, 1]} : vector<12x128xf32> to vector<3x128xf32>
    %301 = arith.addf %299, %300 : vector<3x128xf32>
    %c1_98 = arith.constant 1 : index
    %c0_99 = arith.constant 0 : index
    %c0_100 = arith.constant 0 : index
    %302 = vector.load %arg4[%c1_98, %c0_99, %c0_100] : memref<2x12x8xf32, #tpu.memory_space<vmem>>, vector<1x12x8xf32>
    %303 = vector.shape_cast %302 : vector<1x12x8xf32> to vector<12x8xf32>
    %cst_101 = arith.constant dense<0.000000e+00> : vector<12x128xf32>
    %304 = tpu.matmul %303, %157, %cst_101 {dimension_numbers = #tpu.dot_dimension_numbers<[1], [0], [0], [1], [0, 0, 1, 1], [], []>} : vector<12x8xf32>, vector<8x128xf32>, vector<12x128xf32> -> vector<12x128xf32>
    %305 = vector.extract_strided_slice %304 {offsets = [0, 0], sizes = [3, 128], strides = [1, 1]} : vector<12x128xf32> to vector<3x128xf32>
    %306 = vector.extract_strided_slice %3 {offsets = [0, 0], sizes = [1, 128], strides = [1, 1]} : vector<3x128xf32> to vector<1x128xf32>
    %307 = vector.broadcast %306 : vector<1x128xf32> to vector<3x128xf32>
    %308 = arith.mulf %305, %307 : vector<3x128xf32>
    %309 = vector.extract_strided_slice %304 {offsets = [3, 0], sizes = [3, 128], strides = [1, 1]} : vector<12x128xf32> to vector<3x128xf32>
    %310 = vector.extract_strided_slice %3 {offsets = [1, 0], sizes = [1, 128], strides = [1, 1]} : vector<3x128xf32> to vector<1x128xf32>
    %311 = vector.broadcast %310 : vector<1x128xf32> to vector<3x128xf32>
    %312 = arith.mulf %309, %311 : vector<3x128xf32>
    %313 = arith.addf %308, %312 : vector<3x128xf32>
    %314 = vector.extract_strided_slice %304 {offsets = [6, 0], sizes = [3, 128], strides = [1, 1]} : vector<12x128xf32> to vector<3x128xf32>
    %315 = vector.extract_strided_slice %3 {offsets = [2, 0], sizes = [1, 128], strides = [1, 1]} : vector<3x128xf32> to vector<1x128xf32>
    %316 = vector.broadcast %315 : vector<1x128xf32> to vector<3x128xf32>
    %317 = arith.mulf %314, %316 : vector<3x128xf32>
    %318 = arith.addf %313, %317 : vector<3x128xf32>
    %319 = vector.extract_strided_slice %304 {offsets = [9, 0], sizes = [3, 128], strides = [1, 1]} : vector<12x128xf32> to vector<3x128xf32>
    %320 = arith.addf %318, %319 : vector<3x128xf32>
    %321 = tpu.concatenate %301, %320 in 1 : vector<3x128xf32>, vector<3x128xf32> -> vector<3x256xf32>
    %322 = vector.extract_strided_slice %227 {offsets = [0, 0], sizes = [8, 256], strides = [1, 1]} : vector<11x256xf32> to vector<8x256xf32>
    %323 = tpu.concatenate %322, %273, %282, %321 in 0 : vector<8x256xf32>, vector<3x256xf32>, vector<3x256xf32>, vector<3x256xf32> -> vector<17x256xf32>
    %c0_102 = arith.constant 0 : index
    %c0_103 = arith.constant 0 : index
    %c0_104 = arith.constant 0 : index
    %324 = vector.load %arg9[%c0_102, %c0_103, %c0_104] : memref<1x17x256xf32, #tpu.memory_space<vmem>>, vector<1x17x256xf32>
    %325 = vector.shape_cast %324 : vector<1x17x256xf32> to vector<17x256xf32>
    %326 = vector.shape_cast %323 : vector<17x256xf32> to vector<1x17x256xf32>
    tpu.vector_store %arg9[%c0_102, %c0_103, %c0_104], %326 {strides = array<i32>} : memref<1x17x256xf32, #tpu.memory_space<vmem>>, vector<1x17x256xf32>,
    return
  }
  func.func @transform_0(%arg0: i32) -> (i32, i32, i32) {
    %c0_i32 = arith.constant 0 : i32
    %c0_i32_0 = arith.constant 0 : i32
    %c0_i32_1 = arith.constant 0 : i32
    return %arg0, %c0_i32, %c0_i32_0 : i32, i32, i32
  }
  func.func @transform_1(%arg0: i32) -> (i32, i32, i32) {
    %c0_i32 = arith.constant 0 : i32
    %c0_i32_0 = arith.constant 0 : i32
    %c0_i32_1 = arith.constant 0 : i32
    return %arg0, %c0_i32, %c0_i32_0 : i32, i32, i32
  }
  func.func @transform_2(%arg0: i32) -> (i32, i32, i32) {
    %c0_i32 = arith.constant 0 : i32
    %c0_i32_0 = arith.constant 0 : i32
    %c0_i32_1 = arith.constant 0 : i32
    return %arg0, %c0_i32, %c0_i32_0 : i32, i32, i32
  }
  func.func @transform_3(%arg0: i32) -> (i32, i32, i32) {
    %c0_i32 = arith.constant 0 : i32
    %c0_i32_0 = arith.constant 0 : i32
    %c0_i32_1 = arith.constant 0 : i32
    %c0_i32_2 = arith.constant 0 : i32
    return %c0_i32, %c0_i32_0, %c0_i32_1 : i32, i32, i32
  }
  func.func @transform_4(%arg0: i32) -> (i32, i32, i32) {
    %c0_i32 = arith.constant 0 : i32
    %c0_i32_0 = arith.constant 0 : i32
    %c0_i32_1 = arith.constant 0 : i32
    return %arg0, %c0_i32, %c0_i32_0 : i32, i32, i32
  }
  func.func @transform_5(%arg0: i32) -> (i32, i32, i32) {
    %c0_i32 = arith.constant 0 : i32
    %c0_i32_0 = arith.constant 0 : i32
    %c0_i32_1 = arith.constant 0 : i32
    return %arg0, %c0_i32, %c0_i32_0 : i32, i32, i32
  }
  func.func @transform_6(%arg0: i32) -> (i32, i32, i32) {
    %c0_i32 = arith.constant 0 : i32
    %c0_i32_0 = arith.constant 0 : i32
    %c0_i32_1 = arith.constant 0 : i32
    return %arg0, %c0_i32, %c0_i32_0 : i32, i32, i32
  }
  func.func @transform_7(%arg0: i32) -> (i32, i32, i32) {
    %c0_i32 = arith.constant 0 : i32
    %c0_i32_0 = arith.constant 0 : i32
    %c0_i32_1 = arith.constant 0 : i32
    return %arg0, %c0_i32, %c0_i32_0 : i32, i32, i32
  }
  func.func @transform_8(%arg0: i32) -> (i32, i32, i32) {
    %c0_i32 = arith.constant 0 : i32
    %c0_i32_0 = arith.constant 0 : i32
    %c0_i32_1 = arith.constant 0 : i32
    return %arg0, %c0_i32, %c0_i32_0 : i32, i32, i32
  }
}

</mosaic_0001>

<llo_original>
// kernel: npc_gnn_film_forward.2
$region0: #{npc_gnn_film_forward.2}
  #allocation0 [shape = 'u32[]', space=smem, size = 0x4, offset = 0x4, fixed_abs, tag = 'smem constant byte address 0x4 - core index']
  #allocation1 [shape = 'u32[144,128]{1,0:T(1,128)}', space=vmem, size = 0x12000, scoped, tag = 'internal scratch']
  %s0 = inlined_call_operand.vmem [shape: f32[2,48], index: 0, kind: input, shape index: {}]
  %s1 = inlined_call_operand.vmem [shape: f32[48,256], index: 1, kind: input, shape index: {}]
  %s2 = inlined_call_operand.vmem [shape: f32[1,256], index: 2, kind: input, shape index: {}, may-alias: {2,4}]
  %s3 = inlined_call_operand.hbm [shape: f32[256,256], index: 3, kind: input, shape index: {}]
  %s4 = inlined_call_operand.vmem [shape: f32[1,256], index: 4, kind: input, shape index: {}, may-alias: {2,4}]
  %s5 = inlined_call_operand.hbm [shape: f32[256,256], index: 5, kind: input, shape index: {}]
  %s6 = inlined_call_operand.vmem [shape: f32[1,256], index: 6, kind: input, shape index: {}]
  %s7 = inlined_call_operand.hbm [shape: f32[7,32,256], index: 7, kind: input, shape index: {}]
  %s8 = inlined_call_operand.vmem [shape: f32[7,1,256], index: 8, kind: input, shape index: {}]
  %s9 = inlined_call_operand.vmem [shape: f32[2,1792], index: 9, kind: output, shape index: {}]
  %s10 = sld [smem:[#allocation0]]
  $region58: #{npc_gnn_film_forward.2} parent=0
    _
  %s12 = ssub.s32 1, %s10
  %s13 = scalar_select 0, %s12, %s10
  $region1: #{npc_gnn_film_forward.2} parent=0
    #allocation2 [shape = 'u8[262144]{0}', space=vmem, size = 0x40000, scoped, tag = 'input window, operand 3, single buffered']
    #allocation3 [shape = 's32[1]{0}', space=sflag, size = 0x4, scoped, tag = 'scoped memory for npc_gnn_film_forward.2']
    #allocation4 [shape = 'u8[262144]{0}', space=vmem, size = 0x40000, scoped, tag = 'input window, operand 5, single buffered']
    #allocation5 [shape = 's32[1]{0}', space=sflag, size = 0x4, scoped, tag = 'scoped memory for npc_gnn_film_forward.2']
    #allocation6 [shape = 'u8[229376]{0}', space=vmem, size = 0x38000, scoped, tag = 'input window, operand 7, single buffered']
    %14 = vsyncpa [#allocation3], 0
    %15 = vsyncpa [#allocation5], 0
    // Predicated region
    $region2: #{npc_gnn_film_forward.2} parent=1 // pred_check
      _
    $region3: #{npc_gnn_film_forward.2} parent=1 // pred_check_branch
      %17 = sbr.rel (0) target = $region5
    $region4: #{npc_gnn_film_forward.2} parent=1 // pred_region
      _
    $region5: #{npc_gnn_film_forward.2} parent=1 // pred_fallthru
      _
    // Predicated region
    $region6: #{npc_gnn_film_forward.2} parent=1 // pred_check
      _
    $region7: #{npc_gnn_film_forward.2} parent=1 // pred_check_branch
      %19 = sbr.rel (0) target = $region9
    $region8: #{npc_gnn_film_forward.2} parent=1 // pred_region
      _
    $region9: #{npc_gnn_film_forward.2} parent=1 // pred_fallthru
      _
    // Predicated region
    $region10: #{npc_gnn_film_forward.2} parent=1 // pred_check
      _
    $region11: #{npc_gnn_film_forward.2} parent=1 // pred_check_branch
      %21 = sbr.rel (0) target = $region13
    $region12: #{npc_gnn_film_forward.2} parent=1 // pred_region
      _
    $region13: #{npc_gnn_film_forward.2} parent=1 // pred_fallthru
      _
    // Predicated region
    $region14: #{npc_gnn_film_forward.2} parent=1 // pred_check
      _
    $region15: #{npc_gnn_film_forward.2} parent=1 // pred_check_branch
      %23 = sbr.rel (0) target = $region17
    $region16: #{npc_gnn_film_forward.2} parent=1 // pred_region
      %s25 = ssub.s32 8192, 8192
      %26 = vsyncadd [#allocation3], %s25
      %s27 = sshll.u32 [#allocation2], 4
      %s28 = int_to_ptr.vmem [resolvable:$true] %s27
      %33 = dma.hbm_to_vmem [thread:$0]  %s3, 8192, %s28, [#allocation3], 256, 256, 16
    $region17: #{npc_gnn_film_forward.2} parent=1 // pred_fallthru
      _
    // Predicated region
    $region18: #{npc_gnn_film_forward.2} parent=1 // pred_check
      _
    $region19: #{npc_gnn_film_forward.2} parent=1 // pred_check_branch
      %35 = sbr.rel (0) target = $region21
    $region20: #{npc_gnn_film_forward.2} parent=1 // pred_region
      _
    $region21: #{npc_gnn_film_forward.2} parent=1 // pred_fallthru
      _
    // Predicated region
    $region22: #{npc_gnn_film_forward.2} parent=1 // pred_check
      _
    $region23: #{npc_gnn_film_forward.2} parent=1 // pred_check_branch
      %37 = sbr.rel (0) target = $region25
    $region24: #{npc_gnn_film_forward.2} parent=1 // pred_region
      %s39 = ssub.s32 8192, 8192
      %40 = vsyncadd [#allocation5], %s39
      %s41 = sshll.u32 [#allocation4], 4
      %s42 = int_to_ptr.vmem [resolvable:$true] %s41
      %47 = dma.hbm_to_vmem [thread:$0]  %s5, 8192, %s42, [#allocation5], 256, 256, 16
    $region25: #{npc_gnn_film_forward.2} parent=1 // pred_fallthru
      _
    // Predicated region
    $region26: #{npc_gnn_film_forward.2} parent=1 // pred_check
      _
    $region27: #{npc_gnn_film_forward.2} parent=1 // pred_check_branch
      %49 = sbr.rel (0) target = $region29
    $region28: #{npc_gnn_film_forward.2} parent=1 // pred_region
      _
    $region29: #{npc_gnn_film_forward.2} parent=1 // pred_fallthru
      _
    // Predicated region
    $region30: #{npc_gnn_film_forward.2} parent=1 // pred_check
      _
    $region31: #{npc_gnn_film_forward.2} parent=1 // pred_check_branch
      %51 = sbr.rel (0) target = $region33
    $region32: #{npc_gnn_film_forward.2} parent=1 // pred_region
      %s53 = ssub.s32 7168, 7168
      %54 = vsyncadd [#allocation5], %s53
      %s55 = sshll.u32 [#allocation6], 4
      %s56 = int_to_ptr.vmem [resolvable:$true] %s55
      %61 = dma.hbm_to_vmem [thread:$0]  %s7, 7168, %s56, [#allocation5], 256, 256, 16
    $region33: #{npc_gnn_film_forward.2} parent=1 // pred_fallthru
      _
    // Predicated region
    $region34: #{npc_gnn_film_forward.2} parent=1 // pred_check
      _
    $region35: #{npc_gnn_film_forward.2} parent=1 // pred_check_branch
      %63 = sbr.rel (0) target = $region37
    $region36: #{npc_gnn_film_forward.2} parent=1 // pred_region
      _
    $region37: #{npc_gnn_film_forward.2} parent=1 // pred_fallthru
      _
    // Predicated region
    $region38: #{npc_gnn_film_forward.2} parent=1 // pred_check
      _
    $region39: #{npc_gnn_film_forward.2} parent=1 // pred_check_branch
      %65 = sbr.rel (0) target = $region41
    $region40: #{npc_gnn_film_forward.2} parent=1 // pred_region
      %66 = dma.done [#allocation3], 8192
    $region41: #{npc_gnn_film_forward.2} parent=1 // pred_fallthru
      _
    // Predicated region
    $region42: #{npc_gnn_film_forward.2} parent=1 // pred_check
      _
    $region43: #{npc_gnn_film_forward.2} parent=1 // pred_check_branch
      %68 = sbr.rel (0) target = $region45
    $region44: #{npc_gnn_film_forward.2} parent=1 // pred_region
      %69 = dma.done [#allocation5], 8192
    $region45: #{npc_gnn_film_forward.2} parent=1 // pred_fallthru
      _
    // Predicated region
    $region46: #{npc_gnn_film_forward.2} parent=1 // pred_check
      _
    $region47: #{npc_gnn_film_forward.2} parent=1 // pred_check_branch
      %71 = sbr.rel (0) target = $region49
    $region48: #{npc_gnn_film_forward.2} parent=1 // pred_region
      %72 = dma.done [#allocation5], 7168
    $region49: #{npc_gnn_film_forward.2} parent=1 // pred_fallthru
      _
    %v73 = vld [vmem:[%s0] sm:$0x3]
    %v74 = vld [vmem:[%s1] sm:$0xff]
    %v75 = vld [vmem:[%s1 + $0x8] sm:$0xff]
    %v76 = vld [vmem:[%s1 + $0x10] sm:$0xff]
    %v77 = vld [vmem:[%s1 + $0x18] sm:$0xff]
    %v78 = vld [vmem:[%s1 + $0x20] sm:$0xff]
    %v79 = vld [vmem:[%s1 + $0x28] sm:$0xff]
    %v80 = vld [vmem:[%s1 + $0x30] sm:$0xff]
    %v81 = vld [vmem:[%s1 + $0x38] sm:$0xff]
    %v82 = vld [vmem:[%s1 + $0x40] sm:$0xff]
    %v83 = vld [vmem:[%s1 + $0x48] sm:$0xff]
    %v84 = vld [vmem:[%s1 + $0x50] sm:$0xff]
    %v85 = vld [vmem:[%s1 + $0x58] sm:$0xff]
    %v86 = vld [vmem:[%s2] sm:$0x3]
    %v88 = vlaneseq
    %v89 = vshrl.u32 %v88, 7
    %v90 = vsub.s32 0, %v89
    %v91 = vrot.slane %v86, %v90
    %v92 = vlaneseq
    %v93 = vshrl.u32 %v92, 7
    %v94 = vsub.s32 1, %v93
    %v95 = vrot.slane %v86, %v94
    %vm98 = vcmask 392192
    %v100 = vsel %vm98, %v73, 0
    %102 = vmatprep.subr.mxu0 0.0
    %103 = vmatpush1.msra.mxu0 0.0
    %104 = vmatprep.subr.mxu0 0.0
    %105 = vmatpush1.msra.mxu0 0.0
    %106 = vmatprep.subr.mxu0 0.0
    %107 = vmatpush1.msra.mxu0 0.0
    %108 = vmatprep.subr.mxu0 0.0
    %109 = vmatpush1.msra.mxu0 0.0
    %110 = vmatprep.subr.mxu0 0.0
    %111 = vmatpush1.msra.mxu0 0.0
    %112 = vmatprep.subr.mxu0 0.0
    %113 = vmatpush1.msra.mxu0 0.0
    %114 = vmatprep.subr.mxu0 0.0
    %115 = vmatpush1.msra.mxu0 0.0
    %116 = vmatprep.subr.mxu0 0.0
    %117 = vmatpush1.msra.mxu0 0.0
    %118 = vmatprep.subr.mxu0 0.0
    %119 = vmatpush1.msra.mxu0 0.0
    %120 = vmatprep.subr.mxu0 0.0
    %121 = vmatpush1.msra.mxu0 0.0
    %122 = vmatprep.subr.mxu0 %v85
    %123 = vmatpush1.msra.mxu0 %v84
    %124 = vmatprep.subr.mxu0 %v83
    %125 = vmatpush1.msra.mxu0 %v82
    %126 = vmatprep.subr.mxu0 %v81
    %127 = vmatpush1.msra.mxu0 %v80
    %128 = vmatprep.subr.mxu0 %v79
    %129 = vmatpush1.msra.mxu0 %v78
    %130 = vmatprep.subr.mxu0 %v77
    %131 = vmatpush1.msra.mxu0 %v76
    %132 = vmatprep.subr.mxu0 %v75
    %133 = vmatpush1.msra.mxu0 %v74
    %134 = vmatprep.subr.mxu0 0.0
    %135 = vmatpush2.msra.mxu0 0.0
    %136 = vmatprep.subr.mxu0 0.0
    %137 = vmatpush2.msra.mxu0 0.0
    %138 = vmatprep.subr.mxu0 0.0
    %139 = vmatpush2.msra.mxu0 0.0
    %140 = vmatprep.subr.mxu0 0.0
    %141 = vmatpush2.msra.mxu0 0.0
    %142 = vmatprep.subr.mxu0 0.0
    %143 = vmatpush2.msra.mxu0 0.0
    %144 = vmatprep.subr.mxu0 0.0
    %145 = vmatpush2.msra.mxu0 0.0
    %146 = vmatprep.subr.mxu0 0.0
    %147 = vmatpush2.msra.mxu0 0.0
    %148 = vmatprep.subr.mxu0 0.0
    %149 = vmatpush2.msra.mxu0 0.0
    %150 = vmatprep.subr.mxu0 0.0
    %151 = vmatpush2.msra.mxu0 0.0
    %152 = vmatprep.subr.mxu0 0.0
    %153 = vmatpush2.msra.mxu0 0.0
    %154 = vmatprep.subr.mxu0 0.0
    %155 = vmatpush2.msra.mxu0 0.0
    %156 = vmatprep.subr.mxu0 0.0
    %157 = vmatpush2.msra.mxu0 0.0
    %158 = vmatprep.subr.mxu0 0.0
    %159 = vmatpush2.msra.mxu0 0.0
    %160 = vmatprep.subr.mxu0 0.0
    %161 = vmatpush2.msra.mxu0 0.0
    %162 = vmatprep.subr.mxu0 0.0
    %163 = vmatpush2.msra.mxu0 0.0
    %164 = vmatprep.subr.mxu0 0.0
    %165 = vmatpush2.msra.mxu0 0.0
    %166 = vmatprep.mubr.f32.mxu0 0.0
    %167 = vmatmul.mubr.f32.gmra.mxu0 %v100
    %v168 = vpop.f32.mrf.mxu0
    %v169 = vadd.f32 %v91, %v168
    %v170 = vpop.f32.mrf.mxu0
    %v171 = vadd.f32 %v95, %v170
    %172 = vdwg.mxu0
    %v173 = vmax.f32 %v169, 0.0
    %v174 = vmax.f32 %v171, 0.0
    %v175 = vld [vmem:[#allocation2] sm:$0xff]
    %v176 = vld [vmem:[#allocation2 + $0x8] sm:$0xff]
    %v177 = vld [vmem:[#allocation2 + $0x10] sm:$0xff]
    %v178 = vld [vmem:[#allocation2 + $0x18] sm:$0xff]
    %v179 = vld [vmem:[#allocation2 + $0x20] sm:$0xff]
    %v180 = vld [vmem:[#allocation2 + $0x28] sm:$0xff]
    %v181 = vld [vmem:[#allocation2 + $0x30] sm:$0xff]
    %v182 = vld [vmem:[#allocation2 + $0x38] sm:$0xff]
    %v183 = vld [vmem:[#allocation2 + $0x40] sm:$0xff]
    %v184 = vld [vmem:[#allocation2 + $0x48] sm:$0xff]
    %v185 = vld [vmem:[#allocation2 + $0x50] sm:$0xff]
    %v186 = vld [vmem:[#allocation2 + $0x58] sm:$0xff]
    %v187 = vld [vmem:[#allocation2 + $0x60] sm:$0xff]
    %v188 = vld [vmem:[#allocation2 + $0x68] sm:$0xff]
    %v189 = vld [vmem:[#allocation2 + $0x70] sm:$0xff]
    %v190 = vld [vmem:[#allocation2 + $0x78] sm:$0xff]
    %v191 = vld [vmem:[#allocation2 + $0x80] sm:$0xff]
    %v192 = vld [vmem:[#allocation2 + $0x88] sm:$0xff]
    %v193 = vld [vmem:[#allocation2 + $0x90] sm:$0xff]
    %v194 = vld [vmem:[#allocation2 + $0x98] sm:$0xff]
    %v195 = vld [vmem:[#allocation2 + $0xa0] sm:$0xff]
    %v196 = vld [vmem:[#allocation2 + $0xa8] sm:$0xff]
    %v197 = vld [vmem:[#allocation2 + $0xb0] sm:$0xff]
    %v198 = vld [vmem:[#allocation2 + $0xb8] sm:$0xff]
    %v199 = vld [vmem:[#allocation2 + $0xc0] sm:$0xff]
    %v200 = vld [vmem:[#allocation2 + $0xc8] sm:$0xff]
    %v201 = vld [vmem:[#allocation2 + $0xd0] sm:$0xff]
    %v202 = vld [vmem:[#allocation2 + $0xd8] sm:$0xff]
    %v203 = vld [vmem:[#allocation2 + $0xe0] sm:$0xff]
    %v204 = vld [vmem:[#allocation2 + $0xe8] sm:$0xff]
    %v205 = vld [vmem:[#allocation2 + $0xf0] sm:$0xff]
    %v206 = vld [vmem:[#allocation2 + $0xf8] sm:$0xff]
    %v207 = vld [vmem:[#allocation2 + $0x100] sm:$0xff]
    %v208 = vld [vmem:[#allocation2 + $0x108] sm:$0xff]
    %v209 = vld [vmem:[#allocation2 + $0x110] sm:$0xff]
    %v210 = vld [vmem:[#allocation2 + $0x118] sm:$0xff]
    %v211 = vld [vmem:[#allocation2 + $0x120] sm:$0xff]
    %v212 = vld [vmem:[#allocation2 + $0x128] sm:$0xff]
    %v213 = vld [vmem:[#allocation2 + $0x130] sm:$0xff]
    %v214 = vld [vmem:[#allocation2 + $0x138] sm:$0xff]
    %v215 = vld [vmem:[#allocation2 + $0x140] sm:$0xff]
    %v216 = vld [vmem:[#allocation2 + $0x148] sm:$0xff]
    %v217 = vld [vmem:[#allocation2 + $0x150] sm:$0xff]
    %v218 = vld [vmem:[#allocation2 + $0x158] sm:$0xff]
    %v219 = vld [vmem:[#allocation2 + $0x160] sm:$0xff]
    %v220 = vld [vmem:[#allocation2 + $0x168] sm:$0xff]
    %v221 = vld [vmem:[#allocation2 + $0x170] sm:$0xff]
    %v222 = vld [vmem:[#allocation2 + $0x178] sm:$0xff]
    %v223 = vld [vmem:[#allocation2 + $0x180] sm:$0xff]
    %v224 = vld [vmem:[#allocation2 + $0x188] sm:$0xff]
    %v225 = vld [vmem:[#allocation2 + $0x190] sm:$0xff]
    %v226 = vld [vmem:[#allocation2 + $0x198] sm:$0xff]
    %v227 = vld [vmem:[#allocation2 + $0x1a0] sm:$0xff]
    %v228 = vld [vmem:[#allocation2 + $0x1a8] sm:$0xff]
    %v229 = vld [vmem:[#allocation2 + $0x1b0] sm:$0xff]
    %v230 = vld [vmem:[#allocation2 + $0x1b8] sm:$0xff]
    %v231 = vld [vmem:[#allocation2 + $0x1c0] sm:$0xff]
    %v232 = vld [vmem:[#allocation2 + $0x1c8] sm:$0xff]
    %v233 = vld [vmem:[#allocation2 + $0x1d0] sm:$0xff]
    %v234 = vld [vmem:[#allocation2 + $0x1d8] sm:$0xff]
    %v235 = vld [vmem:[#allocation2 + $0x1e0] sm:$0xff]
    %v236 = vld [vmem:[#allocation2 + $0x1e8] sm:$0xff]
    %v237 = vld [vmem:[#allocation2 + $0x1f0] sm:$0xff]
    %v238 = vld [vmem:[#allocation2 + $0x1f8] sm:$0xff]
    %v239 = vld [vmem:[%s4] sm:$0x3]
    %v241 = vlaneseq
    %v242 = vshrl.u32 %v241, 7
    %v243 = vsub.s32 0, %v242
    %v244 = vrot.slane %v239, %v243
    %v245 = vlaneseq
    %v246 = vshrl.u32 %v245, 7
    %v247 = vsub.s32 1, %v246
    %v248 = vrot.slane %v239, %v247
    %251 = vmatprep.subr.mxu0 %v206
    %252 = vmatpush1.msra.mxu0 %v205
    %253 = vmatprep.subr.mxu0 %v204
    %254 = vmatpush1.msra.mxu0 %v203
    %255 = vmatprep.subr.mxu0 %v202
    %256 = vmatpush1.msra.mxu0 %v201
    %257 = vmatprep.subr.mxu0 %v200
    %258 = vmatpush1.msra.mxu0 %v199
    %259 = vmatprep.subr.mxu0 %v198
    %260 = vmatpush1.msra.mxu0 %v197
    %261 = vmatprep.subr.mxu0 %v196
    %262 = vmatpush1.msra.mxu0 %v195
    %263 = vmatprep.subr.mxu0 %v194
    %264 = vmatpush1.msra.mxu0 %v193
    %265 = vmatprep.subr.mxu0 %v192
    %266 = vmatpush1.msra.mxu0 %v191
    %267 = vmatprep.subr.mxu0 %v190
    %268 = vmatpush1.msra.mxu0 %v189
    %269 = vmatprep.subr.mxu0 %v188
    %270 = vmatpush1.msra.mxu0 %v187
    %271 = vmatprep.subr.mxu0 %v186
    %272 = vmatpush1.msra.mxu0 %v185
    %273 = vmatprep.subr.mxu0 %v184
    %274 = vmatpush1.msra.mxu0 %v183
    %275 = vmatprep.subr.mxu0 %v182
    %276 = vmatpush1.msra.mxu0 %v181
    %277 = vmatprep.subr.mxu0 %v180
    %278 = vmatpush1.msra.mxu0 %v179
    %279 = vmatprep.subr.mxu0 %v178
    %280 = vmatpush1.msra.mxu0 %v177
    %281 = vmatprep.subr.mxu0 %v176
    %282 = vmatpush1.msra.mxu0 %v175
    %283 = vmatprep.subr.mxu0 %v238
    %284 = vmatpush2.msra.mxu0 %v237
    %285 = vmatprep.subr.mxu0 %v236
    %286 = vmatpush2.msra.mxu0 %v235
    %287 = vmatprep.subr.mxu0 %v234
    %288 = vmatpush2.msra.mxu0 %v233
    %289 = vmatprep.subr.mxu0 %v232
    %290 = vmatpush2.msra.mxu0 %v231
    %291 = vmatprep.subr.mxu0 %v230
    %292 = vmatpush2.msra.mxu0 %v229
    %293 = vmatprep.subr.mxu0 %v228
    %294 = vmatpush2.msra.mxu0 %v227
    %295 = vmatprep.subr.mxu0 %v226
    %296 = vmatpush2.msra.mxu0 %v225
    %297 = vmatprep.subr.mxu0 %v224
    %298 = vmatpush2.msra.mxu0 %v223
    %299 = vmatprep.subr.mxu0 %v222
    %300 = vmatpush2.msra.mxu0 %v221
    %301 = vmatprep.subr.mxu0 %v220
    %302 = vmatpush2.msra.mxu0 %v219
    %303 = vmatprep.subr.mxu0 %v218
    %304 = vmatpush2.msra.mxu0 %v217
    %305 = vmatprep.subr.mxu0 %v216
    %306 = vmatpush2.msra.mxu0 %v215
    %307 = vmatprep.subr.mxu0 %v214
    %308 = vmatpush2.msra.mxu0 %v213
    %309 = vmatprep.subr.mxu0 %v212
    %310 = vmatpush2.msra.mxu0 %v211
    %311 = vmatprep.subr.mxu0 %v210
    %312 = vmatpush2.msra.mxu0 %v209
    %313 = vmatprep.subr.mxu0 %v208
    %314 = vmatpush2.msra.mxu0 %v207
    %315 = vmatprep.mubr.f32.mxu0 %v174
    %316 = vmatmul.mubr.f32.gmra.mxu0 %v173
    %v317 = vpop.f32.mrf.mxu0
    %v318 = vadd.f32 %v244, %v317
    %v319 = vpop.f32.mrf.mxu0
    %v320 = vadd.f32 %v248, %v319
    %321 = vdwg.mxu0
    %v322 = vmax.f32 %v318, 0.0
    %v323 = vmax.f32 %v320, 0.0
    %v324 = vld [vmem:[#allocation4] sm:$0xff]
    %v325 = vld [vmem:[#allocation4 + $0x8] sm:$0xff]
    %v326 = vld [vmem:[#allocation4 + $0x10] sm:$0xff]
    %v327 = vld [vmem:[#allocation4 + $0x18] sm:$0xff]
    %v328 = vld [vmem:[#allocation4 + $0x20] sm:$0xff]
    %v329 = vld [vmem:[#allocation4 + $0x28] sm:$0xff]
    %v330 = vld [vmem:[#allocation4 + $0x30] sm:$0xff]
    %v331 = vld [vmem:[#allocation4 + $0x38] sm:$0xff]
    %v332 = vld [vmem:[#allocation4 + $0x40] sm:$0xff]
    %v333 = vld [vmem:[#allocation4 + $0x48] sm:$0xff]
    %v334 = vld [vmem:[#allocation4 + $0x50] sm:$0xff]
    %v335 = vld [vmem:[#allocation4 + $0x58] sm:$0xff]
    %v336 = vld [vmem:[#allocation4 + $0x60] sm:$0xff]
    %v337 = vld [vmem:[#allocation4 + $0x68] sm:$0xff]
    %v338 = vld [vmem:[#allocation4 + $0x70] sm:$0xff]
    %v339 = vld [vmem:[#allocation4 + $0x78] sm:$0xff]
    %v340 = vld [vmem:[#allocation4 + $0x80] sm:$0xff]
    %v341 = vld [vmem:[#allocation4 + $0x88] sm:$0xff]
    %v342 = vld [vmem:[#allocation4 + $0x90] sm:$0xff]
    %v343 = vld [vmem:[#allocation4 + $0x98] sm:$0xff]
    %v344 = vld [vmem:[#allocation4 + $0xa0] sm:$0xff]
    %v345 = vld [vmem:[#allocation4 + $0xa8] sm:$0xff]
    %v346 = vld [vmem:[#allocation4 + $0xb0] sm:$0xff]
    %v347 = vld [vmem:[#allocation4 + $0xb8] sm:$0xff]
    %v348 = vld [vmem:[#allocation4 + $0xc0] sm:$0xff]
    %v349 = vld [vmem:[#allocation4 + $0xc8] sm:$0xff]
    %v350 = vld [vmem:[#allocation4 + $0xd0] sm:$0xff]
    %v351 = vld [vmem:[#allocation4 + $0xd8] sm:$0xff]
    %v352 = vld [vmem:[#allocation4 + $0xe0] sm:$0xff]
    %v353 = vld [vmem:[#allocation4 + $0xe8] sm:$0xff]
    %v354 = vld [vmem:[#allocation4 + $0xf0] sm:$0xff]
    %v355 = vld [vmem:[#allocation4 + $0xf8] sm:$0xff]
    %v356 = vld [vmem:[#allocation4 + $0x100] sm:$0xff]
    %v357 = vld [vmem:[#allocation4 + $0x108] sm:$0xff]
    %v358 = vld [vmem:[#allocation4 + $0x110] sm:$0xff]
    %v359 = vld [vmem:[#allocation4 + $0x118] sm:$0xff]
    %v360 = vld [vmem:[#allocation4 + $0x120] sm:$0xff]
    %v361 = vld [vmem:[#allocation4 + $0x128] sm:$0xff]
    %v362 = vld [vmem:[#allocation4 + $0x130] sm:$0xff]
    %v363 = vld [vmem:[#allocation4 + $0x138] sm:$0xff]
    %v364 = vld [vmem:[#allocation4 + $0x140] sm:$0xff]
    %v365 = vld [vmem:[#allocation4 + $0x148] sm:$0xff]
    %v366 = vld [vmem:[#allocation4 + $0x150] sm:$0xff]
    %v367 = vld [vmem:[#allocation4 + $0x158] sm:$0xff]
    %v368 = vld [vmem:[#allocation4 + $0x160] sm:$0xff]
    %v369 = vld [vmem:[#allocation4 + $0x168] sm:$0xff]
    %v370 = vld [vmem:[#allocation4 + $0x170] sm:$0xff]
    %v371 = vld [vmem:[#allocation4 + $0x178] sm:$0xff]
    %v372 = vld [vmem:[#allocation4 + $0x180] sm:$0xff]
    %v373 = vld [vmem:[#allocation4 + $0x188] sm:$0xff]
    %v374 = vld [vmem:[#allocation4 + $0x190] sm:$0xff]
    %v375 = vld [vmem:[#allocation4 + $0x198] sm:$0xff]
    %v376 = vld [vmem:[#allocation4 + $0x1a0] sm:$0xff]
    %v377 = vld [vmem:[#allocation4 + $0x1a8] sm:$0xff]
    %v378 = vld [vmem:[#allocation4 + $0x1b0] sm:$0xff]
    %v379 = vld [vmem:[#allocation4 + $0x1b8] sm:$0xff]
    %v380 = vld [vmem:[#allocation4 + $0x1c0] sm:$0xff]
    %v381 = vld [vmem:[#allocation4 + $0x1c8] sm:$0xff]
    %v382 = vld [vmem:[#allocation4 + $0x1d0] sm:$0xff]
    %v383 = vld [vmem:[#allocation4 + $0x1d8] sm:$0xff]
    %v384 = vld [vmem:[#allocation4 + $0x1e0] sm:$0xff]
    %v385 = vld [vmem:[#allocation4 + $0x1e8] sm:$0xff]
    %v386 = vld [vmem:[#allocation4 + $0x1f0] sm:$0xff]
    %v387 = vld [vmem:[#allocation4 + $0x1f8] sm:$0xff]
    %v388 = vld [vmem:[%s6] sm:$0x3]
    %v390 = vlaneseq
    %v391 = vshrl.u32 %v390, 7
    %v392 = vsub.s32 0, %v391
    %v393 = vrot.slane %v388, %v392
    %v394 = vlaneseq
    %v395 = vshrl.u32 %v394, 7
    %v396 = vsub.s32 1, %v395
    %v397 = vrot.slane %v388, %v396
    %400 = vmatprep.subr.mxu0 %v355
    %401 = vmatpush1.msra.mxu0 %v354
    %402 = vmatprep.subr.mxu0 %v353
    %403 = vmatpush1.msra.mxu0 %v352
    %404 = vmatprep.subr.mxu0 %v351
    %405 = vmatpush1.msra.mxu0 %v350
    %406 = vmatprep.subr.mxu0 %v349
    %407 = vmatpush1.msra.mxu0 %v348
    %408 = vmatprep.subr.mxu0 %v347
    %409 = vmatpush1.msra.mxu0 %v346
    %410 = vmatprep.subr.mxu0 %v345
    %411 = vmatpush1.msra.mxu0 %v344
    %412 = vmatprep.subr.mxu0 %v343
    %413 = vmatpush1.msra.mxu0 %v342
    %414 = vmatprep.subr.mxu0 %v341
    %415 = vmatpush1.msra.mxu0 %v340
    %416 = vmatprep.subr.mxu0 %v339
    %417 = vmatpush1.msra.mxu0 %v338
    %418 = vmatprep.subr.mxu0 %v337
    %419 = vmatpush1.msra.mxu0 %v336
    %420 = vmatprep.subr.mxu0 %v335
    %421 = vmatpush1.msra.mxu0 %v334
    %422 = vmatprep.subr.mxu0 %v333
    %423 = vmatpush1.msra.mxu0 %v332
    %424 = vmatprep.subr.mxu0 %v331
    %425 = vmatpush1.msra.mxu0 %v330
    %426 = vmatprep.subr.mxu0 %v329
    %427 = vmatpush1.msra.mxu0 %v328
    %428 = vmatprep.subr.mxu0 %v327
    %429 = vmatpush1.msra.mxu0 %v326
    %430 = vmatprep.subr.mxu0 %v325
    %431 = vmatpush1.msra.mxu0 %v324
    %432 = vmatprep.subr.mxu0 %v387
    %433 = vmatpush2.msra.mxu0 %v386
    %434 = vmatprep.subr.mxu0 %v385
    %435 = vmatpush2.msra.mxu0 %v384
    %436 = vmatprep.subr.mxu0 %v383
    %437 = vmatpush2.msra.mxu0 %v382
    %438 = vmatprep.subr.mxu0 %v381
    %439 = vmatpush2.msra.mxu0 %v380
    %440 = vmatprep.subr.mxu0 %v379
    %441 = vmatpush2.msra.mxu0 %v378
    %442 = vmatprep.subr.mxu0 %v377
    %443 = vmatpush2.msra.mxu0 %v376
    %444 = vmatprep.subr.mxu0 %v375
    %445 = vmatpush2.msra.mxu0 %v374
    %446 = vmatprep.subr.mxu0 %v373
    %447 = vmatpush2.msra.mxu0 %v372
    %448 = vmatprep.subr.mxu0 %v371
    %449 = vmatpush2.msra.mxu0 %v370
    %450 = vmatprep.subr.mxu0 %v369
    %451 = vmatpush2.msra.mxu0 %v368
    %452 = vmatprep.subr.mxu0 %v367
    %453 = vmatpush2.msra.mxu0 %v366
    %454 = vmatprep.subr.mxu0 %v365
    %455 = vmatpush2.msra.mxu0 %v364
    %456 = vmatprep.subr.mxu0 %v363
    %457 = vmatpush2.msra.mxu0 %v362
    %458 = vmatprep.subr.mxu0 %v361
    %459 = vmatpush2.msra.mxu0 %v360
    %460 = vmatprep.subr.mxu0 %v359
    %461 = vmatpush2.msra.mxu0 %v358
    %462 = vmatprep.subr.mxu0 %v357
    %463 = vmatpush2.msra.mxu0 %v356
    %464 = vmatprep.mubr.f32.mxu0 %v323
    %465 = vmatmul.mubr.f32.gmra.mxu0 %v322
    %v466 = vpop.f32.mrf.mxu0
    %v467 = vadd.f32 %v393, %v466
    %v468 = vpop.f32.mrf.mxu0
    %v469 = vadd.f32 %v397, %v468
    %470 = vdwg.mxu0
    %v471 = vmax.f32 %v467, 0.0
    %v472 = vmax.f32 %v469, 0.0
    %v473 = vld [vmem:[#allocation6] sm:$0xff]
    %v474 = vld [vmem:[#allocation6 + $0x8] sm:$0xff]
    %v475 = vld [vmem:[#allocation6 + $0x10] sm:$0xff]
    %v476 = vld [vmem:[#allocation6 + $0x18] sm:$0xff]
    %v477 = vld [vmem:[#allocation6 + $0x20] sm:$0xff]
    %v478 = vld [vmem:[#allocation6 + $0x28] sm:$0xff]
    %v479 = vld [vmem:[#allocation6 + $0x30] sm:$0xff]
    %v480 = vld [vmem:[#allocation6 + $0x38] sm:$0xff]
    %v481 = vld [vmem:[%s8] sm:$0x3]
    %v483 = vlaneseq
    %v484 = vshrl.u32 %v483, 7
    %v485 = vsub.s32 0, %v484
    %v486 = vrot.slane %v481, %v485
    %v487 = vlaneseq
    %v488 = vshrl.u32 %v487, 7
    %v489 = vsub.s32 1, %v488
    %v490 = vrot.slane %v481, %v489
    %494 = vrot.lane.b32.xlu0 %v471, 96
    %v495 = vpop.permute.xlu0 %494
    %vm496 = vcmask 261120
    %v497 = vsel %vm496, %v495, 0
    %499 = vmatprep.subr.mxu0 0.0
    %500 = vmatpush1.msra.mxu0 0.0
    %501 = vmatprep.subr.mxu0 0.0
    %502 = vmatpush1.msra.mxu0 0.0
    %503 = vmatprep.subr.mxu0 0.0
    %504 = vmatpush1.msra.mxu0 0.0
    %505 = vmatprep.subr.mxu0 0.0
    %506 = vmatpush1.msra.mxu0 0.0
    %507 = vmatprep.subr.mxu0 0.0
    %508 = vmatpush1.msra.mxu0 0.0
    %509 = vmatprep.subr.mxu0 0.0
    %510 = vmatpush1.msra.mxu0 0.0
    %511 = vmatprep.subr.mxu0 0.0
    %512 = vmatpush1.msra.mxu0 0.0
    %513 = vmatprep.subr.mxu0 0.0
    %514 = vmatpush1.msra.mxu0 0.0
    %515 = vmatprep.subr.mxu0 0.0
    %516 = vmatpush1.msra.mxu0 0.0
    %517 = vmatprep.subr.mxu0 0.0
    %518 = vmatpush1.msra.mxu0 0.0
    %519 = vmatprep.subr.mxu0 0.0
    %520 = vmatpush1.msra.mxu0 0.0
    %521 = vmatprep.subr.mxu0 0.0
    %522 = vmatpush1.msra.mxu0 0.0
    %523 = vmatprep.subr.mxu0 %v480
    %524 = vmatpush1.msra.mxu0 %v479
    %525 = vmatprep.subr.mxu0 %v478
    %526 = vmatpush1.msra.mxu0 %v477
    %527 = vmatprep.subr.mxu0 %v476
    %528 = vmatpush1.msra.mxu0 %v475
    %529 = vmatprep.subr.mxu0 %v474
    %530 = vmatpush1.msra.mxu0 %v473
    %531 = vmatprep.subr.mxu0 0.0
    %532 = vmatpush2.msra.mxu0 0.0
    %533 = vmatprep.subr.mxu0 0.0
    %534 = vmatpush2.msra.mxu0 0.0
    %535 = vmatprep.subr.mxu0 0.0
    %536 = vmatpush2.msra.mxu0 0.0
    %537 = vmatprep.subr.mxu0 0.0
    %538 = vmatpush2.msra.mxu0 0.0
    %539 = vmatprep.subr.mxu0 0.0
    %540 = vmatpush2.msra.mxu0 0.0
    %541 = vmatprep.subr.mxu0 0.0
    %542 = vmatpush2.msra.mxu0 0.0
    %543 = vmatprep.subr.mxu0 0.0
    %544 = vmatpush2.msra.mxu0 0.0
    %545 = vmatprep.subr.mxu0 0.0
    %546 = vmatpush2.msra.mxu0 0.0
    %547 = vmatprep.subr.mxu0 0.0
    %548 = vmatpush2.msra.mxu0 0.0
    %549 = vmatprep.subr.mxu0 0.0
    %550 = vmatpush2.msra.mxu0 0.0
    %551 = vmatprep.subr.mxu0 0.0
    %552 = vmatpush2.msra.mxu0 0.0
    %553 = vmatprep.subr.mxu0 0.0
    %554 = vmatpush2.msra.mxu0 0.0
    %555 = vmatprep.subr.mxu0 0.0
    %556 = vmatpush2.msra.mxu0 0.0
    %557 = vmatprep.subr.mxu0 0.0
    %558 = vmatpush2.msra.mxu0 0.0
    %559 = vmatprep.subr.mxu0 0.0
    %560 = vmatpush2.msra.mxu0 0.0
    %561 = vmatprep.subr.mxu0 0.0
    %562 = vmatpush2.msra.mxu0 0.0
    %563 = vmatprep.mubr.f32.mxu0 0.0
    %564 = vmatmul.mubr.f32.gmra.mxu0 %v497
    %v565 = vpop.f32.mrf.mxu0
    %v566 = vadd.f32 %v486, %v565
    %v567 = vpop.f32.mrf.mxu0
    %v568 = vadd.f32 %v490, %v567
    %569 = vdwg.mxu0
    %v572 = vcombine.low %v566, %v568
    %v574 = vunpack.c.l.s4 1983009808
    %v575 = vunpack.c.0.s8 %v574
    %v576 = vlaneseq
    %v577 = vshrl.u32 %v576, 7
    %v578 = vsub.s32 %v575, %v577
    %v579 = vrot.slane %v572, %v578
    %581 = vst [vmem:[%s9] sm:$0xf] %v579
    %s582 = scalar_lea.vmem [#allocation6], 64
    %v583 = vld [vmem:[%s582] sm:$0xff]
    %v584 = vld [vmem:[%s582 + $0x8] sm:$0xff]
    %v585 = vld [vmem:[%s582 + $0x10] sm:$0xff]
    %v586 = vld [vmem:[%s582 + $0x18] sm:$0xff]
    %v587 = vld [vmem:[%s582 + $0x20] sm:$0xff]
    %v588 = vld [vmem:[%s582 + $0x28] sm:$0xff]
    %v589 = vld [vmem:[%s582 + $0x30] sm:$0xff]
    %v590 = vld [vmem:[%s582 + $0x38] sm:$0xff]
    %s591 = scalar_lea.vmem %s8, 2
    %v592 = vld [vmem:[%s591] sm:$0x3]
    %v594 = vlaneseq
    %v595 = vshrl.u32 %v594, 7
    %v596 = vsub.s32 0, %v595
    %v597 = vrot.slane %v592, %v596
    %v598 = vlaneseq
    %v599 = vshrl.u32 %v598, 7
    %v600 = vsub.s32 1, %v599
    %v601 = vrot.slane %v592, %v600
    %604 = vrot.lane.b32.xlu0 %v471, 64
    %v605 = vpop.permute.xlu0 %604
    %v606 = vsel %vm496, %v605, 0
    %608 = vmatprep.subr.mxu0 0.0
    %609 = vmatpush1.msra.mxu0 0.0
    %610 = vmatprep.subr.mxu0 0.0
    %611 = vmatpush1.msra.mxu0 0.0
    %612 = vmatprep.subr.mxu0 0.0
    %613 = vmatpush1.msra.mxu0 0.0
    %614 = vmatprep.subr.mxu0 0.0
    %615 = vmatpush1.msra.mxu0 0.0
    %616 = vmatprep.subr.mxu0 0.0
    %617 = vmatpush1.msra.mxu0 0.0
    %618 = vmatprep.subr.mxu0 0.0
    %619 = vmatpush1.msra.mxu0 0.0
    %620 = vmatprep.subr.mxu0 0.0
    %621 = vmatpush1.msra.mxu0 0.0
    %622 = vmatprep.subr.mxu0 0.0
    %623 = vmatpush1.msra.mxu0 0.0
    %624 = vmatprep.subr.mxu0 0.0
    %625 = vmatpush1.msra.mxu0 0.0
    %626 = vmatprep.subr.mxu0 0.0
    %627 = vmatpush1.msra.mxu0 0.0
    %628 = vmatprep.subr.mxu0 0.0
    %629 = vmatpush1.msra.mxu0 0.0
    %630 = vmatprep.subr.mxu0 0.0
    %631 = vmatpush1.msra.mxu0 0.0
    %632 = vmatprep.subr.mxu0 %v590
    %633 = vmatpush1.msra.mxu0 %v589
    %634 = vmatprep.subr.mxu0 %v588
    %635 = vmatpush1.msra.mxu0 %v587
    %636 = vmatprep.subr.mxu0 %v586
    %637 = vmatpush1.msra.mxu0 %v585
    %638 = vmatprep.subr.mxu0 %v584
    %639 = vmatpush1.msra.mxu0 %v583
    %640 = vmatprep.subr.mxu0 0.0
    %641 = vmatpush2.msra.mxu0 0.0
    %642 = vmatprep.subr.mxu0 0.0
    %643 = vmatpush2.msra.mxu0 0.0
    %644 = vmatprep.subr.mxu0 0.0
    %645 = vmatpush2.msra.mxu0 0.0
    %646 = vmatprep.subr.mxu0 0.0
    %647 = vmatpush2.msra.mxu0 0.0
    %648 = vmatprep.subr.mxu0 0.0
    %649 = vmatpush2.msra.mxu0 0.0
    %650 = vmatprep.subr.mxu0 0.0
    %651 = vmatpush2.msra.mxu0 0.0
    %652 = vmatprep.subr.mxu0 0.0
    %653 = vmatpush2.msra.mxu0 0.0
    %654 = vmatprep.subr.mxu0 0.0
    %655 = vmatpush2.msra.mxu0 0.0
    %656 = vmatprep.subr.mxu0 0.0
    %657 = vmatpush2.msra.mxu0 0.0
    %658 = vmatprep.subr.mxu0 0.0
    %659 = vmatpush2.msra.mxu0 0.0
    %660 = vmatprep.subr.mxu0 0.0
    %661 = vmatpush2.msra.mxu0 0.0
    %662 = vmatprep.subr.mxu0 0.0
    %663 = vmatpush2.msra.mxu0 0.0
    %664 = vmatprep.subr.mxu0 0.0
    %665 = vmatpush2.msra.mxu0 0.0
    %666 = vmatprep.subr.mxu0 0.0
    %667 = vmatpush2.msra.mxu0 0.0
    %668 = vmatprep.subr.mxu0 0.0
    %669 = vmatpush2.msra.mxu0 0.0
    %670 = vmatprep.subr.mxu0 0.0
    %671 = vmatpush2.msra.mxu0 0.0
    %672 = vmatprep.mubr.f32.mxu0 0.0
    %673 = vmatmul.mubr.f32.gmra.mxu0 %v606
    %v674 = vpop.f32.mrf.mxu0
    %v675 = vadd.f32 %v597, %v674
    %v676 = vpop.f32.mrf.mxu0
    %v677 = vadd.f32 %v601, %v676
    %678 = vdwg.mxu0
    %v681 = vcombine.low %v675, %v677
    %v683 = vunpack.c.l.s4 1983009808
    %v684 = vunpack.c.0.s8 %v683
    %v685 = vlaneseq
    %v686 = vshrl.u32 %v685, 7
    %v687 = vsub.s32 %v684, %v686
    %v688 = vrot.slane %v681, %v687
    %690 = vst [vmem:[%s9 + $0x4] sm:$0xf] %v688
    %s691 = scalar_lea.vmem [#allocation6], 128
    %v692 = vld [vmem:[%s691] sm:$0xff]
    %v693 = vld [vmem:[%s691 + $0x8] sm:$0xff]
    %v694 = vld [vmem:[%s691 + $0x10] sm:$0xff]
    %v695 = vld [vmem:[%s691 + $0x18] sm:$0xff]
    %v696 = vld [vmem:[%s691 + $0x20] sm:$0xff]
    %v697 = vld [vmem:[%s691 + $0x28] sm:$0xff]
    %v698 = vld [vmem:[%s691 + $0x30] sm:$0xff]
    %v699 = vld [vmem:[%s691 + $0x38] sm:$0xff]
    %s700 = scalar_lea.vmem %s8, 4
    %v701 = vld [vmem:[%s700] sm:$0x3]
    %v703 = vlaneseq
    %v704 = vshrl.u32 %v703, 7
    %v705 = vsub.s32 0, %v704
    %v706 = vrot.slane %v701, %v705
    %v707 = vlaneseq
    %v708 = vshrl.u32 %v707, 7
    %v709 = vsub.s32 1, %v708
    %v710 = vrot.slane %v701, %v709
    %713 = vrot.lane.b32.xlu0 %v471, 32
    %v714 = vpop.permute.xlu0 %713
    %v715 = vsel %vm496, %v714, 0
    %717 = vmatprep.subr.mxu0 0.0
    %718 = vmatpush1.msra.mxu0 0.0
    %719 = vmatprep.subr.mxu0 0.0
    %720 = vmatpush1.msra.mxu0 0.0
    %721 = vmatprep.subr.mxu0 0.0
    %722 = vmatpush1.msra.mxu0 0.0
    %723 = vmatprep.subr.mxu0 0.0
    %724 = vmatpush1.msra.mxu0 0.0
    %725 = vmatprep.subr.mxu0 0.0
    %726 = vmatpush1.msra.mxu0 0.0
    %727 = vmatprep.subr.mxu0 0.0
    %728 = vmatpush1.msra.mxu0 0.0
    %729 = vmatprep.subr.mxu0 0.0
    %730 = vmatpush1.msra.mxu0 0.0
    %731 = vmatprep.subr.mxu0 0.0
    %732 = vmatpush1.msra.mxu0 0.0
    %733 = vmatprep.subr.mxu0 0.0
    %734 = vmatpush1.msra.mxu0 0.0
    %735 = vmatprep.subr.mxu0 0.0
    %736 = vmatpush1.msra.mxu0 0.0
    %737 = vmatprep.subr.mxu0 0.0
    %738 = vmatpush1.msra.mxu0 0.0
    %739 = vmatprep.subr.mxu0 0.0
    %740 = vmatpush1.msra.mxu0 0.0
    %741 = vmatprep.subr.mxu0 %v699
    %742 = vmatpush1.msra.mxu0 %v698
    %743 = vmatprep.subr.mxu0 %v697
    %744 = vmatpush1.msra.mxu0 %v696
    %745 = vmatprep.subr.mxu0 %v695
    %746 = vmatpush1.msra.mxu0 %v694
    %747 = vmatprep.subr.mxu0 %v693
    %748 = vmatpush1.msra.mxu0 %v692
    %749 = vmatprep.subr.mxu0 0.0
    %750 = vmatpush2.msra.mxu0 0.0
    %751 = vmatprep.subr.mxu0 0.0
    %752 = vmatpush2.msra.mxu0 0.0
    %753 = vmatprep.subr.mxu0 0.0
    %754 = vmatpush2.msra.mxu0 0.0
    %755 = vmatprep.subr.mxu0 0.0
    %756 = vmatpush2.msra.mxu0 0.0
    %757 = vmatprep.subr.mxu0 0.0
    %758 = vmatpush2.msra.mxu0 0.0
    %759 = vmatprep.subr.mxu0 0.0
    %760 = vmatpush2.msra.mxu0 0.0
    %761 = vmatprep.subr.mxu0 0.0
    %762 = vmatpush2.msra.mxu0 0.0
    %763 = vmatprep.subr.mxu0 0.0
    %764 = vmatpush2.msra.mxu0 0.0
    %765 = vmatprep.subr.mxu0 0.0
    %766 = vmatpush2.msra.mxu0 0.0
    %767 = vmatprep.subr.mxu0 0.0
    %768 = vmatpush2.msra.mxu0 0.0
    %769 = vmatprep.subr.mxu0 0.0
    %770 = vmatpush2.msra.mxu0 0.0
    %771 = vmatprep.subr.mxu0 0.0
    %772 = vmatpush2.msra.mxu0 0.0
    %773 = vmatprep.subr.mxu0 0.0
    %774 = vmatpush2.msra.mxu0 0.0
    %775 = vmatprep.subr.mxu0 0.0
    %776 = vmatpush2.msra.mxu0 0.0
    %777 = vmatprep.subr.mxu0 0.0
    %778 = vmatpush2.msra.mxu0 0.0
    %779 = vmatprep.subr.mxu0 0.0
    %780 = vmatpush2.msra.mxu0 0.0
    %781 = vmatprep.mubr.f32.mxu0 0.0
    %782 = vmatmul.mubr.f32.gmra.mxu0 %v715
    %v783 = vpop.f32.mrf.mxu0
    %v784 = vadd.f32 %v706, %v783
    %v785 = vpop.f32.mrf.mxu0
    %v786 = vadd.f32 %v710, %v785
    %787 = vdwg.mxu0
    %v790 = vcombine.low %v784, %v786
    %v792 = vunpack.c.l.s4 1983009808
    %v793 = vunpack.c.0.s8 %v792
    %v794 = vlaneseq
    %v795 = vshrl.u32 %v794, 7
    %v796 = vsub.s32 %v793, %v795
    %v797 = vrot.slane %v790, %v796
    %799 = vst [vmem:[%s9 + $0x8] sm:$0xf] %v797
    %s800 = scalar_lea.vmem [#allocation6], 192
    %v801 = vld [vmem:[%s800] sm:$0xff]
    %v802 = vld [vmem:[%s800 + $0x8] sm:$0xff]
    %v803 = vld [vmem:[%s800 + $0x10] sm:$0xff]
    %v804 = vld [vmem:[%s800 + $0x18] sm:$0xff]
    %v805 = vld [vmem:[%s800 + $0x20] sm:$0xff]
    %v806 = vld [vmem:[%s800 + $0x28] sm:$0xff]
    %v807 = vld [vmem:[%s800 + $0x30] sm:$0xff]
    %v808 = vld [vmem:[%s800 + $0x38] sm:$0xff]
    %s809 = scalar_lea.vmem %s8, 6
    %v810 = vld [vmem:[%s809] sm:$0x3]
    %v812 = vlaneseq
    %v813 = vshrl.u32 %v812, 7
    %v814 = vsub.s32 0, %v813
    %v815 = vrot.slane %v810, %v814
    %v816 = vlaneseq
    %v817 = vshrl.u32 %v816, 7
    %v818 = vsub.s32 1, %v817
    %v819 = vrot.slane %v810, %v818
    %v823 = vsel %vm496, %v472, 0
    %825 = vmatprep.subr.mxu0 0.0
    %826 = vmatpush1.msra.mxu0 0.0
    %827 = vmatprep.subr.mxu0 0.0
    %828 = vmatpush1.msra.mxu0 0.0
    %829 = vmatprep.subr.mxu0 0.0
    %830 = vmatpush1.msra.mxu0 0.0
    %831 = vmatprep.subr.mxu0 0.0
    %832 = vmatpush1.msra.mxu0 0.0
    %833 = vmatprep.subr.mxu0 0.0
    %834 = vmatpush1.msra.mxu0 0.0
    %835 = vmatprep.subr.mxu0 0.0
    %836 = vmatpush1.msra.mxu0 0.0
    %837 = vmatprep.subr.mxu0 0.0
    %838 = vmatpush1.msra.mxu0 0.0
    %839 = vmatprep.subr.mxu0 0.0
    %840 = vmatpush1.msra.mxu0 0.0
    %841 = vmatprep.subr.mxu0 0.0
    %842 = vmatpush1.msra.mxu0 0.0
    %843 = vmatprep.subr.mxu0 0.0
    %844 = vmatpush1.msra.mxu0 0.0
    %845 = vmatprep.subr.mxu0 0.0
    %846 = vmatpush1.msra.mxu0 0.0
    %847 = vmatprep.subr.mxu0 0.0
    %848 = vmatpush1.msra.mxu0 0.0
    %849 = vmatprep.subr.mxu0 %v808
    %850 = vmatpush1.msra.mxu0 %v807
    %851 = vmatprep.subr.mxu0 %v806
    %852 = vmatpush1.msra.mxu0 %v805
    %853 = vmatprep.subr.mxu0 %v804
    %854 = vmatpush1.msra.mxu0 %v803
    %855 = vmatprep.subr.mxu0 %v802
    %856 = vmatpush1.msra.mxu0 %v801
    %857 = vmatprep.subr.mxu0 0.0
    %858 = vmatpush2.msra.mxu0 0.0
    %859 = vmatprep.subr.mxu0 0.0
    %860 = vmatpush2.msra.mxu0 0.0
    %861 = vmatprep.subr.mxu0 0.0
    %862 = vmatpush2.msra.mxu0 0.0
    %863 = vmatprep.subr.mxu0 0.0
    %864 = vmatpush2.msra.mxu0 0.0
    %865 = vmatprep.subr.mxu0 0.0
    %866 = vmatpush2.msra.mxu0 0.0
    %867 = vmatprep.subr.mxu0 0.0
    %868 = vmatpush2.msra.mxu0 0.0
    %869 = vmatprep.subr.mxu0 0.0
    %870 = vmatpush2.msra.mxu0 0.0
    %871 = vmatprep.subr.mxu0 0.0
    %872 = vmatpush2.msra.mxu0 0.0
    %873 = vmatprep.subr.mxu0 0.0
    %874 = vmatpush2.msra.mxu0 0.0
    %875 = vmatprep.subr.mxu0 0.0
    %876 = vmatpush2.msra.mxu0 0.0
    %877 = vmatprep.subr.mxu0 0.0
    %878 = vmatpush2.msra.mxu0 0.0
    %879 = vmatprep.subr.mxu0 0.0
    %880 = vmatpush2.msra.mxu0 0.0
    %881 = vmatprep.subr.mxu0 0.0
    %882 = vmatpush2.msra.mxu0 0.0
    %883 = vmatprep.subr.mxu0 0.0
    %884 = vmatpush2.msra.mxu0 0.0
    %885 = vmatprep.subr.mxu0 0.0
    %886 = vmatpush2.msra.mxu0 0.0
    %887 = vmatprep.subr.mxu0 0.0
    %888 = vmatpush2.msra.mxu0 0.0
    %889 = vmatprep.mubr.f32.mxu0 0.0
    %890 = vmatmul.mubr.f32.gmra.mxu0 %v823
    %v891 = vpop.f32.mrf.mxu0
    %v892 = vadd.f32 %v815, %v891
    %v893 = vpop.f32.mrf.mxu0
    %v894 = vadd.f32 %v819, %v893
    %895 = vdwg.mxu0
    %v898 = vcombine.low %v892, %v894
    %v900 = vunpack.c.l.s4 1983009808
    %v901 = vunpack.c.0.s8 %v900
    %v902 = vlaneseq
    %v903 = vshrl.u32 %v902, 7
    %v904 = vsub.s32 %v901, %v903
    %v905 = vrot.slane %v898, %v904
    %907 = vst [vmem:[%s9 + $0xc] sm:$0xf] %v905
    %s908 = scalar_lea.vmem [#allocation6], 256
    %v909 = vld [vmem:[%s908] sm:$0xff]
    %v910 = vld [vmem:[%s908 + $0x8] sm:$0xff]
    %v911 = vld [vmem:[%s908 + $0x10] sm:$0xff]
    %v912 = vld [vmem:[%s908 + $0x18] sm:$0xff]
    %v913 = vld [vmem:[%s908 + $0x20] sm:$0xff]
    %v914 = vld [vmem:[%s908 + $0x28] sm:$0xff]
    %v915 = vld [vmem:[%s908 + $0x30] sm:$0xff]
    %v916 = vld [vmem:[%s908 + $0x38] sm:$0xff]
    %s917 = scalar_lea.vmem %s8, 8
    %v918 = vld [vmem:[%s917] sm:$0x3]
    %v920 = vlaneseq
    %v921 = vshrl.u32 %v920, 7
    %v922 = vsub.s32 0, %v921
    %v923 = vrot.slane %v918, %v922
    %v924 = vlaneseq
    %v925 = vshrl.u32 %v924, 7
    %v926 = vsub.s32 1, %v925
    %v927 = vrot.slane %v918, %v926
    %930 = vrot.lane.b32.xlu0 %v472, 96
    %v931 = vpop.permute.xlu0 %930
    %v932 = vsel %vm496, %v931, 0
    %934 = vmatprep.subr.mxu0 0.0
    %935 = vmatpush1.msra.mxu0 0.0
    %936 = vmatprep.subr.mxu0 0.0
    %937 = vmatpush1.msra.mxu0 0.0
    %938 = vmatprep.subr.mxu0 0.0
    %939 = vmatpush1.msra.mxu0 0.0
    %940 = vmatprep.subr.mxu0 0.0
    %941 = vmatpush1.msra.mxu0 0.0
    %942 = vmatprep.subr.mxu0 0.0
    %943 = vmatpush1.msra.mxu0 0.0
    %944 = vmatprep.subr.mxu0 0.0
    %945 = vmatpush1.msra.mxu0 0.0
    %946 = vmatprep.subr.mxu0 0.0
    %947 = vmatpush1.msra.mxu0 0.0
    %948 = vmatprep.subr.mxu0 0.0
    %949 = vmatpush1.msra.mxu0 0.0
    %950 = vmatprep.subr.mxu0 0.0
    %951 = vmatpush1.msra.mxu0 0.0
    %952 = vmatprep.subr.mxu0 0.0
    %953 = vmatpush1.msra.mxu0 0.0
    %954 = vmatprep.subr.mxu0 0.0
    %955 = vmatpush1.msra.mxu0 0.0
    %956 = vmatprep.subr.mxu0 0.0
    %957 = vmatpush1.msra.mxu0 0.0
    %958 = vmatprep.subr.mxu0 %v916
    %959 = vmatpush1.msra.mxu0 %v915
    %960 = vmatprep.subr.mxu0 %v914
    %961 = vmatpush1.msra.mxu0 %v913
    %962 = vmatprep.subr.mxu0 %v912
    %963 = vmatpush1.msra.mxu0 %v911
    %964 = vmatprep.subr.mxu0 %v910
    %965 = vmatpush1.msra.mxu0 %v909
    %966 = vmatprep.subr.mxu0 0.0
    %967 = vmatpush2.msra.mxu0 0.0
    %968 = vmatprep.subr.mxu0 0.0
    %969 = vmatpush2.msra.mxu0 0.0
    %970 = vmatprep.subr.mxu0 0.0
    %971 = vmatpush2.msra.mxu0 0.0
    %972 = vmatprep.subr.mxu0 0.0
    %973 = vmatpush2.msra.mxu0 0.0
    %974 = vmatprep.subr.mxu0 0.0
    %975 = vmatpush2.msra.mxu0 0.0
    %976 = vmatprep.subr.mxu0 0.0
    %977 = vmatpush2.msra.mxu0 0.0
    %978 = vmatprep.subr.mxu0 0.0
    %979 = vmatpush2.msra.mxu0 0.0
    %980 = vmatprep.subr.mxu0 0.0
    %981 = vmatpush2.msra.mxu0 0.0
    %982 = vmatprep.subr.mxu0 0.0
    %983 = vmatpush2.msra.mxu0 0.0
    %984 = vmatprep.subr.mxu0 0.0
    %985 = vmatpush2.msra.mxu0 0.0
    %986 = vmatprep.subr.mxu0 0.0
    %987 = vmatpush2.msra.mxu0 0.0
    %988 = vmatprep.subr.mxu0 0.0
    %989 = vmatpush2.msra.mxu0 0.0
    %990 = vmatprep.subr.mxu0 0.0
    %991 = vmatpush2.msra.mxu0 0.0
    %992 = vmatprep.subr.mxu0 0.0
    %993 = vmatpush2.msra.mxu0 0.0
    %994 = vmatprep.subr.mxu0 0.0
    %995 = vmatpush2.msra.mxu0 0.0
    %996 = vmatprep.subr.mxu0 0.0
    %997 = vmatpush2.msra.mxu0 0.0
    %998 = vmatprep.mubr.f32.mxu0 0.0
    %999 = vmatmul.mubr.f32.gmra.mxu0 %v932
    %v1000 = vpop.f32.mrf.mxu0
    %v1001 = vadd.f32 %v923, %v1000
    %v1002 = vpop.f32.mrf.mxu0
    %v1003 = vadd.f32 %v927, %v1002
    %1004 = vdwg.mxu0
    %v1007 = vcombine.low %v1001, %v1003
    %v1009 = vunpack.c.l.s4 1983009808
    %v1010 = vunpack.c.0.s8 %v1009
    %v1011 = vlaneseq
    %v1012 = vshrl.u32 %v1011, 7
    %v1013 = vsub.s32 %v1010, %v1012
    %v1014 = vrot.slane %v1007, %v1013
    %1016 = vst [vmem:[%s9 + $0x10] sm:$0xf] %v1014
    %s1017 = scalar_lea.vmem [#allocation6], 320
    %v1018 = vld [vmem:[%s1017] sm:$0xff]
    %v1019 = vld [vmem:[%s1017 + $0x8] sm:$0xff]
    %v1020 = vld [vmem:[%s1017 + $0x10] sm:$0xff]
    %v1021 = vld [vmem:[%s1017 + $0x18] sm:$0xff]
    %v1022 = vld [vmem:[%s1017 + $0x20] sm:$0xff]
    %v1023 = vld [vmem:[%s1017 + $0x28] sm:$0xff]
    %v1024 = vld [vmem:[%s1017 + $0x30] sm:$0xff]
    %v1025 = vld [vmem:[%s1017 + $0x38] sm:$0xff]
    %s1026 = scalar_lea.vmem %s8, 10
    %v1027 = vld [vmem:[%s1026] sm:$0x3]
    %v1029 = vlaneseq
    %v1030 = vshrl.u32 %v1029, 7
    %v1031 = vsub.s32 0, %v1030
    %v1032 = vrot.slane %v1027, %v1031
    %v1033 = vlaneseq
    %v1034 = vshrl.u32 %v1033, 7
    %v1035 = vsub.s32 1, %v1034
    %v1036 = vrot.slane %v1027, %v1035
    %1039 = vrot.lane.b32.xlu0 %v472, 64
    %v1040 = vpop.permute.xlu0 %1039
    %v1041 = vsel %vm496, %v1040, 0
    %1043 = vmatprep.subr.mxu0 0.0
    %1044 = vmatpush1.msra.mxu0 0.0
    %1045 = vmatprep.subr.mxu0 0.0
    %1046 = vmatpush1.msra.mxu0 0.0
    %1047 = vmatprep.subr.mxu0 0.0
    %1048 = vmatpush1.msra.mxu0 0.0
    %1049 = vmatprep.subr.mxu0 0.0
    %1050 = vmatpush1.msra.mxu0 0.0
    %1051 = vmatprep.subr.mxu0 0.0
    %1052 = vmatpush1.msra.mxu0 0.0
    %1053 = vmatprep.subr.mxu0 0.0
    %1054 = vmatpush1.msra.mxu0 0.0
    %1055 = vmatprep.subr.mxu0 0.0
    %1056 = vmatpush1.msra.mxu0 0.0
    %1057 = vmatprep.subr.mxu0 0.0
    %1058 = vmatpush1.msra.mxu0 0.0
    %1059 = vmatprep.subr.mxu0 0.0
    %1060 = vmatpush1.msra.mxu0 0.0
    %1061 = vmatprep.subr.mxu0 0.0
    %1062 = vmatpush1.msra.mxu0 0.0
    %1063 = vmatprep.subr.mxu0 0.0
    %1064 = vmatpush1.msra.mxu0 0.0
    %1065 = vmatprep.subr.mxu0 0.0
    %1066 = vmatpush1.msra.mxu0 0.0
    %1067 = vmatprep.subr.mxu0 %v1025
    %1068 = vmatpush1.msra.mxu0 %v1024
    %1069 = vmatprep.subr.mxu0 %v1023
    %1070 = vmatpush1.msra.mxu0 %v1022
    %1071 = vmatprep.subr.mxu0 %v1021
    %1072 = vmatpush1.msra.mxu0 %v1020
    %1073 = vmatprep.subr.mxu0 %v1019
    %1074 = vmatpush1.msra.mxu0 %v1018
    %1075 = vmatprep.subr.mxu0 0.0
    %1076 = vmatpush2.msra.mxu0 0.0
    %1077 = vmatprep.subr.mxu0 0.0
    %1078 = vmatpush2.msra.mxu0 0.0
    %1079 = vmatprep.subr.mxu0 0.0
    %1080 = vmatpush2.msra.mxu0 0.0
    %1081 = vmatprep.subr.mxu0 0.0
    %1082 = vmatpush2.msra.mxu0 0.0
    %1083 = vmatprep.subr.mxu0 0.0
    %1084 = vmatpush2.msra.mxu0 0.0
    %1085 = vmatprep.subr.mxu0 0.0
    %1086 = vmatpush2.msra.mxu0 0.0
    %1087 = vmatprep.subr.mxu0 0.0
    %1088 = vmatpush2.msra.mxu0 0.0
    %1089 = vmatprep.subr.mxu0 0.0
    %1090 = vmatpush2.msra.mxu0 0.0
    %1091 = vmatprep.subr.mxu0 0.0
    %1092 = vmatpush2.msra.mxu0 0.0
    %1093 = vmatprep.subr.mxu0 0.0
    %1094 = vmatpush2.msra.mxu0 0.0
    %1095 = vmatprep.subr.mxu0 0.0
    %1096 = vmatpush2.msra.mxu0 0.0
    %1097 = vmatprep.subr.mxu0 0.0
    %1098 = vmatpush2.msra.mxu0 0.0
    %1099 = vmatprep.subr.mxu0 0.0
    %1100 = vmatpush2.msra.mxu0 0.0
    %1101 = vmatprep.subr.mxu0 0.0
    %1102 = vmatpush2.msra.mxu0 0.0
    %1103 = vmatprep.subr.mxu0 0.0
    %1104 = vmatpush2.msra.mxu0 0.0
    %1105 = vmatprep.subr.mxu0 0.0
    %1106 = vmatpush2.msra.mxu0 0.0
    %1107 = vmatprep.mubr.f32.mxu0 0.0
    %1108 = vmatmul.mubr.f32.gmra.mxu0 %v1041
    %v1109 = vpop.f32.mrf.mxu0
    %v1110 = vadd.f32 %v1032, %v1109
    %v1111 = vpop.f32.mrf.mxu0
    %v1112 = vadd.f32 %v1036, %v1111
    %1113 = vdwg.mxu0
    %v1116 = vcombine.low %v1110, %v1112
    %v1118 = vunpack.c.l.s4 1983009808
    %v1119 = vunpack.c.0.s8 %v1118
    %v1120 = vlaneseq
    %v1121 = vshrl.u32 %v1120, 7
    %v1122 = vsub.s32 %v1119, %v1121
    %v1123 = vrot.slane %v1116, %v1122
    %1125 = vst [vmem:[%s9 + $0x14] sm:$0xf] %v1123
    %s1126 = scalar_lea.vmem [#allocation6], 384
    %v1127 = vld [vmem:[%s1126] sm:$0xff]
    %v1128 = vld [vmem:[%s1126 + $0x8] sm:$0xff]
    %v1129 = vld [vmem:[%s1126 + $0x10] sm:$0xff]
    %v1130 = vld [vmem:[%s1126 + $0x18] sm:$0xff]
    %v1131 = vld [vmem:[%s1126 + $0x20] sm:$0xff]
    %v1132 = vld [vmem:[%s1126 + $0x28] sm:$0xff]
    %v1133 = vld [vmem:[%s1126 + $0x30] sm:$0xff]
    %v1134 = vld [vmem:[%s1126 + $0x38] sm:$0xff]
    %s1135 = scalar_lea.vmem %s8, 12
    %v1136 = vld [vmem:[%s1135] sm:$0x3]
    %v1138 = vlaneseq
    %v1139 = vshrl.u32 %v1138, 7
    %v1140 = vsub.s32 0, %v1139
    %v1141 = vrot.slane %v1136, %v1140
    %v1142 = vlaneseq
    %v1143 = vshrl.u32 %v1142, 7
    %v1144 = vsub.s32 1, %v1143
    %v1145 = vrot.slane %v1136, %v1144
    %1148 = vrot.lane.b32.xlu0 %v472, 32
    %v1149 = vpop.permute.xlu0 %1148
    %v1150 = vsel %vm496, %v1149, 0
    %1152 = vmatprep.subr.mxu0 0.0
    %1153 = vmatpush1.msra.mxu0 0.0
    %1154 = vmatprep.subr.mxu0 0.0
    %1155 = vmatpush1.msra.mxu0 0.0
    %1156 = vmatprep.subr.mxu0 0.0
    %1157 = vmatpush1.msra.mxu0 0.0
    %1158 = vmatprep.subr.mxu0 0.0
    %1159 = vmatpush1.msra.mxu0 0.0
    %1160 = vmatprep.subr.mxu0 0.0
    %1161 = vmatpush1.msra.mxu0 0.0
    %1162 = vmatprep.subr.mxu0 0.0
    %1163 = vmatpush1.msra.mxu0 0.0
    %1164 = vmatprep.subr.mxu0 0.0
    %1165 = vmatpush1.msra.mxu0 0.0
    %1166 = vmatprep.subr.mxu0 0.0
    %1167 = vmatpush1.msra.mxu0 0.0
    %1168 = vmatprep.subr.mxu0 0.0
    %1169 = vmatpush1.msra.mxu0 0.0
    %1170 = vmatprep.subr.mxu0 0.0
    %1171 = vmatpush1.msra.mxu0 0.0
    %1172 = vmatprep.subr.mxu0 0.0
    %1173 = vmatpush1.msra.mxu0 0.0
    %1174 = vmatprep.subr.mxu0 0.0
    %1175 = vmatpush1.msra.mxu0 0.0
    %1176 = vmatprep.subr.mxu0 %v1134
    %1177 = vmatpush1.msra.mxu0 %v1133
    %1178 = vmatprep.subr.mxu0 %v1132
    %1179 = vmatpush1.msra.mxu0 %v1131
    %1180 = vmatprep.subr.mxu0 %v1130
    %1181 = vmatpush1.msra.mxu0 %v1129
    %1182 = vmatprep.subr.mxu0 %v1128
    %1183 = vmatpush1.msra.mxu0 %v1127
    %1184 = vmatprep.subr.mxu0 0.0
    %1185 = vmatpush2.msra.mxu0 0.0
    %1186 = vmatprep.subr.mxu0 0.0
    %1187 = vmatpush2.msra.mxu0 0.0
    %1188 = vmatprep.subr.mxu0 0.0
    %1189 = vmatpush2.msra.mxu0 0.0
    %1190 = vmatprep.subr.mxu0 0.0
    %1191 = vmatpush2.msra.mxu0 0.0
    %1192 = vmatprep.subr.mxu0 0.0
    %1193 = vmatpush2.msra.mxu0 0.0
    %1194 = vmatprep.subr.mxu0 0.0
    %1195 = vmatpush2.msra.mxu0 0.0
    %1196 = vmatprep.subr.mxu0 0.0
    %1197 = vmatpush2.msra.mxu0 0.0
    %1198 = vmatprep.subr.mxu0 0.0
    %1199 = vmatpush2.msra.mxu0 0.0
    %1200 = vmatprep.subr.mxu0 0.0
    %1201 = vmatpush2.msra.mxu0 0.0
    %1202 = vmatprep.subr.mxu0 0.0
    %1203 = vmatpush2.msra.mxu0 0.0
    %1204 = vmatprep.subr.mxu0 0.0
    %1205 = vmatpush2.msra.mxu0 0.0
    %1206 = vmatprep.subr.mxu0 0.0
    %1207 = vmatpush2.msra.mxu0 0.0
    %1208 = vmatprep.subr.mxu0 0.0
    %1209 = vmatpush2.msra.mxu0 0.0
    %1210 = vmatprep.subr.mxu0 0.0
    %1211 = vmatpush2.msra.mxu0 0.0
    %1212 = vmatprep.subr.mxu0 0.0
    %1213 = vmatpush2.msra.mxu0 0.0
    %1214 = vmatprep.subr.mxu0 0.0
    %1215 = vmatpush2.msra.mxu0 0.0
    %1216 = vmatprep.mubr.f32.mxu0 0.0
    %1217 = vmatmul.mubr.f32.gmra.mxu0 %v1150
    %v1218 = vpop.f32.mrf.mxu0
    %v1219 = vadd.f32 %v1141, %v1218
    %v1220 = vpop.f32.mrf.mxu0
    %v1221 = vadd.f32 %v1145, %v1220
    %1222 = vdwg.mxu0
    %v1225 = vcombine.low %v1219, %v1221
    %v1227 = vunpack.c.l.s4 1983009808
    %v1228 = vunpack.c.0.s8 %v1227
    %v1229 = vlaneseq
    %v1230 = vshrl.u32 %v1229, 7
    %v1231 = vsub.s32 %v1228, %v1230
    %v1232 = vrot.slane %v1225, %v1231
    %1234 = vst [vmem:[%s9 + $0x18] sm:$0xf] %v1232
    // Predicated region
    $region50: #{npc_gnn_film_forward.2} parent=1 // pred_check
      _
    $region51: #{npc_gnn_film_forward.2} parent=1 // pred_check_branch
      %1236 = sbr.rel (0) target = $region53
    $region52: #{npc_gnn_film_forward.2} parent=1 // pred_region
      _
    $region53: #{npc_gnn_film_forward.2} parent=1 // pred_fallthru
      _
    // Predicated region
    $region54: #{npc_gnn_film_forward.2} parent=1 // pred_check
      _
    $region55: #{npc_gnn_film_forward.2} parent=1 // pred_check_branch
      %1238 = sbr.rel (0) target = $region57
    $region56: #{npc_gnn_film_forward.2} parent=1 // pred_region
      _
    $region57: #{npc_gnn_film_forward.2} parent=1 // pred_fallthru
      _
    %1239 = vsyncpa [#allocation3], 1
    %1240 = vsyncpa [#allocation5], 1

// kernel: npc_gnn_film_forward.3
$region0: #{npc_gnn_film_forward.3}
  #allocation0 [shape = 'u32[]', space=smem, size = 0x4, offset = 0x4, fixed_abs, tag = 'smem constant byte address 0x4 - core index']
  #allocation1 [shape = 'u32[144,128]{1,0:T(1,128)}', space=vmem, size = 0x12000, scoped, tag = 'internal scratch']
  %s0 = inlined_call_operand.vmem [shape: f32[7,22,128], index: 0, kind: input, shape index: {}]
  %s1 = inlined_call_operand.vmem [shape: f32[7,256,2], index: 1, kind: input, shape index: {}]
  %s2 = inlined_call_operand.vmem [shape: f32[7,9,256], index: 2, kind: input, shape index: {}]
  %s3 = inlined_call_operand.vmem [shape: f32[2,12,8], index: 3, kind: input, shape index: {}]
  %s4 = inlined_call_operand.vmem [shape: bf16[7,128,256], index: 4, kind: input, shape index: {}]
  %s5 = inlined_call_operand.vmem [shape: bf16[7,11,128], index: 5, kind: input, shape index: {}]
  %s6 = inlined_call_operand.vmem [shape: f32[7,128,7], index: 6, kind: input, shape index: {}]
  %s7 = inlined_call_operand.vmem [shape: f32[7,8,22], index: 7, kind: input, shape index: {}]
  %s8 = inlined_call_operand.vmem [shape: f32[7,17,256], index: 8, kind: output, shape index: {}]
  %s9 = sld [smem:[#allocation0]]
  $region65: #{npc_gnn_film_forward.3} parent=0
    _
  %s11 = ssub.s32 1, %s9
  %s12 = scalar_select 0, %s11, %s9
  loop: start=0, step=1, limit=9
  $region2: #{npc_gnn_film_forward.3} parent=0 // loop_pre_header
    _
  $region3: #{npc_gnn_film_forward.3} parent=0 // loop_header
    %s14 = sphi 0, %s18
    %p15 = scmp.ge.s32.totalorder %s14, 9
    %s24 = sphi 0, %s26
    %s27 = sphi 0, %s24
    %s28 = sphi 0, %s27
    %s44 = sphi 0, %s28
    %s50 = sphi 0, %s52
    %s53 = sphi 0, %s50
    %s54 = sphi 0, %s53
    %s70 = sphi 0, %s54
    %s76 = sphi 0, %s78
    %s79 = sphi 0, %s76
    %s80 = sphi 0, %s79
    %s96 = sphi 0, %s80
    %s100 = sphi 0, %s100
    %s102 = sphi 0, %s100
    %s103 = sphi 0, %s102
    %s117 = sphi 0, %s103
    %s123 = sphi 0, %s125
    %s126 = sphi 0, %s123
    %s127 = sphi 0, %s126
    %s143 = sphi 0, %s127
    %s149 = sphi 0, %s151
    %s152 = sphi 0, %s149
    %s153 = sphi 0, %s152
    %s169 = sphi 0, %s153
    %s175 = sphi 0, %s177
    %s178 = sphi 0, %s175
    %s179 = sphi 0, %s178
    %s195 = sphi 0, %s179
    %s201 = sphi 0, %s203
    %s204 = sphi 0, %s201
    %s205 = sphi 0, %s204
    %s221 = sphi 0, %s205
    %s227 = sphi 0, %s229
    %s230 = sphi 0, %s227
    %s231 = sphi 0, %s230
    %s247 = sphi 0, %s231
  $region4: #{npc_gnn_film_forward.3} parent=0 // loop_header_branch
    %17 = sbr.rel (%p15) target = $region8
  $region5: #{npc_gnn_film_forward.3} parent=0 // loop_body
    %s19 = ssub.s32 %s14, 1
    %s20 = ssub.s32 %s14, 2
    %s21 = sadd.s32 %s14, 1
    %s22 = ssub.s32 %s14, %s21
    %p23 = scmp.eq.s32.totalorder %s22, 0
    %s25 = sadd.s32 %s24, 1
    %s26 = scalar_select %p23, %s24, %s25
    %p29 = pneg %p23
    %p30 = scmp.eq.s32.totalorder %s14, 6
    %p31 = por %p29, %p30
    %p32 = scmp.ne.s32.totalorder %s24, %s27
    %p33 = scmp.eq.s32.totalorder %s14, 0
    %p34 = por %p32, %p33
    %p35 = scmp.ne.s32.totalorder %s24, %s27
    %p36 = scmp.eq.s32.totalorder %s19, 6
    %p37 = por %p35, %p36
    %p38 = scmp.ne.s32.totalorder %s27, %s28
    %p39 = scmp.eq.s32.totalorder %s19, 0
    %p40 = por %p38, %p39
    %p41 = scmp.ne.s32.totalorder %s27, %s28
    %p42 = scmp.eq.s32.totalorder %s20, 6
    %p43 = por %p41, %p42
    %p45 = scmp.ne.s32.totalorder %s28, %s44
    %p46 = scmp.eq.s32.totalorder %s20, 0
    %p47 = por %p45, %p46
    %s48 = ssub.s32 %s14, %s21
    %p49 = scmp.eq.s32.totalorder %s48, 0
    %s51 = sadd.s32 %s50, 1
    %s52 = scalar_select %p49, %s50, %s51
    %p55 = pneg %p49
    %p56 = scmp.eq.s32.totalorder %s14, 6
    %p57 = por %p55, %p56
    %p58 = scmp.ne.s32.totalorder %s50, %s53
    %p59 = scmp.eq.s32.totalorder %s14, 0
    %p60 = por %p58, %p59
    %p61 = scmp.ne.s32.totalorder %s50, %s53
    %p62 = scmp.eq.s32.totalorder %s19, 6
    %p63 = por %p61, %p62
    %p64 = scmp.ne.s32.totalorder %s53, %s54
    %p65 = scmp.eq.s32.totalorder %s19, 0
    %p66 = por %p64, %p65
    %p67 = scmp.ne.s32.totalorder %s53, %s54
    %p68 = scmp.eq.s32.totalorder %s20, 6
    %p69 = por %p67, %p68
    %p71 = scmp.ne.s32.totalorder %s54, %s70
    %p72 = scmp.eq.s32.totalorder %s20, 0
    %p73 = por %p71, %p72
    %s74 = ssub.s32 %s14, %s21
    %p75 = scmp.eq.s32.totalorder %s74, 0
    %s77 = sadd.s32 %s76, 1
    %s78 = scalar_select %p75, %s76, %s77
    %p81 = pneg %p75
    %p82 = scmp.eq.s32.totalorder %s14, 6
    %p83 = por %p81, %p82
    %p84 = scmp.ne.s32.totalorder %s76, %s79
    %p85 = scmp.eq.s32.totalorder %s14, 0
    %p86 = por %p84, %p85
    %p87 = scmp.ne.s32.totalorder %s76, %s79
    %p88 = scmp.eq.s32.totalorder %s19, 6
    %p89 = por %p87, %p88
    %p90 = scmp.ne.s32.totalorder %s79, %s80
    %p91 = scmp.eq.s32.totalorder %s19, 0
    %p92 = por %p90, %p91
    %p93 = scmp.ne.s32.totalorder %s79, %s80
    %p94 = scmp.eq.s32.totalorder %s20, 6
    %p95 = por %p93, %p94
    %p97 = scmp.ne.s32.totalorder %s80, %s96
    %p98 = scmp.eq.s32.totalorder %s20, 0
    %p99 = por %p97, %p98
    %s101 = sadd.s32 %s100, 1
    %p104 = scmp.eq.s32.totalorder %s14, 6
    %p105 = scmp.ne.s32.totalorder %s100, %s102
    %p106 = scmp.eq.s32.totalorder %s14, 0
    %p107 = por %p105, %p106
    %p108 = scmp.ne.s32.totalorder %s100, %s102
    %p109 = scmp.eq.s32.totalorder %s19, 6
    %p110 = por %p108, %p109
    %p111 = scmp.ne.s32.totalorder %s102, %s103
    %p112 = scmp.eq.s32.totalorder %s19, 0
    %p113 = por %p111, %p112
    %p114 = scmp.ne.s32.totalorder %s102, %s103
    %p115 = scmp.eq.s32.totalorder %s20, 6
    %p116 = por %p114, %p115
    %p118 = scmp.ne.s32.totalorder %s103, %s117
    %p119 = scmp.eq.s32.totalorder %s20, 0
    %p120 = por %p118, %p119
    %s121 = ssub.s32 %s14, %s21
    %p122 = scmp.eq.s32.totalorder %s121, 0
    %s124 = sadd.s32 %s123, 1
    %s125 = scalar_select %p122, %s123, %s124
    %p128 = pneg %p122
    %p129 = scmp.eq.s32.totalorder %s14, 6
    %p130 = por %p128, %p129
    %p131 = scmp.ne.s32.totalorder %s123, %s126
    %p132 = scmp.eq.s32.totalorder %s14, 0
    %p133 = por %p131, %p132
    %p134 = scmp.ne.s32.totalorder %s123, %s126
    %p135 = scmp.eq.s32.totalorder %s19, 6
    %p136 = por %p134, %p135
    %p137 = scmp.ne.s32.totalorder %s126, %s127
    %p138 = scmp.eq.s32.totalorder %s19, 0
    %p139 = por %p137, %p138
    %p140 = scmp.ne.s32.totalorder %s126, %s127
    %p141 = scmp.eq.s32.totalorder %s20, 6
    %p142 = por %p140, %p141
    %p144 = scmp.ne.s32.totalorder %s127, %s143
    %p145 = scmp.eq.s32.totalorder %s20, 0
    %p146 = por %p144, %p145
    %s147 = ssub.s32 %s14, %s21
    %p148 = scmp.eq.s32.totalorder %s147, 0
    %s150 = sadd.s32 %s149, 1
    %s151 = scalar_select %p148, %s149, %s150
    %p154 = pneg %p148
    %p155 = scmp.eq.s32.totalorder %s14, 6
    %p156 = por %p154, %p155
    %p157 = scmp.ne.s32.totalorder %s149, %s152
    %p158 = scmp.eq.s32.totalorder %s14, 0
    %p159 = por %p157, %p158
    %p160 = scmp.ne.s32.totalorder %s149, %s152
    %p161 = scmp.eq.s32.totalorder %s19, 6
    %p162 = por %p160, %p161
    %p163 = scmp.ne.s32.totalorder %s152, %s153
    %p164 = scmp.eq.s32.totalorder %s19, 0
    %p165 = por %p163, %p164
    %p166 = scmp.ne.s32.totalorder %s152, %s153
    %p167 = scmp.eq.s32.totalorder %s20, 6
    %p168 = por %p166, %p167
    %p170 = scmp.ne.s32.totalorder %s153, %s169
    %p171 = scmp.eq.s32.totalorder %s20, 0
    %p172 = por %p170, %p171
    %s173 = ssub.s32 %s14, %s21
    %p174 = scmp.eq.s32.totalorder %s173, 0
    %s176 = sadd.s32 %s175, 1
    %s177 = scalar_select %p174, %s175, %s176
    %p180 = pneg %p174
    %p181 = scmp.eq.s32.totalorder %s14, 6
    %p182 = por %p180, %p181
    %p183 = scmp.ne.s32.totalorder %s175, %s178
    %p184 = scmp.eq.s32.totalorder %s14, 0
    %p185 = por %p183, %p184
    %p186 = scmp.ne.s32.totalorder %s175, %s178
    %p187 = scmp.eq.s32.totalorder %s19, 6
    %p188 = por %p186, %p187
    %p189 = scmp.ne.s32.totalorder %s178, %s179
    %p190 = scmp.eq.s32.totalorder %s19, 0
    %p191 = por %p189, %p190
    %p192 = scmp.ne.s32.totalorder %s178, %s179
    %p193 = scmp.eq.s32.totalorder %s20, 6
    %p194 = por %p192, %p193
    %p196 = scmp.ne.s32.totalorder %s179, %s195
    %p197 = scmp.eq.s32.totalorder %s20, 0
    %p198 = por %p196, %p197
    %s199 = ssub.s32 %s14, %s21
    %p200 = scmp.eq.s32.totalorder %s199, 0
    %s202 = sadd.s32 %s201, 1
    %s203 = scalar_select %p200, %s201, %s202
    %p206 = pneg %p200
    %p207 = scmp.eq.s32.totalorder %s14, 6
    %p208 = por %p206, %p207
    %p209 = scmp.ne.s32.totalorder %s201, %s204
    %p210 = scmp.eq.s32.totalorder %s14, 0
    %p211 = por %p209, %p210
    %p212 = scmp.ne.s32.totalorder %s201, %s204
    %p213 = scmp.eq.s32.totalorder %s19, 6
    %p214 = por %p212, %p213
    %p215 = scmp.ne.s32.totalorder %s204, %s205
    %p216 = scmp.eq.s32.totalorder %s19, 0
    %p217 = por %p215, %p216
    %p218 = scmp.ne.s32.totalorder %s204, %s205
    %p219 = scmp.eq.s32.totalorder %s20, 6
    %p220 = por %p218, %p219
    %p222 = scmp.ne.s32.totalorder %s205, %s221
    %p223 = scmp.eq.s32.totalorder %s20, 0
    %p224 = por %p222, %p223
    %s225 = ssub.s32 %s14, %s21
    %p226 = scmp.eq.s32.totalorder %s225, 0
    %s228 = sadd.s32 %s227, 1
    %s229 = scalar_select %p226, %s227, %s228
    %p232 = pneg %p226
    %p233 = scmp.eq.s32.totalorder %s14, 6
    %p234 = por %p232, %p233
    %p235 = scmp.ne.s32.totalorder %s227, %s230
    %p236 = scmp.eq.s32.totalorder %s14, 0
    %p237 = por %p235, %p236
    %p238 = scmp.ne.s32.totalorder %s227, %s230
    %p239 = scmp.eq.s32.totalorder %s19, 6
    %p240 = por %p238, %p239
    %p241 = scmp.ne.s32.totalorder %s230, %s231
    %p242 = scmp.eq.s32.totalorder %s19, 0
    %p243 = por %p241, %p242
    %p244 = scmp.ne.s32.totalorder %s230, %s231
    %p245 = scmp.eq.s32.totalorder %s20, 6
    %p246 = por %p244, %p245
    %p248 = scmp.ne.s32.totalorder %s231, %s247
    %p249 = scmp.eq.s32.totalorder %s20, 0
    %p250 = por %p248, %p249
    %p251 = scmp.le.s32.totalorder 1, %s14
    %p252 = scmp.lt.s32.totalorder %s14, 8
    %p253 = pnand %p251, %p252
    %p254 = pneg %p253
    // Predicated region
    $region9: #{npc_gnn_film_forward.3} parent=5 // pred_check
      _
    $region10: #{npc_gnn_film_forward.3} parent=5 // pred_check_branch
      %256 = sbr.rel (%p253) target = $region12
    $region11: #{npc_gnn_film_forward.3} parent=5 // pred_region
      %s257 = ssub.s32 %s14, 1
      // Predicated region
      $region13: #{npc_gnn_film_forward.3} parent=11 // pred_check
        %p258 = pneg %p113
      $region14: #{npc_gnn_film_forward.3} parent=11 // pred_check_branch
        %260 = sbr.rel (%p258) target = $region16
      $region15: #{npc_gnn_film_forward.3} parent=11 // pred_region
        _
      $region16: #{npc_gnn_film_forward.3} parent=11 // pred_fallthru
        _
    $region12: #{npc_gnn_film_forward.3} parent=5 // pred_fallthru
      _
    %p261 = scmp.lt.s32.totalorder %s14, 7
    // Predicated region
    $region17: #{npc_gnn_film_forward.3} parent=5 // pred_check
      %p262 = pneg %p261
    $region18: #{npc_gnn_film_forward.3} parent=5 // pred_check_branch
      %264 = sbr.rel (%p262) target = $region20
    $region19: #{npc_gnn_film_forward.3} parent=5 // pred_region
      // Predicated region
      $region21: #{npc_gnn_film_forward.3} parent=19 // pred_check
        %p265 = pneg %p34
      $region22: #{npc_gnn_film_forward.3} parent=19 // pred_check_branch
        %267 = sbr.rel (%p265) target = $region24
      $region23: #{npc_gnn_film_forward.3} parent=19 // pred_region
        %p268 = scmp.lt.s32.totalorder %s14, 6
        %s269 = scalar_select %p268, %s14, 6
        %s270 = smul.addr %s269, 3
        %s271 = smul.addr %s270, 8
        %s272 = scalar_lea.vmem %s0, %s271
      $region24: #{npc_gnn_film_forward.3} parent=19 // pred_fallthru
        _
      // Predicated region
      $region25: #{npc_gnn_film_forward.3} parent=19 // pred_check
        %p273 = pneg %p60
      $region26: #{npc_gnn_film_forward.3} parent=19 // pred_check_branch
        %275 = sbr.rel (%p273) target = $region28
      $region27: #{npc_gnn_film_forward.3} parent=19 // pred_region
        %p276 = scmp.lt.s32.totalorder %s14, 6
        %s277 = scalar_select %p276, %s14, 6
        %s278 = smul.addr %s277, 32
        %s279 = smul.addr %s278, 8
        %s280 = scalar_lea.vmem %s1, %s279
      $region28: #{npc_gnn_film_forward.3} parent=19 // pred_fallthru
        _
      // Predicated region
      $region29: #{npc_gnn_film_forward.3} parent=19 // pred_check
        %p281 = pneg %p86
      $region30: #{npc_gnn_film_forward.3} parent=19 // pred_check_branch
        %283 = sbr.rel (%p281) target = $region32
      $region31: #{npc_gnn_film_forward.3} parent=19 // pred_region
        %p284 = scmp.lt.s32.totalorder %s14, 6
        %s285 = scalar_select %p284, %s14, 6
        %s286 = smul.addr %s285, 4
        %s287 = smul.addr %s286, 8
        %s288 = scalar_lea.vmem %s2, %s287
      $region32: #{npc_gnn_film_forward.3} parent=19 // pred_fallthru
        _
      // Predicated region
      $region33: #{npc_gnn_film_forward.3} parent=19 // pred_check
        %p289 = pneg %p133
      $region34: #{npc_gnn_film_forward.3} parent=19 // pred_check_branch
        %291 = sbr.rel (%p289) target = $region36
      $region35: #{npc_gnn_film_forward.3} parent=19 // pred_region
        %p292 = scmp.lt.s32.totalorder %s14, 6
        %s293 = scalar_select %p292, %s14, 6
        %s294 = smul.addr %s293, 32
        %s295 = smul.addr %s294, 4
        %s296 = scalar_lea.vmem %s4, %s295
      $region36: #{npc_gnn_film_forward.3} parent=19 // pred_fallthru
        _
      // Predicated region
      $region37: #{npc_gnn_film_forward.3} parent=19 // pred_check
        %p297 = pneg %p159
      $region38: #{npc_gnn_film_forward.3} parent=19 // pred_check_branch
        %299 = sbr.rel (%p297) target = $region40
      $region39: #{npc_gnn_film_forward.3} parent=19 // pred_region
        %p300 = scmp.lt.s32.totalorder %s14, 6
        %s301 = scalar_select %p300, %s14, 6
        %s302 = smul.addr %s301, 2
        %s303 = smul.addr %s302, 4
        %s304 = scalar_lea.vmem %s5, %s303
      $region40: #{npc_gnn_film_forward.3} parent=19 // pred_fallthru
        _
      // Predicated region
      $region41: #{npc_gnn_film_forward.3} parent=19 // pred_check
        %p305 = pneg %p185
      $region42: #{npc_gnn_film_forward.3} parent=19 // pred_check_branch
        %307 = sbr.rel (%p305) target = $region44
      $region43: #{npc_gnn_film_forward.3} parent=19 // pred_region
        %p308 = scmp.lt.s32.totalorder %s14, 6
        %s309 = scalar_select %p308, %s14, 6
        %s310 = smul.addr %s309, 16
        %s311 = smul.addr %s310, 8
        %s312 = scalar_lea.vmem %s6, %s311
      $region44: #{npc_gnn_film_forward.3} parent=19 // pred_fallthru
        _
      // Predicated region
      $region45: #{npc_gnn_film_forward.3} parent=19 // pred_check
        %p313 = pneg %p211
      $region46: #{npc_gnn_film_forward.3} parent=19 // pred_check_branch
        %315 = sbr.rel (%p313) target = $region48
      $region47: #{npc_gnn_film_forward.3} parent=19 // pred_region
        %p316 = scmp.lt.s32.totalorder %s14, 6
        %s317 = scalar_select %p316, %s14, 6
        %s318 = smul.addr %s317, 8
        %s319 = scalar_lea.vmem %s7, %s318
      $region48: #{npc_gnn_film_forward.3} parent=19 // pred_fallthru
        _
    $region20: #{npc_gnn_film_forward.3} parent=5 // pred_fallthru
      _
    %p320 = scmp.le.s32.totalorder 1, %s14
    %p321 = scmp.lt.s32.totalorder %s14, 8
    %p322 = pnand %p320, %p321
    %p323 = pneg %p322
    // Predicated region
    $region49: #{npc_gnn_film_forward.3} parent=5 // pred_check
      _
    $region50: #{npc_gnn_film_forward.3} parent=5 // pred_check_branch
      %325 = sbr.rel (%p322) target = $region52
    $region51: #{npc_gnn_film_forward.3} parent=5 // pred_region
      %s326 = ssub.s32 %s14, 1
      %p327 = scmp.lt.s32.totalorder %s19, 6
      %s328 = scalar_select %p327, %s19, 6
      %s329 = smul.addr %s328, 3
      %s330 = smul.addr %s329, 8
      %s331 = scalar_lea.vmem %s0, %s330
      %p332 = pneg %p40
      %p333 = pneg %p37
      %p334 = scmp.lt.s32.totalorder %s19, 6
      %s335 = scalar_select %p334, %s19, 6
      %s336 = smul.addr %s335, 32
      %s337 = smul.addr %s336, 8
      %s338 = scalar_lea.vmem %s1, %s337
      %p339 = pneg %p66
      %p340 = pneg %p63
      %p341 = scmp.lt.s32.totalorder %s19, 6
      %s342 = scalar_select %p341, %s19, 6
      %s343 = smul.addr %s342, 4
      %s344 = smul.addr %s343, 8
      %s345 = scalar_lea.vmem %s2, %s344
      %p346 = pneg %p92
      %p347 = pneg %p89
      %p348 = pneg %p113
      %p349 = pneg %p110
      %p350 = scmp.lt.s32.totalorder %s19, 6
      %s351 = scalar_select %p350, %s19, 6
      %s352 = smul.addr %s351, 32
      %s353 = smul.addr %s352, 4
      %s354 = scalar_lea.vmem %s4, %s353
      %p355 = pneg %p139
      %p356 = pneg %p136
      %p357 = scmp.lt.s32.totalorder %s19, 6
      %s358 = scalar_select %p357, %s19, 6
      %s359 = smul.addr %s358, 2
      %s360 = smul.addr %s359, 4
      %s361 = scalar_lea.vmem %s5, %s360
      %p362 = pneg %p165
      %p363 = pneg %p162
      %p364 = scmp.lt.s32.totalorder %s19, 6
      %s365 = scalar_select %p364, %s19, 6
      %s366 = smul.addr %s365, 16
      %s367 = smul.addr %s366, 8
      %s368 = scalar_lea.vmem %s6, %s367
      %p369 = pneg %p191
      %p370 = pneg %p188
      %p371 = scmp.lt.s32.totalorder %s19, 6
      %s372 = scalar_select %p371, %s19, 6
      %s373 = smul.addr %s372, 8
      %s374 = scalar_lea.vmem %s7, %s373
      %p375 = pneg %p217
      %p376 = pneg %p214
      %p377 = pneg %p243
      %p378 = pneg %p240
      %p379 = scmp.lt.s32.totalorder %s19, 6
      %s380 = scalar_select %p379, %s19, 6
      %s381 = smul.addr %s380, 6
      %s382 = smul.addr %s381, 8
      %s383 = scalar_lea.vmem %s8, %s382
      %p384 = scmp.lt.s32.totalorder %s19, 6
      %s385 = scalar_select %p384, %s19, 6
      %s386 = smul.addr %s385, 3
      %s387 = smul.addr %s386, 8
      %s388 = scalar_lea.vmem %s0, %s387
      %p389 = scmp.lt.s32.totalorder %s19, 6
      %s390 = scalar_select %p389, %s19, 6
      %s391 = smul.addr %s390, 32
      %s392 = smul.addr %s391, 8
      %s393 = scalar_lea.vmem %s1, %s392
      %p394 = scmp.lt.s32.totalorder %s19, 6
      %s395 = scalar_select %p394, %s19, 6
      %s396 = smul.addr %s395, 4
      %s397 = smul.addr %s396, 8
      %s398 = scalar_lea.vmem %s2, %s397
      %p399 = scmp.lt.s32.totalorder %s19, 6
      %s400 = scalar_select %p399, %s19, 6
      %s401 = smul.addr %s400, 32
      %s402 = smul.addr %s401, 4
      %s403 = scalar_lea.vmem %s4, %s402
      %p404 = scmp.lt.s32.totalorder %s19, 6
      %s405 = scalar_select %p404, %s19, 6
      %s406 = smul.addr %s405, 2
      %s407 = smul.addr %s406, 4
      %s408 = scalar_lea.vmem %s5, %s407
      %p409 = scmp.lt.s32.totalorder %s19, 6
      %s410 = scalar_select %p409, %s19, 6
      %s411 = smul.addr %s410, 16
      %s412 = smul.addr %s411, 8
      %s413 = scalar_lea.vmem %s6, %s412
      %p414 = scmp.lt.s32.totalorder %s19, 6
      %s415 = scalar_select %p414, %s19, 6
      %s416 = smul.addr %s415, 8
      %s417 = scalar_lea.vmem %s7, %s416
      %p418 = scmp.lt.s32.totalorder %s19, 6
      %s419 = scalar_select %p418, %s19, 6
      %s420 = smul.addr %s419, 6
      %s421 = smul.addr %s420, 8
      %s422 = scalar_lea.vmem %s8, %s421
      %v424 = vld [vmem:[%s388] sm:$0x7]
      %v425 = vld [vmem:[%s388 + $0x3] sm:$0x7]
      %v426 = vld [vmem:[%s388 + $0x6] sm:$0xff]
      %v427 = vld [vmem:[%s388 + $0xe] sm:$0xff]
      %v428 = vld [vmem:[%s417] sm:$0xff]
      %430 = vset.pattern.permute.xlu0 0
      %431 = vperm.xlu0 %430, %v428
      %v432 = vpop.permute.xlu0 %431
      %v434 = vlaneseq
      %v435 = vshrl.u32 %v434, 7
      %v436 = vsub.s32 0, %v435
      %v437 = vrot.slane %v424, %v436
      %v438 = vmul.f32 %v432, %v437
      %439 = vset.pattern.permute.xlu0 1
      %440 = vperm.xlu0 %439, %v428
      %v441 = vpop.permute.xlu0 %440
      %v443 = vlaneseq
      %v444 = vshrl.u32 %v443, 7
      %v445 = vsub.s32 1, %v444
      %v446 = vrot.slane %v424, %v445
      %v447 = vmul.f32 %v441, %v446
      %v448 = vadd.f32 %v438, %v447
      %449 = vset.pattern.permute.xlu0 2
      %450 = vperm.xlu0 %449, %v428
      %v451 = vpop.permute.xlu0 %450
      %v453 = vlaneseq
      %v454 = vshrl.u32 %v453, 7
      %v455 = vsub.s32 2, %v454
      %v456 = vrot.slane %v424, %v455
      %v457 = vmul.f32 %v451, %v456
      %v458 = vadd.f32 %v448, %v457
      %459 = vset.pattern.permute.xlu0 3
      %460 = vperm.xlu0 %459, %v428
      %v461 = vpop.permute.xlu0 %460
      %v463 = vadd.f32 %v458, %v461
      %v464 = vmax.f32 %v463, 0.0
      %465 = vset.pattern.permute.xlu0 4
      %466 = vperm.xlu0 %465, %v428
      %v467 = vpop.permute.xlu0 %466
      %v469 = vlaneseq
      %v470 = vshrl.u32 %v469, 7
      %v471 = vsub.s32 0, %v470
      %v472 = vrot.slane %v464, %v471
      %v473 = vmul.f32 %v467, %v472
      %474 = vset.pattern.permute.xlu0 5
      %475 = vperm.xlu0 %474, %v428
      %v476 = vpop.permute.xlu0 %475
      %v478 = vlaneseq
      %v479 = vshrl.u32 %v478, 7
      %v480 = vsub.s32 1, %v479
      %v481 = vrot.slane %v464, %v480
      %v482 = vmul.f32 %v476, %v481
      %v483 = vadd.f32 %v473, %v482
      %484 = vset.pattern.permute.xlu0 6
      %485 = vperm.xlu0 %484, %v428
      %v486 = vpop.permute.xlu0 %485
      %v488 = vlaneseq
      %v489 = vshrl.u32 %v488, 7
      %v490 = vsub.s32 2, %v489
      %v491 = vrot.slane %v464, %v490
      %v492 = vmul.f32 %v486, %v491
      %v493 = vadd.f32 %v483, %v492
      %494 = vset.pattern.permute.xlu0 7
      %495 = vperm.xlu0 %494, %v428
      %v496 = vpop.permute.xlu0 %495
      %v498 = vlaneseq
      %v499 = vshrl.u32 %v498, 7
      %v500 = vsub.s32 3, %v499
      %v501 = vrot.slane %v464, %v500
      %v502 = vmul.f32 %v496, %v501
      %v503 = vadd.f32 %v493, %v502
      %504 = vset.pattern.permute.xlu0 8
      %505 = vperm.xlu0 %504, %v428
      %v506 = vpop.permute.xlu0 %505
      %v508 = vlaneseq
      %v509 = vshrl.u32 %v508, 7
      %v510 = vsub.s32 4, %v509
      %v511 = vrot.slane %v464, %v510
      %v512 = vmul.f32 %v506, %v511
      %v513 = vadd.f32 %v503, %v512
      %514 = vset.pattern.permute.xlu0 9
      %515 = vperm.xlu0 %514, %v428
      %v516 = vpop.permute.xlu0 %515
      %v518 = vlaneseq
      %v519 = vshrl.u32 %v518, 7
      %v520 = vsub.s32 5, %v519
      %v521 = vrot.slane %v464, %v520
      %v522 = vmul.f32 %v516, %v521
      %v523 = vadd.f32 %v513, %v522
      %524 = vset.pattern.permute.xlu0 10
      %525 = vperm.xlu0 %524, %v428
      %v526 = vpop.permute.xlu0 %525
      %v528 = vlaneseq
      %v529 = vshrl.u32 %v528, 7
      %v530 = vsub.s32 6, %v529
      %v531 = vrot.slane %v464, %v530
      %v532 = vmul.f32 %v526, %v531
      %v533 = vadd.f32 %v523, %v532
      %534 = vset.pattern.permute.xlu0 11
      %535 = vperm.xlu0 %534, %v428
      %v536 = vpop.permute.xlu0 %535
      %v538 = vlaneseq
      %v539 = vshrl.u32 %v538, 7
      %v540 = vsub.s32 7, %v539
      %v541 = vrot.slane %v464, %v540
      %v542 = vmul.f32 %v536, %v541
      %v543 = vadd.f32 %v533, %v542
      %544 = vset.pattern.permute.xlu0 12
      %545 = vperm.xlu0 %544, %v428
      %v546 = vpop.permute.xlu0 %545
      %v548 = vadd.f32 %v543, %v546
      %v549 = vmax.f32 %v548, 0.0
      %550 = vset.pattern.permute.xlu0 13
      %551 = vperm.xlu0 %550, %v428
      %v552 = vpop.permute.xlu0 %551
      %v554 = vlaneseq
      %v555 = vshrl.u32 %v554, 7
      %v556 = vsub.s32 0, %v555
      %v557 = vrot.slane %v549, %v556
      %v558 = vmul.f32 %v552, %v557
      %559 = vset.pattern.permute.xlu0 14
      %560 = vperm.xlu0 %559, %v428
      %v561 = vpop.permute.xlu0 %560
      %v563 = vlaneseq
      %v564 = vshrl.u32 %v563, 7
      %v565 = vsub.s32 1, %v564
      %v566 = vrot.slane %v549, %v565
      %v567 = vmul.f32 %v561, %v566
      %v568 = vadd.f32 %v558, %v567
      %569 = vset.pattern.permute.xlu0 15
      %570 = vperm.xlu0 %569, %v428
      %v571 = vpop.permute.xlu0 %570
      %v573 = vlaneseq
      %v574 = vshrl.u32 %v573, 7
      %v575 = vsub.s32 2, %v574
      %v576 = vrot.slane %v549, %v575
      %v577 = vmul.f32 %v571, %v576
      %v578 = vadd.f32 %v568, %v577
      %579 = vset.pattern.permute.xlu0 16
      %580 = vperm.xlu0 %579, %v428
      %v581 = vpop.permute.xlu0 %580
      %v583 = vlaneseq
      %v584 = vshrl.u32 %v583, 7
      %v585 = vsub.s32 3, %v584
      %v586 = vrot.slane %v549, %v585
      %v587 = vmul.f32 %v581, %v586
      %v588 = vadd.f32 %v578, %v587
      %589 = vset.pattern.permute.xlu0 17
      %590 = vperm.xlu0 %589, %v428
      %v591 = vpop.permute.xlu0 %590
      %v593 = vlaneseq
      %v594 = vshrl.u32 %v593, 7
      %v595 = vsub.s32 4, %v594
      %v596 = vrot.slane %v549, %v595
      %v597 = vmul.f32 %v591, %v596
      %v598 = vadd.f32 %v588, %v597
      %599 = vset.pattern.permute.xlu0 18
      %600 = vperm.xlu0 %599, %v428
      %v601 = vpop.permute.xlu0 %600
      %v603 = vlaneseq
      %v604 = vshrl.u32 %v603, 7
      %v605 = vsub.s32 5, %v604
      %v606 = vrot.slane %v549, %v605
      %v607 = vmul.f32 %v601, %v606
      %v608 = vadd.f32 %v598, %v607
      %609 = vset.pattern.permute.xlu0 19
      %610 = vperm.xlu0 %609, %v428
      %v611 = vpop.permute.xlu0 %610
      %v613 = vlaneseq
      %v614 = vshrl.u32 %v613, 7
      %v615 = vsub.s32 6, %v614
      %v616 = vrot.slane %v549, %v615
      %v617 = vmul.f32 %v611, %v616
      %v618 = vadd.f32 %v608, %v617
      %619 = vset.pattern.permute.xlu0 20
      %620 = vperm.xlu0 %619, %v428
      %v621 = vpop.permute.xlu0 %620
      %v623 = vlaneseq
      %v624 = vshrl.u32 %v623, 7
      %v625 = vsub.s32 7, %v624
      %v626 = vrot.slane %v549, %v625
      %v627 = vmul.f32 %v621, %v626
      %v628 = vadd.f32 %v618, %v627
      %v629 = vadd.f32 %v426, %v628
      %630 = vset.pattern.permute.xlu0 21
      %631 = vperm.xlu0 %630, %v428
      %v632 = vpop.permute.xlu0 %631
      %v634 = vadd.f32 %v629, %v632
      %vm635 = vcmp.gt.f32.partialorder %v427, 0.5
      %v636 = vsel %vm635, %v634, -1e+30
      %v637 = vrot.slane %v636, 4
      %v638 = vmax.f32 %v636, %v637
      %v639 = vrot.slane %v638, 2
      %v640 = vmax.f32 %v638, %v639
      %v641 = vrot.slane %v640, 1
      %v642 = vmax.f32 %v640, %v641
      %v643 = vsub.f32 %v636, %v642
      %v644 = vmul.f32 %v643, 1.442695
      %v645 = vpow.pop %v644
      %v646 = vmul.f32 %v645, %v427
      %v647 = vrot.slane %v646, 4
      %v648 = vadd.f32 %v646, %v647
      %v649 = vrot.slane %v648, 2
      %v650 = vadd.f32 %v648, %v649
      %v651 = vrot.slane %v650, 1
      %v652 = vadd.f32 %v650, %v651
      %v653 = vadd.f32 %v652, 1e-08
      %v654 = vrcp.pop %v653
      %v655 = vmul.f32 %v646, %v654
      %v656 = vld [vmem:[%s413] sm:$0xff]
      %v657 = vld [vmem:[%s413 + $0x8] sm:$0xff]
      %v658 = vld [vmem:[%s413 + $0x10] sm:$0xff]
      %v659 = vld [vmem:[%s413 + $0x18] sm:$0xff]
      %v660 = vld [vmem:[%s413 + $0x20] sm:$0xff]
      %v661 = vld [vmem:[%s413 + $0x28] sm:$0xff]
      %v662 = vld [vmem:[%s413 + $0x30] sm:$0xff]
      %v663 = vld [vmem:[%s413 + $0x38] sm:$0xff]
      %v664 = vld [vmem:[%s413 + $0x40] sm:$0xff]
      %v665 = vld [vmem:[%s413 + $0x48] sm:$0xff]
      %v666 = vld [vmem:[%s413 + $0x50] sm:$0xff]
      %v667 = vld [vmem:[%s413 + $0x58] sm:$0xff]
      %v668 = vld [vmem:[%s413 + $0x60] sm:$0xff]
      %v669 = vld [vmem:[%s413 + $0x68] sm:$0xff]
      %v670 = vld [vmem:[%s413 + $0x70] sm:$0xff]
      %v671 = vld [vmem:[%s413 + $0x78] sm:$0xff]
      %v672 = vld [vmem:[%s413 + $0x8] sm:$0x7]
      %674 = vset.pattern.permute.xlu0 0
      %675 = vperm.xlu0 %674, %v656
      %v676 = vpop.permute.xlu0 %675
      %679 = vset.pattern.permute.xlu0 0
      %680 = vperm.xlu0 %679, %v657
      %v681 = vpop.permute.xlu0 %680
      %684 = vset.pattern.permute.xlu0 0
      %685 = vperm.xlu0 %684, %v658
      %v686 = vpop.permute.xlu0 %685
      %689 = vset.pattern.permute.xlu0 0
      %690 = vperm.xlu0 %689, %v659
      %v691 = vpop.permute.xlu0 %690
      %694 = vset.pattern.permute.xlu0 0
      %695 = vperm.xlu0 %694, %v660
      %v696 = vpop.permute.xlu0 %695
      %699 = vset.pattern.permute.xlu0 0
      %700 = vperm.xlu0 %699, %v661
      %v701 = vpop.permute.xlu0 %700
      %704 = vset.pattern.permute.xlu0 0
      %705 = vperm.xlu0 %704, %v662
      %v706 = vpop.permute.xlu0 %705
      %709 = vset.pattern.permute.xlu0 0
      %710 = vperm.xlu0 %709, %v663
      %v711 = vpop.permute.xlu0 %710
      %714 = vset.pattern.permute.xlu0 0
      %715 = vperm.xlu0 %714, %v664
      %v716 = vpop.permute.xlu0 %715
      %719 = vset.pattern.permute.xlu0 0
      %720 = vperm.xlu0 %719, %v665
      %v721 = vpop.permute.xlu0 %720
      %724 = vset.pattern.permute.xlu0 0
      %725 = vperm.xlu0 %724, %v666
      %v726 = vpop.permute.xlu0 %725
      %729 = vset.pattern.permute.xlu0 0
      %730 = vperm.xlu0 %729, %v667
      %v731 = vpop.permute.xlu0 %730
      %734 = vset.pattern.permute.xlu0 0
      %735 = vperm.xlu0 %734, %v668
      %v736 = vpop.permute.xlu0 %735
      %739 = vset.pattern.permute.xlu0 0
      %740 = vperm.xlu0 %739, %v669
      %v741 = vpop.permute.xlu0 %740
      %744 = vset.pattern.permute.xlu0 0
      %745 = vperm.xlu0 %744, %v670
      %v746 = vpop.permute.xlu0 %745
      %749 = vset.pattern.permute.xlu0 0
      %750 = vperm.xlu0 %749, %v671
      %v751 = vpop.permute.xlu0 %750
      %v753 = vmul.f32 %v676, %v437
      %v754 = vmul.f32 %v681, %v437
      %v755 = vmul.f32 %v686, %v437
      %v756 = vmul.f32 %v691, %v437
      %v757 = vmul.f32 %v696, %v437
      %v758 = vmul.f32 %v701, %v437
      %v759 = vmul.f32 %v706, %v437
      %v760 = vmul.f32 %v711, %v437
      %v761 = vmul.f32 %v716, %v437
      %v762 = vmul.f32 %v721, %v437
      %v763 = vmul.f32 %v726, %v437
      %v764 = vmul.f32 %v731, %v437
      %v765 = vmul.f32 %v736, %v437
      %v766 = vmul.f32 %v741, %v437
      %v767 = vmul.f32 %v746, %v437
      %v768 = vmul.f32 %v751, %v437
      %769 = vset.pattern.permute.xlu0 1
      %770 = vperm.xlu0 %769, %v656
      %v771 = vpop.permute.xlu0 %770
      %773 = vset.pattern.permute.xlu0 1
      %774 = vperm.xlu0 %773, %v657
      %v775 = vpop.permute.xlu0 %774
      %777 = vset.pattern.permute.xlu0 1
      %778 = vperm.xlu0 %777, %v658
      %v779 = vpop.permute.xlu0 %778
      %781 = vset.pattern.permute.xlu0 1
      %782 = vperm.xlu0 %781, %v659
      %v783 = vpop.permute.xlu0 %782
      %785 = vset.pattern.permute.xlu0 1
      %786 = vperm.xlu0 %785, %v660
      %v787 = vpop.permute.xlu0 %786
      %789 = vset.pattern.permute.xlu0 1
      %790 = vperm.xlu0 %789, %v661
      %v791 = vpop.permute.xlu0 %790
      %793 = vset.pattern.permute.xlu0 1
      %794 = vperm.xlu0 %793, %v662
      %v795 = vpop.permute.xlu0 %794
      %797 = vset.pattern.permute.xlu0 1
      %798 = vperm.xlu0 %797, %v663
      %v799 = vpop.permute.xlu0 %798
      %801 = vset.pattern.permute.xlu0 1
      %802 = vperm.xlu0 %801, %v664
      %v803 = vpop.permute.xlu0 %802
      %805 = vset.pattern.permute.xlu0 1
      %806 = vperm.xlu0 %805, %v665
      %v807 = vpop.permute.xlu0 %806
      %809 = vset.pattern.permute.xlu0 1
      %810 = vperm.xlu0 %809, %v666
      %v811 = vpop.permute.xlu0 %810
      %813 = vset.pattern.permute.xlu0 1
      %814 = vperm.xlu0 %813, %v667
      %v815 = vpop.permute.xlu0 %814
      %817 = vset.pattern.permute.xlu0 1
      %818 = vperm.xlu0 %817, %v668
      %v819 = vpop.permute.xlu0 %818
      %821 = vset.pattern.permute.xlu0 1
      %822 = vperm.xlu0 %821, %v669
      %v823 = vpop.permute.xlu0 %822
      %825 = vset.pattern.permute.xlu0 1
      %826 = vperm.xlu0 %825, %v670
      %v827 = vpop.permute.xlu0 %826
      %829 = vset.pattern.permute.xlu0 1
      %830 = vperm.xlu0 %829, %v671
      %v831 = vpop.permute.xlu0 %830
      %v833 = vmul.f32 %v771, %v446
      %v834 = vmul.f32 %v775, %v446
      %v835 = vmul.f32 %v779, %v446
      %v836 = vmul.f32 %v783, %v446
      %v837 = vmul.f32 %v787, %v446
      %v838 = vmul.f32 %v791, %v446
      %v839 = vmul.f32 %v795, %v446
      %v840 = vmul.f32 %v799, %v446
      %v841 = vmul.f32 %v803, %v446
      %v842 = vmul.f32 %v807, %v446
      %v843 = vmul.f32 %v811, %v446
      %v844 = vmul.f32 %v815, %v446
      %v845 = vmul.f32 %v819, %v446
      %v846 = vmul.f32 %v823, %v446
      %v847 = vmul.f32 %v827, %v446
      %v848 = vmul.f32 %v831, %v446
      %v849 = vadd.f32 %v753, %v833
      %v850 = vadd.f32 %v754, %v834
      %v851 = vadd.f32 %v755, %v835
      %v852 = vadd.f32 %v756, %v836
      %v853 = vadd.f32 %v757, %v837
      %v854 = vadd.f32 %v758, %v838
      %v855 = vadd.f32 %v759, %v839
      %v856 = vadd.f32 %v760, %v840
      %v857 = vadd.f32 %v761, %v841
      %v858 = vadd.f32 %v762, %v842
      %v859 = vadd.f32 %v763, %v843
      %v860 = vadd.f32 %v764, %v844
      %v861 = vadd.f32 %v765, %v845
      %v862 = vadd.f32 %v766, %v846
      %v863 = vadd.f32 %v767, %v847
      %v864 = vadd.f32 %v768, %v848
      %865 = vset.pattern.permute.xlu0 2
      %866 = vperm.xlu0 %865, %v656
      %v867 = vpop.permute.xlu0 %866
      %869 = vset.pattern.permute.xlu0 2
      %870 = vperm.xlu0 %869, %v657
      %v871 = vpop.permute.xlu0 %870
      %873 = vset.pattern.permute.xlu0 2
      %874 = vperm.xlu0 %873, %v658
      %v875 = vpop.permute.xlu0 %874
      %877 = vset.pattern.permute.xlu0 2
      %878 = vperm.xlu0 %877, %v659
      %v879 = vpop.permute.xlu0 %878
      %881 = vset.pattern.permute.xlu0 2
      %882 = vperm.xlu0 %881, %v660
      %v883 = vpop.permute.xlu0 %882
      %885 = vset.pattern.permute.xlu0 2
      %886 = vperm.xlu0 %885, %v661
      %v887 = vpop.permute.xlu0 %886
      %889 = vset.pattern.permute.xlu0 2
      %890 = vperm.xlu0 %889, %v662
      %v891 = vpop.permute.xlu0 %890
      %893 = vset.pattern.permute.xlu0 2
      %894 = vperm.xlu0 %893, %v663
      %v895 = vpop.permute.xlu0 %894
      %897 = vset.pattern.permute.xlu0 2
      %898 = vperm.xlu0 %897, %v664
      %v899 = vpop.permute.xlu0 %898
      %901 = vset.pattern.permute.xlu0 2
      %902 = vperm.xlu0 %901, %v665
      %v903 = vpop.permute.xlu0 %902
      %905 = vset.pattern.permute.xlu0 2
      %906 = vperm.xlu0 %905, %v666
      %v907 = vpop.permute.xlu0 %906
      %909 = vset.pattern.permute.xlu0 2
      %910 = vperm.xlu0 %909, %v667
      %v911 = vpop.permute.xlu0 %910
      %913 = vset.pattern.permute.xlu0 2
      %914 = vperm.xlu0 %913, %v668
      %v915 = vpop.permute.xlu0 %914
      %917 = vset.pattern.permute.xlu0 2
      %918 = vperm.xlu0 %917, %v669
      %v919 = vpop.permute.xlu0 %918
      %921 = vset.pattern.permute.xlu0 2
      %922 = vperm.xlu0 %921, %v670
      %v923 = vpop.permute.xlu0 %922
      %925 = vset.pattern.permute.xlu0 2
      %926 = vperm.xlu0 %925, %v671
      %v927 = vpop.permute.xlu0 %926
      %v929 = vmul.f32 %v867, %v456
      %v930 = vmul.f32 %v871, %v456
      %v931 = vmul.f32 %v875, %v456
      %v932 = vmul.f32 %v879, %v456
      %v933 = vmul.f32 %v883, %v456
      %v934 = vmul.f32 %v887, %v456
      %v935 = vmul.f32 %v891, %v456
      %v936 = vmul.f32 %v895, %v456
      %v937 = vmul.f32 %v899, %v456
      %v938 = vmul.f32 %v903, %v456
      %v939 = vmul.f32 %v907, %v456
      %v940 = vmul.f32 %v911, %v456
      %v941 = vmul.f32 %v915, %v456
      %v942 = vmul.f32 %v919, %v456
      %v943 = vmul.f32 %v923, %v456
      %v944 = vmul.f32 %v927, %v456
      %v945 = vadd.f32 %v849, %v929
      %v946 = vadd.f32 %v850, %v930
      %v947 = vadd.f32 %v851, %v931
      %v948 = vadd.f32 %v852, %v932
      %v949 = vadd.f32 %v853, %v933
      %v950 = vadd.f32 %v854, %v934
      %v951 = vadd.f32 %v855, %v935
      %v952 = vadd.f32 %v856, %v936
      %v953 = vadd.f32 %v857, %v937
      %v954 = vadd.f32 %v858, %v938
      %v955 = vadd.f32 %v859, %v939
      %v956 = vadd.f32 %v860, %v940
      %v957 = vadd.f32 %v861, %v941
      %v958 = vadd.f32 %v862, %v942
      %v959 = vadd.f32 %v863, %v943
      %v960 = vadd.f32 %v864, %v944
      %961 = vset.pattern.permute.xlu0 3
      %962 = vperm.xlu0 %961, %v656
      %v963 = vpop.permute.xlu0 %962
      %965 = vset.pattern.permute.xlu0 3
      %966 = vperm.xlu0 %965, %v657
      %v967 = vpop.permute.xlu0 %966
      %969 = vset.pattern.permute.xlu0 3
      %970 = vperm.xlu0 %969, %v658
      %v971 = vpop.permute.xlu0 %970
      %973 = vset.pattern.permute.xlu0 3
      %974 = vperm.xlu0 %973, %v659
      %v975 = vpop.permute.xlu0 %974
      %977 = vset.pattern.permute.xlu0 3
      %978 = vperm.xlu0 %977, %v660
      %v979 = vpop.permute.xlu0 %978
      %981 = vset.pattern.permute.xlu0 3
      %982 = vperm.xlu0 %981, %v661
      %v983 = vpop.permute.xlu0 %982
      %985 = vset.pattern.permute.xlu0 3
      %986 = vperm.xlu0 %985, %v662
      %v987 = vpop.permute.xlu0 %986
      %989 = vset.pattern.permute.xlu0 3
      %990 = vperm.xlu0 %989, %v663
      %v991 = vpop.permute.xlu0 %990
      %993 = vset.pattern.permute.xlu0 3
      %994 = vperm.xlu0 %993, %v664
      %v995 = vpop.permute.xlu0 %994
      %997 = vset.pattern.permute.xlu0 3
      %998 = vperm.xlu0 %997, %v665
      %v999 = vpop.permute.xlu0 %998
      %1001 = vset.pattern.permute.xlu0 3
      %1002 = vperm.xlu0 %1001, %v666
      %v1003 = vpop.permute.xlu0 %1002
      %1005 = vset.pattern.permute.xlu0 3
      %1006 = vperm.xlu0 %1005, %v667
      %v1007 = vpop.permute.xlu0 %1006
      %1009 = vset.pattern.permute.xlu0 3
      %1010 = vperm.xlu0 %1009, %v668
      %v1011 = vpop.permute.xlu0 %1010
      %1013 = vset.pattern.permute.xlu0 3
      %1014 = vperm.xlu0 %1013, %v669
      %v1015 = vpop.permute.xlu0 %1014
      %1017 = vset.pattern.permute.xlu0 3
      %1018 = vperm.xlu0 %1017, %v670
      %v1019 = vpop.permute.xlu0 %1018
      %1021 = vset.pattern.permute.xlu0 3
      %1022 = vperm.xlu0 %1021, %v671
      %v1023 = vpop.permute.xlu0 %1022
      %v1025 = vadd.f32 %v945, %v963
      %v1026 = vadd.f32 %v946, %v967
      %v1027 = vadd.f32 %v947, %v971
      %v1028 = vadd.f32 %v948, %v975
      %v1029 = vadd.f32 %v949, %v979
      %v1030 = vadd.f32 %v950, %v983
      %v1031 = vadd.f32 %v951, %v987
      %v1032 = vadd.f32 %v952, %v991
      %v1033 = vadd.f32 %v953, %v995
      %v1034 = vadd.f32 %v954, %v999
      %v1035 = vadd.f32 %v955, %v1003
      %v1036 = vadd.f32 %v956, %v1007
      %v1037 = vadd.f32 %v957, %v1011
      %v1038 = vadd.f32 %v958, %v1015
      %v1039 = vadd.f32 %v959, %v1019
      %v1040 = vadd.f32 %v960, %v1023
      %v1041 = vmax.f32 %v1025, 0.0
      %v1042 = vmax.f32 %v1026, 0.0
      %v1043 = vmax.f32 %v1027, 0.0
      %v1044 = vmax.f32 %v1028, 0.0
      %v1045 = vmax.f32 %v1029, 0.0
      %v1046 = vmax.f32 %v1030, 0.0
      %v1047 = vmax.f32 %v1031, 0.0
      %v1048 = vmax.f32 %v1032, 0.0
      %v1049 = vmax.f32 %v1033, 0.0
      %v1050 = vmax.f32 %v1034, 0.0
      %v1051 = vmax.f32 %v1035, 0.0
      %v1052 = vmax.f32 %v1036, 0.0
      %v1053 = vmax.f32 %v1037, 0.0
      %v1054 = vmax.f32 %v1038, 0.0
      %v1055 = vmax.f32 %v1039, 0.0
      %v1056 = vmax.f32 %v1040, 0.0
      %v1057 = vld [vmem:[%s393] sm:$0xff]
      %v1058 = vld [vmem:[%s393 + $0x8] sm:$0xff]
      %v1059 = vld [vmem:[%s393 + $0x10] sm:$0xff]
      %v1060 = vld [vmem:[%s393 + $0x18] sm:$0xff]
      %v1061 = vld [vmem:[%s393 + $0x20] sm:$0xff]
      %v1062 = vld [vmem:[%s393 + $0x28] sm:$0xff]
      %v1063 = vld [vmem:[%s393 + $0x30] sm:$0xff]
      %v1064 = vld [vmem:[%s393 + $0x38] sm:$0xff]
      %v1065 = vld [vmem:[%s393 + $0x40] sm:$0xff]
      %v1066 = vld [vmem:[%s393 + $0x48] sm:$0xff]
      %v1067 = vld [vmem:[%s393 + $0x50] sm:$0xff]
      %v1068 = vld [vmem:[%s393 + $0x58] sm:$0xff]
      %v1069 = vld [vmem:[%s393 + $0x60] sm:$0xff]
      %v1070 = vld [vmem:[%s393 + $0x68] sm:$0xff]
      %v1071 = vld [vmem:[%s393 + $0x70] sm:$0xff]
      %v1072 = vld [vmem:[%s393 + $0x78] sm:$0xff]
      %v1073 = vld [vmem:[%s393 + $0x80] sm:$0xff]
      %v1074 = vld [vmem:[%s393 + $0x88] sm:$0xff]
      %v1075 = vld [vmem:[%s393 + $0x90] sm:$0xff]
      %v1076 = vld [vmem:[%s393 + $0x98] sm:$0xff]
      %v1077 = vld [vmem:[%s393 + $0xa0] sm:$0xff]
      %v1078 = vld [vmem:[%s393 + $0xa8] sm:$0xff]
      %v1079 = vld [vmem:[%s393 + $0xb0] sm:$0xff]
      %v1080 = vld [vmem:[%s393 + $0xb8] sm:$0xff]
      %v1081 = vld [vmem:[%s393 + $0xc0] sm:$0xff]
      %v1082 = vld [vmem:[%s393 + $0xc8] sm:$0xff]
      %v1083 = vld [vmem:[%s393 + $0xd0] sm:$0xff]
      %v1084 = vld [vmem:[%s393 + $0xd8] sm:$0xff]
      %v1085 = vld [vmem:[%s393 + $0xe0] sm:$0xff]
      %v1086 = vld [vmem:[%s393 + $0xe8] sm:$0xff]
      %v1087 = vld [vmem:[%s393 + $0xf0] sm:$0xff]
      %v1088 = vld [vmem:[%s393 + $0xf8] sm:$0xff]
      %1090 = vset.pattern.permute.xlu0 0
      %1091 = vperm.xlu0 %1090, %v1057
      %v1092 = vpop.permute.xlu0 %1091
      %1095 = vset.pattern.permute.xlu0 0
      %1096 = vperm.xlu0 %1095, %v1058
      %v1097 = vpop.permute.xlu0 %1096
      %1100 = vset.pattern.permute.xlu0 0
      %1101 = vperm.xlu0 %1100, %v1059
      %v1102 = vpop.permute.xlu0 %1101
      %1105 = vset.pattern.permute.xlu0 0
      %1106 = vperm.xlu0 %1105, %v1060
      %v1107 = vpop.permute.xlu0 %1106
      %1110 = vset.pattern.permute.xlu0 0
      %1111 = vperm.xlu0 %1110, %v1061
      %v1112 = vpop.permute.xlu0 %1111
      %1115 = vset.pattern.permute.xlu0 0
      %1116 = vperm.xlu0 %1115, %v1062
      %v1117 = vpop.permute.xlu0 %1116
      %1120 = vset.pattern.permute.xlu0 0
      %1121 = vperm.xlu0 %1120, %v1063
      %v1122 = vpop.permute.xlu0 %1121
      %1125 = vset.pattern.permute.xlu0 0
      %1126 = vperm.xlu0 %1125, %v1064
      %v1127 = vpop.permute.xlu0 %1126
      %1130 = vset.pattern.permute.xlu0 0
      %1131 = vperm.xlu0 %1130, %v1065
      %v1132 = vpop.permute.xlu0 %1131
      %1135 = vset.pattern.permute.xlu0 0
      %1136 = vperm.xlu0 %1135, %v1066
      %v1137 = vpop.permute.xlu0 %1136
      %1140 = vset.pattern.permute.xlu0 0
      %1141 = vperm.xlu0 %1140, %v1067
      %v1142 = vpop.permute.xlu0 %1141
      %1145 = vset.pattern.permute.xlu0 0
      %1146 = vperm.xlu0 %1145, %v1068
      %v1147 = vpop.permute.xlu0 %1146
      %1150 = vset.pattern.permute.xlu0 0
      %1151 = vperm.xlu0 %1150, %v1069
      %v1152 = vpop.permute.xlu0 %1151
      %1155 = vset.pattern.permute.xlu0 0
      %1156 = vperm.xlu0 %1155, %v1070
      %v1157 = vpop.permute.xlu0 %1156
      %1160 = vset.pattern.permute.xlu0 0
      %1161 = vperm.xlu0 %1160, %v1071
      %v1162 = vpop.permute.xlu0 %1161
      %1165 = vset.pattern.permute.xlu0 0
      %1166 = vperm.xlu0 %1165, %v1072
      %v1167 = vpop.permute.xlu0 %1166
      %v1169 = vmul.f32 %v1041, %v1092
      %v1170 = vmul.f32 %v1042, %v1097
      %v1171 = vmul.f32 %v1043, %v1102
      %v1172 = vmul.f32 %v1044, %v1107
      %v1173 = vmul.f32 %v1045, %v1112
      %v1174 = vmul.f32 %v1046, %v1117
      %v1175 = vmul.f32 %v1047, %v1122
      %v1176 = vmul.f32 %v1048, %v1127
      %v1177 = vmul.f32 %v1049, %v1132
      %v1178 = vmul.f32 %v1050, %v1137
      %v1179 = vmul.f32 %v1051, %v1142
      %v1180 = vmul.f32 %v1052, %v1147
      %v1181 = vmul.f32 %v1053, %v1152
      %v1182 = vmul.f32 %v1054, %v1157
      %v1183 = vmul.f32 %v1055, %v1162
      %v1184 = vmul.f32 %v1056, %v1167
      %1186 = vset.pattern.permute.xlu0 0
      %1187 = vperm.xlu0 %1186, %v1073
      %v1188 = vpop.permute.xlu0 %1187
      %1191 = vset.pattern.permute.xlu0 0
      %1192 = vperm.xlu0 %1191, %v1074
      %v1193 = vpop.permute.xlu0 %1192
      %1196 = vset.pattern.permute.xlu0 0
      %1197 = vperm.xlu0 %1196, %v1075
      %v1198 = vpop.permute.xlu0 %1197
      %1201 = vset.pattern.permute.xlu0 0
      %1202 = vperm.xlu0 %1201, %v1076
      %v1203 = vpop.permute.xlu0 %1202
      %1206 = vset.pattern.permute.xlu0 0
      %1207 = vperm.xlu0 %1206, %v1077
      %v1208 = vpop.permute.xlu0 %1207
      %1211 = vset.pattern.permute.xlu0 0
      %1212 = vperm.xlu0 %1211, %v1078
      %v1213 = vpop.permute.xlu0 %1212
      %1216 = vset.pattern.permute.xlu0 0
      %1217 = vperm.xlu0 %1216, %v1079
      %v1218 = vpop.permute.xlu0 %1217
      %1221 = vset.pattern.permute.xlu0 0
      %1222 = vperm.xlu0 %1221, %v1080
      %v1223 = vpop.permute.xlu0 %1222
      %1226 = vset.pattern.permute.xlu0 0
      %1227 = vperm.xlu0 %1226, %v1081
      %v1228 = vpop.permute.xlu0 %1227
      %1231 = vset.pattern.permute.xlu0 0
      %1232 = vperm.xlu0 %1231, %v1082
      %v1233 = vpop.permute.xlu0 %1232
      %1236 = vset.pattern.permute.xlu0 0
      %1237 = vperm.xlu0 %1236, %v1083
      %v1238 = vpop.permute.xlu0 %1237
      %1241 = vset.pattern.permute.xlu0 0
      %1242 = vperm.xlu0 %1241, %v1084
      %v1243 = vpop.permute.xlu0 %1242
      %1246 = vset.pattern.permute.xlu0 0
      %1247 = vperm.xlu0 %1246, %v1085
      %v1248 = vpop.permute.xlu0 %1247
      %1251 = vset.pattern.permute.xlu0 0
      %1252 = vperm.xlu0 %1251, %v1086
      %v1253 = vpop.permute.xlu0 %1252
      %1256 = vset.pattern.permute.xlu0 0
      %1257 = vperm.xlu0 %1256, %v1087
      %v1258 = vpop.permute.xlu0 %1257
      %1261 = vset.pattern.permute.xlu0 0
      %1262 = vperm.xlu0 %1261, %v1088
      %v1263 = vpop.permute.xlu0 %1262
      %v1265 = vadd.f32 %v1169, %v1188
      %v1266 = vadd.f32 %v1170, %v1193
      %v1267 = vadd.f32 %v1171, %v1198
      %v1268 = vadd.f32 %v1172, %v1203
      %v1269 = vadd.f32 %v1173, %v1208
      %v1270 = vadd.f32 %v1174, %v1213
      %v1271 = vadd.f32 %v1175, %v1218
      %v1272 = vadd.f32 %v1176, %v1223
      %v1273 = vadd.f32 %v1177, %v1228
      %v1274 = vadd.f32 %v1178, %v1233
      %v1275 = vadd.f32 %v1179, %v1238
      %v1276 = vadd.f32 %v1180, %v1243
      %v1277 = vadd.f32 %v1181, %v1248
      %v1278 = vadd.f32 %v1182, %v1253
      %v1279 = vadd.f32 %v1183, %v1258
      %v1280 = vadd.f32 %v1184, %v1263
      %1281 = vset.pattern.permute.xlu0 1
      %1282 = vperm.xlu0 %1281, %v1057
      %v1283 = vpop.permute.xlu0 %1282
      %1285 = vset.pattern.permute.xlu0 1
      %1286 = vperm.xlu0 %1285, %v1058
      %v1287 = vpop.permute.xlu0 %1286
      %1289 = vset.pattern.permute.xlu0 1
      %1290 = vperm.xlu0 %1289, %v1059
      %v1291 = vpop.permute.xlu0 %1290
      %1293 = vset.pattern.permute.xlu0 1
      %1294 = vperm.xlu0 %1293, %v1060
      %v1295 = vpop.permute.xlu0 %1294
      %1297 = vset.pattern.permute.xlu0 1
      %1298 = vperm.xlu0 %1297, %v1061
      %v1299 = vpop.permute.xlu0 %1298
      %1301 = vset.pattern.permute.xlu0 1
      %1302 = vperm.xlu0 %1301, %v1062
      %v1303 = vpop.permute.xlu0 %1302
      %1305 = vset.pattern.permute.xlu0 1
      %1306 = vperm.xlu0 %1305, %v1063
      %v1307 = vpop.permute.xlu0 %1306
      %1309 = vset.pattern.permute.xlu0 1
      %1310 = vperm.xlu0 %1309, %v1064
      %v1311 = vpop.permute.xlu0 %1310
      %1313 = vset.pattern.permute.xlu0 1
      %1314 = vperm.xlu0 %1313, %v1065
      %v1315 = vpop.permute.xlu0 %1314
      %1317 = vset.pattern.permute.xlu0 1
      %1318 = vperm.xlu0 %1317, %v1066
      %v1319 = vpop.permute.xlu0 %1318
      %1321 = vset.pattern.permute.xlu0 1
      %1322 = vperm.xlu0 %1321, %v1067
      %v1323 = vpop.permute.xlu0 %1322
      %1325 = vset.pattern.permute.xlu0 1
      %1326 = vperm.xlu0 %1325, %v1068
      %v1327 = vpop.permute.xlu0 %1326
      %1329 = vset.pattern.permute.xlu0 1
      %1330 = vperm.xlu0 %1329, %v1069
      %v1331 = vpop.permute.xlu0 %1330
      %1333 = vset.pattern.permute.xlu0 1
      %1334 = vperm.xlu0 %1333, %v1070
      %v1335 = vpop.permute.xlu0 %1334
      %1337 = vset.pattern.permute.xlu0 1
      %1338 = vperm.xlu0 %1337, %v1071
      %v1339 = vpop.permute.xlu0 %1338
      %1341 = vset.pattern.permute.xlu0 1
      %1342 = vperm.xlu0 %1341, %v1072
      %v1343 = vpop.permute.xlu0 %1342
      %v1345 = vmul.f32 %v1041, %v1283
      %v1346 = vmul.f32 %v1042, %v1287
      %v1347 = vmul.f32 %v1043, %v1291
      %v1348 = vmul.f32 %v1044, %v1295
      %v1349 = vmul.f32 %v1045, %v1299
      %v1350 = vmul.f32 %v1046, %v1303
      %v1351 = vmul.f32 %v1047, %v1307
      %v1352 = vmul.f32 %v1048, %v1311
      %v1353 = vmul.f32 %v1049, %v1315
      %v1354 = vmul.f32 %v1050, %v1319
      %v1355 = vmul.f32 %v1051, %v1323
      %v1356 = vmul.f32 %v1052, %v1327
      %v1357 = vmul.f32 %v1053, %v1331
      %v1358 = vmul.f32 %v1054, %v1335
      %v1359 = vmul.f32 %v1055, %v1339
      %v1360 = vmul.f32 %v1056, %v1343
      %1361 = vset.pattern.permute.xlu0 1
      %1362 = vperm.xlu0 %1361, %v1073
      %v1363 = vpop.permute.xlu0 %1362
      %1365 = vset.pattern.permute.xlu0 1
      %1366 = vperm.xlu0 %1365, %v1074
      %v1367 = vpop.permute.xlu0 %1366
      %1369 = vset.pattern.permute.xlu0 1
      %1370 = vperm.xlu0 %1369, %v1075
      %v1371 = vpop.permute.xlu0 %1370
      %1373 = vset.pattern.permute.xlu0 1
      %1374 = vperm.xlu0 %1373, %v1076
      %v1375 = vpop.permute.xlu0 %1374
      %1377 = vset.pattern.permute.xlu0 1
      %1378 = vperm.xlu0 %1377, %v1077
      %v1379 = vpop.permute.xlu0 %1378
      %1381 = vset.pattern.permute.xlu0 1
      %1382 = vperm.xlu0 %1381, %v1078
      %v1383 = vpop.permute.xlu0 %1382
      %1385 = vset.pattern.permute.xlu0 1
      %1386 = vperm.xlu0 %1385, %v1079
      %v1387 = vpop.permute.xlu0 %1386
      %1389 = vset.pattern.permute.xlu0 1
      %1390 = vperm.xlu0 %1389, %v1080
      %v1391 = vpop.permute.xlu0 %1390
      %1393 = vset.pattern.permute.xlu0 1
      %1394 = vperm.xlu0 %1393, %v1081
      %v1395 = vpop.permute.xlu0 %1394
      %1397 = vset.pattern.permute.xlu0 1
      %1398 = vperm.xlu0 %1397, %v1082
      %v1399 = vpop.permute.xlu0 %1398
      %1401 = vset.pattern.permute.xlu0 1
      %1402 = vperm.xlu0 %1401, %v1083
      %v1403 = vpop.permute.xlu0 %1402
      %1405 = vset.pattern.permute.xlu0 1
      %1406 = vperm.xlu0 %1405, %v1084
      %v1407 = vpop.permute.xlu0 %1406
      %1409 = vset.pattern.permute.xlu0 1
      %1410 = vperm.xlu0 %1409, %v1085
      %v1411 = vpop.permute.xlu0 %1410
      %1413 = vset.pattern.permute.xlu0 1
      %1414 = vperm.xlu0 %1413, %v1086
      %v1415 = vpop.permute.xlu0 %1414
      %1417 = vset.pattern.permute.xlu0 1
      %1418 = vperm.xlu0 %1417, %v1087
      %v1419 = vpop.permute.xlu0 %1418
      %1421 = vset.pattern.permute.xlu0 1
      %1422 = vperm.xlu0 %1421, %v1088
      %v1423 = vpop.permute.xlu0 %1422
      %v1425 = vadd.f32 %v1345, %v1363
      %v1426 = vadd.f32 %v1346, %v1367
      %v1427 = vadd.f32 %v1347, %v1371
      %v1428 = vadd.f32 %v1348, %v1375
      %v1429 = vadd.f32 %v1349, %v1379
      %v1430 = vadd.f32 %v1350, %v1383
      %v1431 = vadd.f32 %v1351, %v1387
      %v1432 = vadd.f32 %v1352, %v1391
      %v1433 = vadd.f32 %v1353, %v1395
      %v1434 = vadd.f32 %v1354, %v1399
      %v1435 = vadd.f32 %v1355, %v1403
      %v1436 = vadd.f32 %v1356, %v1407
      %v1437 = vadd.f32 %v1357, %v1411
      %v1438 = vadd.f32 %v1358, %v1415
      %v1439 = vadd.f32 %v1359, %v1419
      %v1440 = vadd.f32 %v1360, %v1423
      %v1441 = vld [vmem:[%s403] sm:$0xf]
      %v1442 = vld [vmem:[%s403 + $0x8] sm:$0xf]
      %v1443 = vld [vmem:[%s403 + $0x10] sm:$0xf]
      %v1444 = vld [vmem:[%s403 + $0x18] sm:$0xf]
      %v1445 = vld [vmem:[%s403 + $0x20] sm:$0xf]
      %v1446 = vld [vmem:[%s403 + $0x28] sm:$0xf]
      %v1447 = vld [vmem:[%s403 + $0x30] sm:$0xf]
      %v1448 = vld [vmem:[%s403 + $0x38] sm:$0xf]
      %v1449 = vld [vmem:[%s403 + $0x40] sm:$0xf]
      %v1450 = vld [vmem:[%s403 + $0x48] sm:$0xf]
      %v1451 = vld [vmem:[%s403 + $0x50] sm:$0xf]
      %v1452 = vld [vmem:[%s403 + $0x58] sm:$0xf]
      %v1453 = vld [vmem:[%s403 + $0x60] sm:$0xf]
      %v1454 = vld [vmem:[%s403 + $0x68] sm:$0xf]
      %v1455 = vld [vmem:[%s403 + $0x70] sm:$0xf]
      %v1456 = vld [vmem:[%s403 + $0x78] sm:$0xf]
      %v1457 = vld [vmem:[%s403 + $0x4] sm:$0xf]
      %v1458 = vld [vmem:[%s403 + $0xc] sm:$0xf]
      %v1459 = vld [vmem:[%s403 + $0x14] sm:$0xf]
      %v1460 = vld [vmem:[%s403 + $0x1c] sm:$0xf]
      %v1461 = vld [vmem:[%s403 + $0x24] sm:$0xf]
      %v1462 = vld [vmem:[%s403 + $0x2c] sm:$0xf]
      %v1463 = vld [vmem:[%s403 + $0x34] sm:$0xf]
      %v1464 = vld [vmem:[%s403 + $0x3c] sm:$0xf]
      %v1465 = vld [vmem:[%s403 + $0x44] sm:$0xf]
      %v1466 = vld [vmem:[%s403 + $0x4c] sm:$0xf]
      %v1467 = vld [vmem:[%s403 + $0x54] sm:$0xf]
      %v1468 = vld [vmem:[%s403 + $0x5c] sm:$0xf]
      %v1469 = vld [vmem:[%s403 + $0x64] sm:$0xf]
      %v1470 = vld [vmem:[%s403 + $0x6c] sm:$0xf]
      %v1471 = vld [vmem:[%s403 + $0x74] sm:$0xf]
      %v1472 = vld [vmem:[%s403 + $0x7c] sm:$0xf]
      %v1473 = vld [vmem:[%s408] sm:$0xf]
      %v1474 = vld [vmem:[%s408 + $0x4] sm:$0x3]
      %v1475 = vpack.c.bf16 %v1266, %v1265
      %v1476 = vpack.c.bf16 %v1426, %v1425
      %v1477 = vpack.c.bf16 %v1268, %v1267
      %v1478 = vpack.c.bf16 %v1428, %v1427
      %v1479 = vpack.c.bf16 %v1270, %v1269
      %v1480 = vpack.c.bf16 %v1430, %v1429
      %v1481 = vpack.c.bf16 %v1272, %v1271
      %v1482 = vpack.c.bf16 %v1432, %v1431
      %v1483 = vpack.c.bf16 %v1274, %v1273
      %v1484 = vpack.c.bf16 %v1434, %v1433
      %v1485 = vpack.c.bf16 %v1276, %v1275
      %v1486 = vpack.c.bf16 %v1436, %v1435
      %v1487 = vpack.c.bf16 %v1278, %v1277
      %v1488 = vpack.c.bf16 %v1438, %v1437
      %v1489 = vpack.c.bf16 %v1280, %v1279
      %v1490 = vpack.c.bf16 %v1440, %v1439
      %1491 = vset.pattern.permute.xlu0 4
      %1492 = vperm.xlu0 %1491, %v656
      %v1493 = vpop.permute.xlu0 %1492
      %1495 = vset.pattern.permute.xlu0 4
      %1496 = vperm.xlu0 %1495, %v657
      %v1497 = vpop.permute.xlu0 %1496
      %1499 = vset.pattern.permute.xlu0 4
      %1500 = vperm.xlu0 %1499, %v658
      %v1501 = vpop.permute.xlu0 %1500
      %1503 = vset.pattern.permute.xlu0 4
      %1504 = vperm.xlu0 %1503, %v659
      %v1505 = vpop.permute.xlu0 %1504
      %1507 = vset.pattern.permute.xlu0 4
      %1508 = vperm.xlu0 %1507, %v660
      %v1509 = vpop.permute.xlu0 %1508
      %1511 = vset.pattern.permute.xlu0 4
      %1512 = vperm.xlu0 %1511, %v661
      %v1513 = vpop.permute.xlu0 %1512
      %1515 = vset.pattern.permute.xlu0 4
      %1516 = vperm.xlu0 %1515, %v662
      %v1517 = vpop.permute.xlu0 %1516
      %1519 = vset.pattern.permute.xlu0 4
      %1520 = vperm.xlu0 %1519, %v663
      %v1521 = vpop.permute.xlu0 %1520
      %1523 = vset.pattern.permute.xlu0 4
      %1524 = vperm.xlu0 %1523, %v664
      %v1525 = vpop.permute.xlu0 %1524
      %1527 = vset.pattern.permute.xlu0 4
      %1528 = vperm.xlu0 %1527, %v665
      %v1529 = vpop.permute.xlu0 %1528
      %1531 = vset.pattern.permute.xlu0 4
      %1532 = vperm.xlu0 %1531, %v666
      %v1533 = vpop.permute.xlu0 %1532
      %1535 = vset.pattern.permute.xlu0 4
      %1536 = vperm.xlu0 %1535, %v667
      %v1537 = vpop.permute.xlu0 %1536
      %1539 = vset.pattern.permute.xlu0 4
      %1540 = vperm.xlu0 %1539, %v668
      %v1541 = vpop.permute.xlu0 %1540
      %1543 = vset.pattern.permute.xlu0 4
      %1544 = vperm.xlu0 %1543, %v669
      %v1545 = vpop.permute.xlu0 %1544
      %1547 = vset.pattern.permute.xlu0 4
      %1548 = vperm.xlu0 %1547, %v670
      %v1549 = vpop.permute.xlu0 %1548
      %1551 = vset.pattern.permute.xlu0 4
      %1552 = vperm.xlu0 %1551, %v671
      %v1553 = vpop.permute.xlu0 %1552
      %v1571 = vunpack.c.l.b16 %v1441
      %v1572 = vunpack.c.l.b16 %v1442
      %v1573 = vunpack.c.l.b16 %v1443
      %v1574 = vunpack.c.l.b16 %v1444
      %v1575 = vunpack.c.l.b16 %v1445
      %v1576 = vunpack.c.l.b16 %v1446
      %v1577 = vunpack.c.l.b16 %v1447
      %v1578 = vunpack.c.l.b16 %v1448
      %v1579 = vunpack.c.l.b16 %v1449
      %v1580 = vunpack.c.l.b16 %v1450
      %v1581 = vunpack.c.l.b16 %v1451
      %v1582 = vunpack.c.l.b16 %v1452
      %v1583 = vunpack.c.l.b16 %v1453
      %v1584 = vunpack.c.l.b16 %v1454
      %v1585 = vunpack.c.l.b16 %v1455
      %v1586 = vunpack.c.l.b16 %v1456
      %v1587 = vpack.c.b16 %v1572, %v1571
      %v1588 = vpack.c.b16 %v1574, %v1573
      %v1589 = vpack.c.b16 %v1576, %v1575
      %v1590 = vpack.c.b16 %v1578, %v1577
      %v1591 = vpack.c.b16 %v1580, %v1579
      %v1592 = vpack.c.b16 %v1582, %v1581
      %v1593 = vpack.c.b16 %v1584, %v1583
      %v1594 = vpack.c.b16 %v1586, %v1585
      %1603 = vmatprep.subr.bf16.mxu0 %v1490
      %1604 = vmatpush1.bf16.msra.mxu0 %v1489
      %1605 = vmatprep.subr.bf16.mxu0 %v1488
      %1606 = vmatpush1.bf16.msra.mxu0 %v1487
      %1607 = vmatprep.subr.bf16.mxu0 %v1486
      %1608 = vmatpush1.bf16.msra.mxu0 %v1485
      %1609 = vmatprep.subr.bf16.mxu0 %v1484
      %1610 = vmatpush1.bf16.msra.mxu0 %v1483
      %1611 = vmatprep.subr.bf16.mxu0 %v1482
      %1612 = vmatpush1.bf16.msra.mxu0 %v1481
      %1613 = vmatprep.subr.bf16.mxu0 %v1480
      %1614 = vmatpush1.bf16.msra.mxu0 %v1479
      %1615 = vmatprep.subr.bf16.mxu0 %v1478
      %1616 = vmatpush1.bf16.msra.mxu0 %v1477
      %1617 = vmatprep.subr.bf16.mxu0 %v1476
      %1618 = vmatpush1.bf16.msra.mxu0 %v1475
      %1619 = vmatprep.subr.bf16.mxu0 0
      %1620 = vmatpush2.bf16.msra.mxu0 0
      %1621 = vmatprep.subr.bf16.mxu0 0
      %1622 = vmatpush2.bf16.msra.mxu0 0
      %1623 = vmatprep.subr.bf16.mxu0 0
      %1624 = vmatpush2.bf16.msra.mxu0 0
      %1625 = vmatprep.subr.bf16.mxu0 0
      %1626 = vmatpush2.bf16.msra.mxu0 0
      %1627 = vmatprep.subr.bf16.mxu0 0
      %1628 = vmatpush2.bf16.msra.mxu0 0
      %1629 = vmatprep.subr.bf16.mxu0 0
      %1630 = vmatpush2.bf16.msra.mxu0 0
      %1631 = vmatprep.subr.bf16.mxu0 0
      %1632 = vmatpush2.bf16.msra.mxu0 0
      %1633 = vmatprep.subr.bf16.mxu0 0
      %1634 = vmatpush2.bf16.msra.mxu0 0
      %1635 = vmatprep.mubr.bf16.mxu0 0
      %1636 = vmatmul.mubr.bf16.gmra.mxu0 %v1587
      %v1637 = vpop.f32.mrf.mxu0
      %v1638 = vadd.f32 %v1493, %v1637
      %v1639 = vpop.f32.mrf.mxu0
      %v1640 = vadd.f32 %v1493, %v1639
      %v1641 = vpop.f32.mrf.mxu0
      %v1642 = vadd.f32 %v1497, %v1641
      %v1643 = vpop.f32.mrf.mxu0
      %v1644 = vadd.f32 %v1497, %v1643
      %1645 = vmatprep.mubr.bf16.mxu0 0
      %1646 = vmatmul.mubr.bf16.gmra.mxu0 %v1588
      %v1647 = vpop.f32.mrf.mxu0
      %v1648 = vadd.f32 %v1501, %v1647
      %v1649 = vpop.f32.mrf.mxu0
      %v1650 = vadd.f32 %v1501, %v1649
      %v1651 = vpop.f32.mrf.mxu0
      %v1652 = vadd.f32 %v1505, %v1651
      %v1653 = vpop.f32.mrf.mxu0
      %v1654 = vadd.f32 %v1505, %v1653
      %1655 = vmatprep.mubr.bf16.mxu0 0
      %1656 = vmatmul.mubr.bf16.gmra.mxu0 %v1589
      %v1657 = vpop.f32.mrf.mxu0
      %v1658 = vadd.f32 %v1509, %v1657
      %v1659 = vpop.f32.mrf.mxu0
      %v1660 = vadd.f32 %v1509, %v1659
      %v1661 = vpop.f32.mrf.mxu0
      %v1662 = vadd.f32 %v1513, %v1661
      %v1663 = vpop.f32.mrf.mxu0
      %v1664 = vadd.f32 %v1513, %v1663
      %1665 = vmatprep.mubr.bf16.mxu0 0
      %1666 = vmatmul.mubr.bf16.gmra.mxu0 %v1590
      %v1667 = vpop.f32.mrf.mxu0
      %v1668 = vadd.f32 %v1517, %v1667
      %v1669 = vpop.f32.mrf.mxu0
      %v1670 = vadd.f32 %v1517, %v1669
      %v1671 = vpop.f32.mrf.mxu0
      %v1672 = vadd.f32 %v1521, %v1671
      %v1673 = vpop.f32.mrf.mxu0
      %v1674 = vadd.f32 %v1521, %v1673
      %1675 = vmatprep.mubr.bf16.mxu0 0
      %1676 = vmatmul.mubr.bf16.gmra.mxu0 %v1591
      %v1677 = vpop.f32.mrf.mxu0
      %v1678 = vadd.f32 %v1525, %v1677
      %v1679 = vpop.f32.mrf.mxu0
      %v1680 = vadd.f32 %v1525, %v1679
      %v1681 = vpop.f32.mrf.mxu0
      %v1682 = vadd.f32 %v1529, %v1681
      %v1683 = vpop.f32.mrf.mxu0
      %v1684 = vadd.f32 %v1529, %v1683
      %1685 = vmatprep.mubr.bf16.mxu0 0
      %1686 = vmatmul.mubr.bf16.gmra.mxu0 %v1592
      %v1687 = vpop.f32.mrf.mxu0
      %v1688 = vadd.f32 %v1533, %v1687
      %v1689 = vpop.f32.mrf.mxu0
      %v1690 = vadd.f32 %v1533, %v1689
      %v1691 = vpop.f32.mrf.mxu0
      %v1692 = vadd.f32 %v1537, %v1691
      %v1693 = vpop.f32.mrf.mxu0
      %v1694 = vadd.f32 %v1537, %v1693
      %1695 = vmatprep.mubr.bf16.mxu0 0
      %1696 = vmatmul.mubr.bf16.gmra.mxu0 %v1593
      %v1697 = vpop.f32.mrf.mxu0
      %v1698 = vadd.f32 %v1541, %v1697
      %v1699 = vpop.f32.mrf.mxu0
      %v1700 = vadd.f32 %v1541, %v1699
      %v1701 = vpop.f32.mrf.mxu0
      %v1702 = vadd.f32 %v1545, %v1701
      %v1703 = vpop.f32.mrf.mxu0
      %v1704 = vadd.f32 %v1545, %v1703
      %1705 = vmatprep.mubr.bf16.mxu0 0
      %1706 = vmatmul.mubr.bf16.gmra.mxu0 %v1594
      %v1707 = vpop.f32.mrf.mxu0
      %v1708 = vadd.f32 %v1549, %v1707
      %v1709 = vpop.f32.mrf.mxu0
      %v1710 = vadd.f32 %v1549, %v1709
      %v1711 = vpop.f32.mrf.mxu0
      %v1712 = vadd.f32 %v1553, %v1711
      %v1713 = vpop.f32.mrf.mxu0
      %v1714 = vadd.f32 %v1553, %v1713
      %1715 = vdwg.mxu0
      %v1716 = vmax.f32 %v1638, 0.0
      %v1717 = vmax.f32 %v1640, 0.0
      %v1718 = vmax.f32 %v1642, 0.0
      %v1719 = vmax.f32 %v1644, 0.0
      %v1720 = vmax.f32 %v1648, 0.0
      %v1721 = vmax.f32 %v1650, 0.0
      %v1722 = vmax.f32 %v1652, 0.0
      %v1723 = vmax.f32 %v1654, 0.0
      %v1724 = vmax.f32 %v1658, 0.0
      %v1725 = vmax.f32 %v1660, 0.0
      %v1726 = vmax.f32 %v1662, 0.0
      %v1727 = vmax.f32 %v1664, 0.0
      %v1728 = vmax.f32 %v1668, 0.0
      %v1729 = vmax.f32 %v1670, 0.0
      %v1730 = vmax.f32 %v1672, 0.0
      %v1731 = vmax.f32 %v1674, 0.0
      %v1732 = vmax.f32 %v1678, 0.0
      %v1733 = vmax.f32 %v1680, 0.0
      %v1734 = vmax.f32 %v1682, 0.0
      %v1735 = vmax.f32 %v1684, 0.0
      %v1736 = vmax.f32 %v1688, 0.0
      %v1737 = vmax.f32 %v1690, 0.0
      %v1738 = vmax.f32 %v1692, 0.0
      %v1739 = vmax.f32 %v1694, 0.0
      %v1740 = vmax.f32 %v1698, 0.0
      %v1741 = vmax.f32 %v1700, 0.0
      %v1742 = vmax.f32 %v1702, 0.0
      %v1743 = vmax.f32 %v1704, 0.0
      %v1744 = vmax.f32 %v1708, 0.0
      %v1745 = vmax.f32 %v1710, 0.0
      %v1746 = vmax.f32 %v1712, 0.0
      %v1747 = vmax.f32 %v1714, 0.0
      %v1748 = vpack.c.bf16 %v1718, %v1716
      %v1749 = vpack.c.bf16 %v1719, %v1717
      %v1750 = vpack.c.bf16 %v1722, %v1720
      %v1751 = vpack.c.bf16 %v1723, %v1721
      %v1752 = vpack.c.bf16 %v1726, %v1724
      %v1753 = vpack.c.bf16 %v1727, %v1725
      %v1754 = vpack.c.bf16 %v1730, %v1728
      %v1755 = vpack.c.bf16 %v1731, %v1729
      %v1756 = vpack.c.bf16 %v1734, %v1732
      %v1757 = vpack.c.bf16 %v1735, %v1733
      %v1758 = vpack.c.bf16 %v1738, %v1736
      %v1759 = vpack.c.bf16 %v1739, %v1737
      %v1760 = vpack.c.bf16 %v1742, %v1740
      %v1761 = vpack.c.bf16 %v1743, %v1741
      %v1762 = vpack.c.bf16 %v1746, %v1744
      %v1763 = vpack.c.bf16 %v1747, %v1745
      %1764 = vset.pattern.permute.xlu0 5
      %1765 = vperm.xlu0 %1764, %v656
      %v1766 = vpop.permute.xlu0 %1765
      %1768 = vset.pattern.permute.xlu0 5
      %1769 = vperm.xlu0 %1768, %v657
      %v1770 = vpop.permute.xlu0 %1769
      %1772 = vset.pattern.permute.xlu0 5
      %1773 = vperm.xlu0 %1772, %v658
      %v1774 = vpop.permute.xlu0 %1773
      %1776 = vset.pattern.permute.xlu0 5
      %1777 = vperm.xlu0 %1776, %v659
      %v1778 = vpop.permute.xlu0 %1777
      %1780 = vset.pattern.permute.xlu0 5
      %1781 = vperm.xlu0 %1780, %v660
      %v1782 = vpop.permute.xlu0 %1781
      %1784 = vset.pattern.permute.xlu0 5
      %1785 = vperm.xlu0 %1784, %v661
      %v1786 = vpop.permute.xlu0 %1785
      %1788 = vset.pattern.permute.xlu0 5
      %1789 = vperm.xlu0 %1788, %v662
      %v1790 = vpop.permute.xlu0 %1789
      %1792 = vset.pattern.permute.xlu0 5
      %1793 = vperm.xlu0 %1792, %v663
      %v1794 = vpop.permute.xlu0 %1793
      %1796 = vset.pattern.permute.xlu0 5
      %1797 = vperm.xlu0 %1796, %v664
      %v1798 = vpop.permute.xlu0 %1797
      %1800 = vset.pattern.permute.xlu0 5
      %1801 = vperm.xlu0 %1800, %v665
      %v1802 = vpop.permute.xlu0 %1801
      %1804 = vset.pattern.permute.xlu0 5
      %1805 = vperm.xlu0 %1804, %v666
      %v1806 = vpop.permute.xlu0 %1805
      %1808 = vset.pattern.permute.xlu0 5
      %1809 = vperm.xlu0 %1808, %v667
      %v1810 = vpop.permute.xlu0 %1809
      %1812 = vset.pattern.permute.xlu0 5
      %1813 = vperm.xlu0 %1812, %v668
      %v1814 = vpop.permute.xlu0 %1813
      %1816 = vset.pattern.permute.xlu0 5
      %1817 = vperm.xlu0 %1816, %v669
      %v1818 = vpop.permute.xlu0 %1817
      %1820 = vset.pattern.permute.xlu0 5
      %1821 = vperm.xlu0 %1820, %v670
      %v1822 = vpop.permute.xlu0 %1821
      %1824 = vset.pattern.permute.xlu0 5
      %1825 = vperm.xlu0 %1824, %v671
      %v1826 = vpop.permute.xlu0 %1825
      %v1844 = vunpack.c.l.b16 %v1457
      %v1845 = vunpack.c.l.b16 %v1458
      %v1846 = vunpack.c.l.b16 %v1459
      %v1847 = vunpack.c.l.b16 %v1460
      %v1848 = vunpack.c.l.b16 %v1461
      %v1849 = vunpack.c.l.b16 %v1462
      %v1850 = vunpack.c.l.b16 %v1463
      %v1851 = vunpack.c.l.b16 %v1464
      %v1852 = vunpack.c.l.b16 %v1465
      %v1853 = vunpack.c.l.b16 %v1466
      %v1854 = vunpack.c.l.b16 %v1467
      %v1855 = vunpack.c.l.b16 %v1468
      %v1856 = vunpack.c.l.b16 %v1469
      %v1857 = vunpack.c.l.b16 %v1470
      %v1858 = vunpack.c.l.b16 %v1471
      %v1859 = vunpack.c.l.b16 %v1472
      %v1860 = vpack.c.b16 %v1845, %v1844
      %v1861 = vpack.c.b16 %v1847, %v1846
      %v1862 = vpack.c.b16 %v1849, %v1848
      %v1863 = vpack.c.b16 %v1851, %v1850
      %v1864 = vpack.c.b16 %v1853, %v1852
      %v1865 = vpack.c.b16 %v1855, %v1854
      %v1866 = vpack.c.b16 %v1857, %v1856
      %v1867 = vpack.c.b16 %v1859, %v1858
      %1876 = vmatprep.subr.bf16.mxu0 %v1763
      %1877 = vmatpush1.bf16.msra.mxu0 %v1762
      %1878 = vmatprep.subr.bf16.mxu0 %v1761
      %1879 = vmatpush1.bf16.msra.mxu0 %v1760
      %1880 = vmatprep.subr.bf16.mxu0 %v1759
      %1881 = vmatpush1.bf16.msra.mxu0 %v1758
      %1882 = vmatprep.subr.bf16.mxu0 %v1757
      %1883 = vmatpush1.bf16.msra.mxu0 %v1756
      %1884 = vmatprep.subr.bf16.mxu0 %v1755
      %1885 = vmatpush1.bf16.msra.mxu0 %v1754
      %1886 = vmatprep.subr.bf16.mxu0 %v1753
      %1887 = vmatpush1.bf16.msra.mxu0 %v1752
      %1888 = vmatprep.subr.bf16.mxu0 %v1751
      %1889 = vmatpush1.bf16.msra.mxu0 %v1750
      %1890 = vmatprep.subr.bf16.mxu0 %v1749
      %1891 = vmatpush1.bf16.msra.mxu0 %v1748
      %1892 = vmatprep.subr.bf16.mxu0 0
      %1893 = vmatpush2.bf16.msra.mxu0 0
      %1894 = vmatprep.subr.bf16.mxu0 0
      %1895 = vmatpush2.bf16.msra.mxu0 0
      %1896 = vmatprep.subr.bf16.mxu0 0
      %1897 = vmatpush2.bf16.msra.mxu0 0
      %1898 = vmatprep.subr.bf16.mxu0 0
      %1899 = vmatpush2.bf16.msra.mxu0 0
      %1900 = vmatprep.subr.bf16.mxu0 0
      %1901 = vmatpush2.bf16.msra.mxu0 0
      %1902 = vmatprep.subr.bf16.mxu0 0
      %1903 = vmatpush2.bf16.msra.mxu0 0
      %1904 = vmatprep.subr.bf16.mxu0 0
      %1905 = vmatpush2.bf16.msra.mxu0 0
      %1906 = vmatprep.subr.bf16.mxu0 0
      %1907 = vmatpush2.bf16.msra.mxu0 0
      %1908 = vmatprep.mubr.bf16.mxu0 0
      %1909 = vmatmul.mubr.bf16.gmra.mxu0 %v1860
      %v1910 = vpop.f32.mrf.mxu0
      %v1911 = vadd.f32 %v1766, %v1910
      %v1912 = vpop.f32.mrf.mxu0
      %v1913 = vadd.f32 %v1766, %v1912
      %v1914 = vpop.f32.mrf.mxu0
      %v1915 = vadd.f32 %v1770, %v1914
      %v1916 = vpop.f32.mrf.mxu0
      %v1917 = vadd.f32 %v1770, %v1916
      %1918 = vmatprep.mubr.bf16.mxu0 0
      %1919 = vmatmul.mubr.bf16.gmra.mxu0 %v1861
      %v1920 = vpop.f32.mrf.mxu0
      %v1921 = vadd.f32 %v1774, %v1920
      %v1922 = vpop.f32.mrf.mxu0
      %v1923 = vadd.f32 %v1774, %v1922
      %v1924 = vpop.f32.mrf.mxu0
      %v1925 = vadd.f32 %v1778, %v1924
      %v1926 = vpop.f32.mrf.mxu0
      %v1927 = vadd.f32 %v1778, %v1926
      %1928 = vmatprep.mubr.bf16.mxu0 0
      %1929 = vmatmul.mubr.bf16.gmra.mxu0 %v1862
      %v1930 = vpop.f32.mrf.mxu0
      %v1931 = vadd.f32 %v1782, %v1930
      %v1932 = vpop.f32.mrf.mxu0
      %v1933 = vadd.f32 %v1782, %v1932
      %v1934 = vpop.f32.mrf.mxu0
      %v1935 = vadd.f32 %v1786, %v1934
      %v1936 = vpop.f32.mrf.mxu0
      %v1937 = vadd.f32 %v1786, %v1936
      %1938 = vmatprep.mubr.bf16.mxu0 0
      %1939 = vmatmul.mubr.bf16.gmra.mxu0 %v1863
      %v1940 = vpop.f32.mrf.mxu0
      %v1941 = vadd.f32 %v1790, %v1940
      %v1942 = vpop.f32.mrf.mxu0
      %v1943 = vadd.f32 %v1790, %v1942
      %v1944 = vpop.f32.mrf.mxu0
      %v1945 = vadd.f32 %v1794, %v1944
      %v1946 = vpop.f32.mrf.mxu0
      %v1947 = vadd.f32 %v1794, %v1946
      %1948 = vmatprep.mubr.bf16.mxu0 0
      %1949 = vmatmul.mubr.bf16.gmra.mxu0 %v1864
      %v1950 = vpop.f32.mrf.mxu0
      %v1951 = vadd.f32 %v1798, %v1950
      %v1952 = vpop.f32.mrf.mxu0
      %v1953 = vadd.f32 %v1798, %v1952
      %v1954 = vpop.f32.mrf.mxu0
      %v1955 = vadd.f32 %v1802, %v1954
      %v1956 = vpop.f32.mrf.mxu0
      %v1957 = vadd.f32 %v1802, %v1956
      %1958 = vmatprep.mubr.bf16.mxu0 0
      %1959 = vmatmul.mubr.bf16.gmra.mxu0 %v1865
      %v1960 = vpop.f32.mrf.mxu0
      %v1961 = vadd.f32 %v1806, %v1960
      %v1962 = vpop.f32.mrf.mxu0
      %v1963 = vadd.f32 %v1806, %v1962
      %v1964 = vpop.f32.mrf.mxu0
      %v1965 = vadd.f32 %v1810, %v1964
      %v1966 = vpop.f32.mrf.mxu0
      %v1967 = vadd.f32 %v1810, %v1966
      %1968 = vmatprep.mubr.bf16.mxu0 0
      %1969 = vmatmul.mubr.bf16.gmra.mxu0 %v1866
      %v1970 = vpop.f32.mrf.mxu0
      %v1971 = vadd.f32 %v1814, %v1970
      %v1972 = vpop.f32.mrf.mxu0
      %v1973 = vadd.f32 %v1814, %v1972
      %v1974 = vpop.f32.mrf.mxu0
      %v1975 = vadd.f32 %v1818, %v1974
      %v1976 = vpop.f32.mrf.mxu0
      %v1977 = vadd.f32 %v1818, %v1976
      %1978 = vmatprep.mubr.bf16.mxu0 0
      %1979 = vmatmul.mubr.bf16.gmra.mxu0 %v1867
      %v1980 = vpop.f32.mrf.mxu0
      %v1981 = vadd.f32 %v1822, %v1980
      %v1982 = vpop.f32.mrf.mxu0
      %v1983 = vadd.f32 %v1822, %v1982
      %v1984 = vpop.f32.mrf.mxu0
      %v1985 = vadd.f32 %v1826, %v1984
      %v1986 = vpop.f32.mrf.mxu0
      %v1987 = vadd.f32 %v1826, %v1986
      %1988 = vdwg.mxu0
      %v1989 = vmax.f32 %v1911, 0.0
      %v1990 = vmax.f32 %v1913, 0.0
      %v1991 = vmax.f32 %v1915, 0.0
      %v1992 = vmax.f32 %v1917, 0.0
      %v1993 = vmax.f32 %v1921, 0.0
      %v1994 = vmax.f32 %v1923, 0.0
      %v1995 = vmax.f32 %v1925, 0.0
      %v1996 = vmax.f32 %v1927, 0.0
      %v1997 = vmax.f32 %v1931, 0.0
      %v1998 = vmax.f32 %v1933, 0.0
      %v1999 = vmax.f32 %v1935, 0.0
      %v2000 = vmax.f32 %v1937, 0.0
      %v2001 = vmax.f32 %v1941, 0.0
      %v2002 = vmax.f32 %v1943, 0.0
      %v2003 = vmax.f32 %v1945, 0.0
      %v2004 = vmax.f32 %v1947, 0.0
      %v2005 = vmax.f32 %v1951, 0.0
      %v2006 = vmax.f32 %v1953, 0.0
      %v2007 = vmax.f32 %v1955, 0.0
      %v2008 = vmax.f32 %v1957, 0.0
      %v2009 = vmax.f32 %v1961, 0.0
      %v2010 = vmax.f32 %v1963, 0.0
      %v2011 = vmax.f32 %v1965, 0.0
      %v2012 = vmax.f32 %v1967, 0.0
      %v2013 = vmax.f32 %v1971, 0.0
      %v2014 = vmax.f32 %v1973, 0.0
      %v2015 = vmax.f32 %v1975, 0.0
      %v2016 = vmax.f32 %v1977, 0.0
      %v2017 = vmax.f32 %v1981, 0.0
      %v2018 = vmax.f32 %v1983, 0.0
      %v2019 = vmax.f32 %v1985, 0.0
      %v2020 = vmax.f32 %v1987, 0.0
      %v2021 = vpack.c.bf16 %v1991, %v1989
      %v2022 = vpack.c.bf16 %v1992, %v1990
      %v2023 = vpack.c.bf16 %v1995, %v1993
      %v2024 = vpack.c.bf16 %v1996, %v1994
      %v2025 = vpack.c.bf16 %v1999, %v1997
      %v2026 = vpack.c.bf16 %v2000, %v1998
      %v2027 = vpack.c.bf16 %v2003, %v2001
      %v2028 = vpack.c.bf16 %v2004, %v2002
      %v2029 = vpack.c.bf16 %v2007, %v2005
      %v2030 = vpack.c.bf16 %v2008, %v2006
      %v2031 = vpack.c.bf16 %v2011, %v2009
      %v2032 = vpack.c.bf16 %v2012, %v2010
      %v2033 = vpack.c.bf16 %v2015, %v2013
      %v2034 = vpack.c.bf16 %v2016, %v2014
      %v2035 = vpack.c.bf16 %v2019, %v2017
      %v2036 = vpack.c.bf16 %v2020, %v2018
      %2037 = vset.pattern.permute.xlu0 6
      %2038 = vperm.xlu0 %2037, %v656
      %v2039 = vpop.permute.xlu0 %2038
      %2042 = vset.pattern.permute.xlu0 6
      %2043 = vperm.xlu0 %2042, %v672
      %v2044 = vpop.permute.xlu0 %2043
      %v2048 = vunpack.c.l.b16 %v1473
      %v2049 = vunpack.c.l.b16 %v1474
      %v2050 = vpack.c.b16 %v2049, %v2048
      %2052 = vmatprep.subr.bf16.mxu0 %v2036
      %2053 = vmatpush1.bf16.msra.mxu0 %v2035
      %2054 = vmatprep.subr.bf16.mxu0 %v2034
      %2055 = vmatpush1.bf16.msra.mxu0 %v2033
      %2056 = vmatprep.subr.bf16.mxu0 %v2032
      %2057 = vmatpush1.bf16.msra.mxu0 %v2031
      %2058 = vmatprep.subr.bf16.mxu0 %v2030
      %2059 = vmatpush1.bf16.msra.mxu0 %v2029
      %2060 = vmatprep.subr.bf16.mxu0 %v2028
      %2061 = vmatpush1.bf16.msra.mxu0 %v2027
      %2062 = vmatprep.subr.bf16.mxu0 %v2026
      %2063 = vmatpush1.bf16.msra.mxu0 %v2025
      %2064 = vmatprep.subr.bf16.mxu0 %v2024
      %2065 = vmatpush1.bf16.msra.mxu0 %v2023
      %2066 = vmatprep.subr.bf16.mxu0 %v2022
      %2067 = vmatpush1.bf16.msra.mxu0 %v2021
      %2068 = vmatprep.subr.bf16.mxu0 0
      %2069 = vmatpush2.bf16.msra.mxu0 0
      %2070 = vmatprep.subr.bf16.mxu0 0
      %2071 = vmatpush2.bf16.msra.mxu0 0
      %2072 = vmatprep.subr.bf16.mxu0 0
      %2073 = vmatpush2.bf16.msra.mxu0 0
      %2074 = vmatprep.subr.bf16.mxu0 0
      %2075 = vmatpush2.bf16.msra.mxu0 0
      %2076 = vmatprep.subr.bf16.mxu0 0
      %2077 = vmatpush2.bf16.msra.mxu0 0
      %2078 = vmatprep.subr.bf16.mxu0 0
      %2079 = vmatpush2.bf16.msra.mxu0 0
      %2080 = vmatprep.subr.bf16.mxu0 0
      %2081 = vmatpush2.bf16.msra.mxu0 0
      %2082 = vmatprep.subr.bf16.mxu0 0
      %2083 = vmatpush2.bf16.msra.mxu0 0
      %2084 = vmatprep.mubr.bf16.mxu0 0
      %2085 = vmatmul.mubr.bf16.gmra.mxu0 %v2050
      %v2086 = vpop.f32.mrf.mxu0
      %v2087 = vadd.f32 %v2039, %v2086
      %v2088 = vpop.f32.mrf.mxu0
      %v2089 = vadd.f32 %v2039, %v2088
      %v2090 = vpop.f32.mrf.mxu0
      %v2091 = vadd.f32 %v2044, %v2090
      %v2092 = vpop.f32.mrf.mxu0
      %v2093 = vadd.f32 %v2044, %v2092
      %2094 = vdwg.mxu0
      %v2095 = vmul.f32 %v2091, 0.01
      %v2096 = vmul.f32 %v2093, 0.01
      %v2097 = vld [vmem:[%s398] ss:$8 sm:$0x3]
      %v2100 = vcombine.low %v2095, %v2096
      %v2102 = vunpack.c.l.s4 1966171168
      %v2103 = vunpack.c.0.s8 %v2102
      %v2104 = vlaneseq
      %v2105 = vshrl.u32 %v2104, 7
      %v2106 = vsub.s32 %v2103, %v2105
      %v2107 = vrot.slane %v2100, %v2106
      %v2109 = vunpack.c.l.s4 1966171168
      %v2110 = vunpack.c.0.s8 %v2109
      %v2111 = vlaneseq
      %v2112 = vshrl.u32 %v2111, 7
      %v2113 = vsub.s32 %v2110, %v2112
      %v2114 = vrot.slane %v2107, %v2113
      %v2116 = vmul.f32 %v2097, %v2114
      %s2117 = scalar_lea.vmem %s398, 1
      %v2118 = vld [vmem:[%s2117] ss:$8 sm:$0x3]
      %v2119 = vcombine.high %v2107, %v2107
      %v2121 = vunpack.c.l.s4 1966171168
      %v2122 = vunpack.c.0.s8 %v2121
      %v2123 = vlaneseq
      %v2124 = vshrl.u32 %v2123, 7
      %v2125 = vsub.s32 %v2122, %v2124
      %v2126 = vrot.slane %v2119, %v2125
      %v2128 = vmul.f32 %v2118, %v2126
      %v2129 = vadd.f32 %v2116, %v2128
      %s2130 = scalar_lea.vmem %s398, 2
      %v2131 = vld [vmem:[%s2130] ss:$8 sm:$0x3]
      %v2132 = vcombine.high %v2114, %v2114
      %v2134 = vmul.f32 %v2131, %v2132
      %v2135 = vadd.f32 %v2129, %v2134
      %s2136 = scalar_lea.vmem %s398, 3
      %v2137 = vld [vmem:[%s2136] ss:$8 sm:$0x3]
      %v2138 = vmul.f32 %v2137, %v2114
      %s2139 = scalar_lea.vmem %s398, 4
      %v2140 = vld [vmem:[%s2139] ss:$8 sm:$0x3]
      %v2141 = vmul.f32 %v2140, %v2126
      %v2142 = vadd.f32 %v2138, %v2141
      %s2143 = scalar_lea.vmem %s398, 5
      %v2144 = vld [vmem:[%s2143] ss:$8 sm:$0x3]
      %v2145 = vmul.f32 %v2144, %v2132
      %v2146 = vadd.f32 %v2142, %v2145
      %s2147 = scalar_lea.vmem %s398, 6
      %v2148 = vld [vmem:[%s2147] ss:$8 sm:$0x3]
      %v2149 = vmul.f32 %v2148, %v2114
      %s2150 = scalar_lea.vmem %s398, 7
      %v2151 = vld [vmem:[%s2150] ss:$8 sm:$0x3]
      %v2152 = vmul.f32 %v2151, %v2126
      %v2153 = vadd.f32 %v2149, %v2152
      %s2154 = scalar_lea.vmem %s398, 16
      %v2155 = vld [vmem:[%s2154] ss:$8 sm:$0x3]
      %v2156 = vmul.f32 %v2155, %v2132
      %v2157 = vadd.f32 %v2153, %v2156
      %v2159 = vlaneseq
      %v2160 = vshrl.u32 %v2159, 7
      %v2161 = vsub.s32 0, %v2160
      %v2162 = vrot.slane %v2135, %v2161
      %v2163 = vlaneseq
      %v2164 = vshrl.u32 %v2163, 7
      %v2165 = vsub.s32 1, %v2164
      %v2166 = vrot.slane %v2135, %v2165
      %v2170 = vlaneseq
      %v2171 = vshrl.u32 %v2170, 7
      %v2172 = vsub.s32 0, %v2171
      %v2173 = vrot.slane %v2146, %v2172
      %v2174 = vlaneseq
      %v2175 = vshrl.u32 %v2174, 7
      %v2176 = vsub.s32 1, %v2175
      %v2177 = vrot.slane %v2146, %v2176
      %v2181 = vlaneseq
      %v2182 = vshrl.u32 %v2181, 7
      %v2183 = vsub.s32 0, %v2182
      %v2184 = vrot.slane %v2157, %v2183
      %v2185 = vlaneseq
      %v2186 = vshrl.u32 %v2185, 7
      %v2187 = vsub.s32 1, %v2186
      %v2188 = vrot.slane %v2157, %v2187
      %vm2191 = vcmask 1040384
      %v2192 = vsel %vm2191, %v2162, %v2173
      %v2193 = vsel %vm2191, %v2166, %v2177
      %vm2194 = vcmask 1041408
      %v2195 = vsel %vm2194, %v2192, %v2184
      %v2196 = vsel %vm2194, %v2193, %v2188
      %v2197 = vmul.f32 %v2195, %v2195
      %v2198 = vmul.f32 %v2196, %v2196
      %vm2199 = vcmask 1042432
      %v2200 = vsel %vm2199, %v2197, 0.0
      %v2201 = vrot.slane %v2200, 4
      %v2202 = vadd.f32 %v2200, %v2201
      %v2203 = vrot.slane %v2202, 2
      %v2204 = vadd.f32 %v2202, %v2203
      %v2205 = vrot.slane %v2204, 1
      %v2206 = vadd.f32 %v2204, %v2205
      %v2207 = vsel %vm2199, %v2198, 0.0
      %v2208 = vrot.slane %v2207, 4
      %v2209 = vadd.f32 %v2207, %v2208
      %v2210 = vrot.slane %v2209, 2
      %v2211 = vadd.f32 %v2209, %v2210
      %v2212 = vrot.slane %v2211, 1
      %v2213 = vadd.f32 %v2211, %v2212
      %vm2214 = vcmp.lt.f32.partialorder %v2206, 0.0016
      %vm2215 = vcmp.lt.f32.partialorder %v2213, 0.0016
      %v2216 = vsel %vm2214, 1, 0
      %v2217 = vsel %vm2215, 1, 0
      %v2218 = vcvt.s32.f32 %v2216
      %v2219 = vcvt.s32.f32 %v2217
      %v2220 = vmul.f32 %v2195, %v2218
      %v2221 = vmul.f32 %v2196, %v2219
      %v2222 = vld [vmem:[%s3] sm:$0xff]
      %v2223 = vld [vmem:[%s3 + $0x8] sm:$0xf]
      %vm2224 = vcmask 64512
      %v2226 = vsel %vm2224, %v2222, 0
      %v2229 = vsel %vm2224, %v2223, 0
      %2231 = vmatprep.subr.mxu0 0.0
      %2232 = vmatpush1.msra.mxu0 0.0
      %2233 = vmatprep.subr.mxu0 0.0
      %2234 = vmatpush1.msra.mxu0 0.0
      %2235 = vmatprep.subr.mxu0 0.0
      %2236 = vmatpush1.msra.mxu0 0.0
      %2237 = vmatprep.subr.mxu0 0.0
      %2238 = vmatpush1.msra.mxu0 0.0
      %2239 = vmatprep.subr.mxu0 0.0
      %2240 = vmatpush1.msra.mxu0 0.0
      %2241 = vmatprep.subr.mxu0 0.0
      %2242 = vmatpush1.msra.mxu0 0.0
      %2243 = vmatprep.subr.mxu0 0.0
      %2244 = vmatpush1.msra.mxu0 0.0
      %2245 = vmatprep.subr.mxu0 0.0
      %2246 = vmatpush1.msra.mxu0 0.0
      %2247 = vmatprep.subr.mxu0 0.0
      %2248 = vmatpush1.msra.mxu0 0.0
      %2249 = vmatprep.subr.mxu0 0.0
      %2250 = vmatpush1.msra.mxu0 0.0
      %2251 = vmatprep.subr.mxu0 0.0
      %2252 = vmatpush1.msra.mxu0 0.0
      %2253 = vmatprep.subr.mxu0 0.0
      %2254 = vmatpush1.msra.mxu0 0.0
      %2255 = vmatprep.subr.mxu0 0.0
      %2256 = vmatpush1.msra.mxu0 0.0
      %2257 = vmatprep.subr.mxu0 0.0
      %2258 = vmatpush1.msra.mxu0 0.0
      %2259 = vmatprep.subr.mxu0 0.0
      %2260 = vmatpush1.msra.mxu0 0.0
      %2261 = vmatprep.subr.mxu0 0.0
      %2262 = vmatpush1.msra.mxu0 %v655
      %2263 = vmatprep.subr.mxu0 0.0
      %2264 = vmatpush2.msra.mxu0 0.0
      %2265 = vmatprep.subr.mxu0 0.0
      %2266 = vmatpush2.msra.mxu0 0.0
      %2267 = vmatprep.subr.mxu0 0.0
      %2268 = vmatpush2.msra.mxu0 0.0
      %2269 = vmatprep.subr.mxu0 0.0
      %2270 = vmatpush2.msra.mxu0 0.0
      %2271 = vmatprep.subr.mxu0 0.0
      %2272 = vmatpush2.msra.mxu0 0.0
      %2273 = vmatprep.subr.mxu0 0.0
      %2274 = vmatpush2.msra.mxu0 0.0
      %2275 = vmatprep.subr.mxu0 0.0
      %2276 = vmatpush2.msra.mxu0 0.0
      %2277 = vmatprep.subr.mxu0 0.0
      %2278 = vmatpush2.msra.mxu0 0.0
      %2279 = vmatprep.subr.mxu0 0.0
      %2280 = vmatpush2.msra.mxu0 0.0
      %2281 = vmatprep.subr.mxu0 0.0
      %2282 = vmatpush2.msra.mxu0 0.0
      %2283 = vmatprep.subr.mxu0 0.0
      %2284 = vmatpush2.msra.mxu0 0.0
      %2285 = vmatprep.subr.mxu0 0.0
      %2286 = vmatpush2.msra.mxu0 0.0
      %2287 = vmatprep.subr.mxu0 0.0
      %2288 = vmatpush2.msra.mxu0 0.0
      %2289 = vmatprep.subr.mxu0 0.0
      %2290 = vmatpush2.msra.mxu0 0.0
      %2291 = vmatprep.subr.mxu0 0.0
      %2292 = vmatpush2.msra.mxu0 0.0
      %2293 = vmatprep.subr.mxu0 0.0
      %2294 = vmatpush2.msra.mxu0 0.0
      %2295 = vmatprep.mubr.f32.mxu0 0.0
      %2296 = vmatmul.mubr.f32.gmra.mxu0 %v2226
      %v2297 = vpop.f32.mrf.mxu0
      %v2298 = vadd.f32 0.0, %v2297
      %v2299 = vpop.f32.mrf.mxu0
      %2300 = vmatprep.mubr.f32.mxu0 0.0
      %2301 = vmatmul.mubr.f32.gmra.mxu0 %v2229
      %v2302 = vpop.f32.mrf.mxu0
      %v2303 = vadd.f32 0.0, %v2302
      %v2304 = vpop.f32.mrf.mxu0
      %2305 = vdwg.mxu0
      %v2306 = vlaneseq
      %v2307 = vshrl.u32 %v2306, 7
      %v2308 = vsub.s32 0, %v2307
      %v2309 = vrot.slane %v425, %v2308
      %v2310 = vmul.f32 %v2298, %v2309
      %v2311 = vlaneseq
      %v2312 = vshrl.u32 %v2311, 7
      %v2313 = vsub.s32 1, %v2312
      %v2314 = vrot.slane %v425, %v2313
      %v2315 = vmul.f32 %v2298, %v2314
      %v2317 = vrot.slane %v2315, 3
      %v2319 = vadd.f32 %v2310, %v2317
      %v2320 = vlaneseq
      %v2321 = vshrl.u32 %v2320, 7
      %v2322 = vsub.s32 2, %v2321
      %v2323 = vrot.slane %v425, %v2322
      %v2324 = vmul.f32 %v2298, %v2323
      %v2325 = vmul.f32 %v2303, %v2323
      %v2328 = vrot.slane %v2324, 6
      %v2329 = vrot.slane %v2325, 6
      %v2330 = vsel %vm2194, %v2328, %v2329
      %v2332 = vadd.f32 %v2319, %v2330
      %v2334 = vrot.slane %v2303, 1
      %v2336 = vadd.f32 %v2332, %v2334
      %s2337 = scalar_lea.vmem %s3, 16
      %v2338 = vld [vmem:[%s2337] sm:$0xff]
      %v2339 = vld [vmem:[%s2337 + $0x8] sm:$0xf]
      %v2341 = vsel %vm2224, %v2338, 0
      %v2344 = vsel %vm2224, %v2339, 0
      %2346 = vmatprep.subr.mxu0 0.0
      %2347 = vmatpush1.msra.mxu0 0.0
      %2348 = vmatprep.subr.mxu0 0.0
      %2349 = vmatpush1.msra.mxu0 0.0
      %2350 = vmatprep.subr.mxu0 0.0
      %2351 = vmatpush1.msra.mxu0 0.0
      %2352 = vmatprep.subr.mxu0 0.0
      %2353 = vmatpush1.msra.mxu0 0.0
      %2354 = vmatprep.subr.mxu0 0.0
      %2355 = vmatpush1.msra.mxu0 0.0
      %2356 = vmatprep.subr.mxu0 0.0
      %2357 = vmatpush1.msra.mxu0 0.0
      %2358 = vmatprep.subr.mxu0 0.0
      %2359 = vmatpush1.msra.mxu0 0.0
      %2360 = vmatprep.subr.mxu0 0.0
      %2361 = vmatpush1.msra.mxu0 0.0
      %2362 = vmatprep.subr.mxu0 0.0
      %2363 = vmatpush1.msra.mxu0 0.0
      %2364 = vmatprep.subr.mxu0 0.0
      %2365 = vmatpush1.msra.mxu0 0.0
      %2366 = vmatprep.subr.mxu0 0.0
      %2367 = vmatpush1.msra.mxu0 0.0
      %2368 = vmatprep.subr.mxu0 0.0
      %2369 = vmatpush1.msra.mxu0 0.0
      %2370 = vmatprep.subr.mxu0 0.0
      %2371 = vmatpush1.msra.mxu0 0.0
      %2372 = vmatprep.subr.mxu0 0.0
      %2373 = vmatpush1.msra.mxu0 0.0
      %2374 = vmatprep.subr.mxu0 0.0
      %2375 = vmatpush1.msra.mxu0 0.0
      %2376 = vmatprep.subr.mxu0 0.0
      %2377 = vmatpush1.msra.mxu0 %v655
      %2378 = vmatprep.subr.mxu0 0.0
      %2379 = vmatpush2.msra.mxu0 0.0
      %2380 = vmatprep.subr.mxu0 0.0
      %2381 = vmatpush2.msra.mxu0 0.0
      %2382 = vmatprep.subr.mxu0 0.0
      %2383 = vmatpush2.msra.mxu0 0.0
      %2384 = vmatprep.subr.mxu0 0.0
      %2385 = vmatpush2.msra.mxu0 0.0
      %2386 = vmatprep.subr.mxu0 0.0
      %2387 = vmatpush2.msra.mxu0 0.0
      %2388 = vmatprep.subr.mxu0 0.0
      %2389 = vmatpush2.msra.mxu0 0.0
      %2390 = vmatprep.subr.mxu0 0.0
      %2391 = vmatpush2.msra.mxu0 0.0
      %2392 = vmatprep.subr.mxu0 0.0
      %2393 = vmatpush2.msra.mxu0 0.0
      %2394 = vmatprep.subr.mxu0 0.0
      %2395 = vmatpush2.msra.mxu0 0.0
      %2396 = vmatprep.subr.mxu0 0.0
      %2397 = vmatpush2.msra.mxu0 0.0
      %2398 = vmatprep.subr.mxu0 0.0
      %2399 = vmatpush2.msra.mxu0 0.0
      %2400 = vmatprep.subr.mxu0 0.0
      %2401 = vmatpush2.msra.mxu0 0.0
      %2402 = vmatprep.subr.mxu0 0.0
      %2403 = vmatpush2.msra.mxu0 0.0
      %2404 = vmatprep.subr.mxu0 0.0
      %2405 = vmatpush2.msra.mxu0 0.0
      %2406 = vmatprep.subr.mxu0 0.0
      %2407 = vmatpush2.msra.mxu0 0.0
      %2408 = vmatprep.subr.mxu0 0.0
      %2409 = vmatpush2.msra.mxu0 0.0
      %2410 = vmatprep.mubr.f32.mxu0 0.0
      %2411 = vmatmul.mubr.f32.gmra.mxu0 %v2341
      %v2412 = vpop.f32.mrf.mxu0
      %v2413 = vadd.f32 0.0, %v2412
      %v2414 = vpop.f32.mrf.mxu0
      %2415 = vmatprep.mubr.f32.mxu0 0.0
      %2416 = vmatmul.mubr.f32.gmra.mxu0 %v2344
      %v2417 = vpop.f32.mrf.mxu0
      %v2418 = vadd.f32 0.0, %v2417
      %v2419 = vpop.f32.mrf.mxu0
      %2420 = vdwg.mxu0
      %v2421 = vmul.f32 %v2413, %v2309
      %v2422 = vmul.f32 %v2413, %v2314
      %v2424 = vrot.slane %v2422, 3
      %v2426 = vadd.f32 %v2421, %v2424
      %v2427 = vmul.f32 %v2413, %v2323
      %v2428 = vmul.f32 %v2418, %v2323
      %v2431 = vrot.slane %v2427, 6
      %v2432 = vrot.slane %v2428, 6
      %v2433 = vsel %vm2194, %v2431, %v2432
      %v2435 = vadd.f32 %v2426, %v2433
      %v2437 = vrot.slane %v2418, 1
      %v2439 = vadd.f32 %v2435, %v2437
      %v2442 = vrot.slane %v2220, 5
      %v2443 = vrot.slane %v2221, 5
      %v2448 = vrot.slane %v2336, 2
      %v2449 = vrot.slane %v2439, 2
      %v2452 = vsel %vm2199, %v2195, %v2442
      %v2453 = vsel %vm2199, %v2196, %v2443
      %vm2454 = vcmask 1045504
      %v2455 = vsel %vm2454, %v2452, %v2448
      %v2456 = vsel %vm2454, %v2453, %v2449
      %2457 = vst [vmem:[%s422] sm:$0xff] %v2087
      %2458 = vst [vmem:[%s422 + $0x8] sm:$0xff] %v2089
      %2459 = vst [vmem:[%s422 + $0x10] sm:$0xff] %v2455
      %2460 = vst [vmem:[%s422 + $0x18] sm:$0xff] %v2456
      %2461 = vst [vmem:[%s422 + $0x20] sm:$0x1] %v2448
      %2462 = vst [vmem:[%s422 + $0x28] sm:$0x1] %v2449
      %p2463 = scmp.lt.s32.totalorder %s19, 6
      %s2464 = scalar_select %p2463, %s19, 6
      %s2465 = smul.addr %s2464, 6
      %s2466 = smul.addr %s2465, 8
      %s2467 = scalar_lea.vmem %s8, %s2466
      // Predicated region
      $region53: #{npc_gnn_film_forward.3} parent=51 // pred_check
        %p2468 = pneg %p240
      $region54: #{npc_gnn_film_forward.3} parent=51 // pred_check_branch
        %2470 = sbr.rel (%p2468) target = $region56
      $region55: #{npc_gnn_film_forward.3} parent=51 // pred_region
        _
      $region56: #{npc_gnn_film_forward.3} parent=51 // pred_fallthru
        _
    $region52: #{npc_gnn_film_forward.3} parent=5 // pred_fallthru
      _
    %p2471 = scmp.le.s32.totalorder 2, %s14
    // Predicated region
    $region57: #{npc_gnn_film_forward.3} parent=5 // pred_check
      %p2472 = pneg %p2471
    $region58: #{npc_gnn_film_forward.3} parent=5 // pred_check_branch
      %2474 = sbr.rel (%p2472) target = $region60
    $region59: #{npc_gnn_film_forward.3} parent=5 // pred_region
      %s2475 = ssub.s32 %s14, 2
      // Predicated region
      $region61: #{npc_gnn_film_forward.3} parent=59 // pred_check
        %p2476 = pneg %p246
      $region62: #{npc_gnn_film_forward.3} parent=59 // pred_check_branch
        %2478 = sbr.rel (%p2476) target = $region64
      $region63: #{npc_gnn_film_forward.3} parent=59 // pred_region
        %p2479 = scmp.lt.s32.totalorder %s20, 6
        %s2480 = scalar_select %p2479, %s20, 6
        %s2481 = smul.addr %s2480, 6
        %s2482 = smul.addr %s2481, 8
        %s2483 = scalar_lea.vmem %s8, %s2482
      $region64: #{npc_gnn_film_forward.3} parent=59 // pred_fallthru
        _
    $region60: #{npc_gnn_film_forward.3} parent=5 // pred_fallthru
      _
  $region6: #{npc_gnn_film_forward.3} parent=0 // loop_footer
    %s18 = sadd.s32 1, %s14
  $region7: #{npc_gnn_film_forward.3} parent=0 // loop_footer_branch
    %13 = sbr.rel target = $region3
  $region8: #{npc_gnn_film_forward.3} parent=0 // loop_exit
    _

</llo_original>
